<compile_context>
chip_gen: v7x
topology: tpu7x:2x2x1
jax: 0.10.0
libtpu: 0.0.40
codegen_flags: <defaults>
</compile_context>

<pallas_src>
import numpy as np

import jax
import jax.numpy as jnp
from jax.experimental import pallas as pl
from jax.experimental.pallas import tpu as pltpu


# ----------------------------------------------------------------------------
# Model configuration (scaled-down VGG consistent with the module's forward)
# ----------------------------------------------------------------------------
IN_CH = 3
IMG_H = IMG_W = 16
CFG_C1, CFG_C2 = 8, 16          # features cfg = [8, 'M', 16, 'M']
HIDDEN = 64
NUM_CLASSES = 10
H1, W1 = IMG_H, IMG_W           # conv1 output spatial (16, 16)
H2, W2 = H1 // 2, W1 // 2       # conv2 output spatial (8, 8)
H3, W3 = H2 // 2, W2 // 2       # final pooled spatial (4, 4)
FLAT = H3 * W3 * CFG_C2         # 256


# ----------------------------------------------------------------------------
# Fused Pallas kernel: whole VGG forward for one image per grid step
# ----------------------------------------------------------------------------
def _shift_rows(v, k):
    # rows shifted up by k (row r <- row r+k); wrapped rows are never selected.
    return jnp.concatenate([v[k:], v[:k]], axis=0)


def vgg_fused_kernel(xp_ref, s1_ref, s2_ref,
                     w1_ref, b1_ref, w2_ref, b2_ref,
                     w0_ref, b0_ref, w1f_ref, b1f_ref, w2f_ref, b2f_ref,
                     o_ref):
    f32 = jnp.float32

    # ---- conv1 (3x3, pad 1) + ReLU : single im2col matmul, K = 9*Cin = 27 ----
    rows = []
    for h in range(H1):
        taps = [xp_ref[0, h + kh, kw:kw + W1, :]          # (W1, Cin) straight from VMEM
                for kh in range(3) for kw in range(3)]
        rows.append(jnp.concatenate(taps, axis=-1))       # (W1, 27)
    im2col1 = jnp.concatenate(rows, axis=0)               # (H1*W1, 27), rows = (h, w)
    c1 = jnp.dot(im2col1, w1_ref[...], preferred_element_type=f32) + b1_ref[...]
    c1 = jnp.maximum(c1, 0.0)                             # (256, C1)

    # ---- pool1 (2x2/2) fused epilogue + zero-pad embed for conv2 -------------
    m = jnp.maximum(c1, _shift_rows(c1, 1))               # pair (w, w+1)
    m = jnp.maximum(m, _shift_rows(m, W1))                # pair (h, h+1)
    # exact 0/1 selection matmul: picks the even-(h,w) anchors and scatters them
    # into the zero-padded (H2+2)x(W2+2) row grid that conv2's im2col expects.
    p1 = jnp.dot(s1_ref[...], m, preferred_element_type=f32)   # (100, C1)

    # ---- conv2 (3x3, pad 1) + ReLU : single im2col matmul, K = 9*C1 = 72 -----
    wp2 = W2 + 2
    rows = []
    for h in range(H2):
        taps = [p1[(h + kh) * wp2 + kw:(h + kh) * wp2 + kw + W2, :]
                for kh in range(3) for kw in range(3)]
        rows.append(jnp.concatenate(taps, axis=-1))       # (W2, 72)
    im2col2 = jnp.concatenate(rows, axis=0)               # (H2*W2, 72)
    c2 = jnp.dot(im2col2, w2_ref[...], preferred_element_type=f32) + b2_ref[...]
    c2 = jnp.maximum(c2, 0.0)                             # (64, C2)

    # ---- pool2 + flatten (HWC order; fc0 weight rows were pre-permuted) ------
    m = jnp.maximum(c2, _shift_rows(c2, 1))
    m = jnp.maximum(m, _shift_rows(m, W2))
    feat = jnp.dot(s2_ref[...], m, preferred_element_type=f32)   # (H3*W3, C2) = (16, 16)
    flat = jnp.concatenate([feat[p:p + 1, :] for p in range(H3 * W3)], axis=1)  # (1, 256)

    # ---- classifier: Linear+ReLU, Linear+ReLU, Linear (Dropout = identity) ---
    h0 = jnp.maximum(jnp.dot(flat, w0_ref[...], preferred_element_type=f32) + b0_ref[...], 0.0)
    h1 = jnp.maximum(jnp.dot(h0, w1f_ref[...], preferred_element_type=f32) + b1f_ref[...], 0.0)
    out = jnp.dot(h1, w2f_ref[...], preferred_element_type=f32) + b2f_ref[...]
    o_ref[0] = out.astype(o_ref.dtype)                    # (1, NUM_CLASSES)


# ----------------------------------------------------------------------------
# Host-side glue: constant matrices, weight reshapes/permutation, pallas_call
# ----------------------------------------------------------------------------
def _pool_embed_matrix(h, w, pad):
    """0/1 matrix: row-major (y,x) grid of a shift-maxed map -> 2x-downsampled,
    optionally zero-padded, row-major grid (exact selection, applied on the MXU)."""
    ho, wo = h // 2, w // 2
    wop = wo + 2 * pad
    s = np.zeros(((ho + 2 * pad) * wop, h * w), np.float32)
    for oy in range(ho):
        for ox in range(wo):
            s[(oy + pad) * wop + (ox + pad), (2 * oy) * w + 2 * ox] = 1.0
    return jnp.asarray(s)


def prepare_kernel_params(params):
    """One-time, host-side parameter re-layout for the fused kernel."""
    w1, b1 = params["conv1"]                 # (3,3,Cin,C1) HWIO
    w2, b2 = params["conv2"]
    (w0, b0), (wf1, bf1), (wf2, bf2) = params["fc"]   # w0 rows in torch CHW-flatten order

    # Fold torch.flatten's (C,H,W) ordering into fc0's rows -> kernel flattens HWC.
    idx = np.arange(FLAT)
    hh = idx // (W3 * CFG_C2)
    ww = (idx // CFG_C2) % W3
    cc = idx % CFG_C2
    perm = cc * (H3 * W3) + hh * W3 + ww     # hwc-index -> chw-index
    w0_hwc = w0[jnp.asarray(perm), :]

    return dict(
        w1=w1.reshape(9 * IN_CH, CFG_C1), b1=b1.reshape(1, CFG_C1),
        w2=w2.reshape(9 * CFG_C1, CFG_C2), b2=b2.reshape(1, CFG_C2),
        w0=w0_hwc, b0=b0.reshape(1, HIDDEN),
        wf1=wf1, bf1=bf1.reshape(1, HIDDEN),
        wf2=wf2, bf2=bf2.reshape(1, NUM_CLASSES),
        s1=_pool_embed_matrix(H1, W1, pad=1),   # (100, 256)
        s2=_pool_embed_matrix(H2, W2, pad=0),   # (16, 64)
    )


def _full_spec(shape):
    nd = len(shape)
    return pl.BlockSpec(shape, lambda n, _nd=nd: (0,) * _nd)


@jax.jit
def vgg_forward_pallas(kp, x_nchw):
    n = x_nchw.shape[0]
    x = jnp.transpose(x_nchw, (0, 2, 3, 1))                       # NHWC
    xpad = jnp.pad(x, ((0, 0), (1, 1), (1, 1), (0, 0)))           # (N, 18, 18, 3)

    args = (xpad, kp["s1"], kp["s2"], kp["w1"], kp["b1"], kp["w2"], kp["b2"],
            kp["w0"], kp["b0"], kp["wf1"], kp["bf1"], kp["wf2"], kp["bf2"])

    in_specs = [pl.BlockSpec((1, IMG_H + 2, IMG_W + 2, IN_CH),
                             lambda i: (i, 0, 0, 0))]
    in_specs += [_full_spec(a.shape) for a in args[1:]]

    out = pl.pallas_call(
        vgg_fused_kernel,
        out_shape=jax.ShapeDtypeStruct((n, 1, NUM_CLASSES), x_nchw.dtype),
        grid_spec=pltpu.PrefetchScalarGridSpec(
            num_scalar_prefetch=0,
            grid=(n,),                                   # one image per step / per core
            in_specs=in_specs,
            out_specs=pl.BlockSpec((1, 1, NUM_CLASSES), lambda i: (i, 0, 0)),
        ),
        compiler_params=pltpu.CompilerParams(
            dimension_semantics=("parallel",)),
    )(*args)
    return out.reshape(n, NUM_CLASSES)


# ----------------------------------------------------------------------------
# Parameter init (xavier_uniform, zero bias — like the torch module)
# ----------------------------------------------------------------------------
def xavier_uniform(key, shape, fan_in, fan_out):
    bound = float(np.sqrt(6.0 / (fan_in + fan_out)))
    return jax.random.uniform(key, shape, jnp.float32, minval=-bound, maxval=bound)


def init_vgg_params(key):
    k1, k2, k3, k4, k5 = jax.random.split(key, 5)
    conv1_w = xavier_uniform(k1, (3, 3, IN_CH, CFG_C1), IN_CH * 9, CFG_C1 * 9)
    conv2_w = xavier_uniform(k2, (3, 3, CFG_C1, CFG_C2), CFG_C1 * 9, CFG_C2 * 9)
    fc0_w = xavier_uniform(k3, (FLAT, HIDDEN), FLAT, HIDDEN)      # rows in CHW order
    fc1_w = xavier_uniform(k4, (HIDDEN, HIDDEN), HIDDEN, HIDDEN)
    fc2_w = xavier_uniform(k5, (HIDDEN, NUM_CLASSES), HIDDEN, NUM_CLASSES)
    z = lambda c: jnp.zeros((c,), jnp.float32)
    return {
        "conv1": (conv1_w, z(CFG_C1)),
        "conv2": (conv2_w, z(CFG_C2)),
        "fc": [(fc0_w, z(HIDDEN)), (fc1_w, z(HIDDEN)), (fc2_w, z(NUM_CLASSES))],
    }


# ----------------------------------------------------------------------------
# Pure-JAX reference (torch conventions: NCHW flatten order) for sanity check
# ----------------------------------------------------------------------------
def vgg_reference(params, x_nchw):
    x = jnp.transpose(x_nchw, (0, 2, 3, 1))
    for (w, b) in (params["conv1"], params["conv2"]):
        x = jax.lax.conv_general_dilated(
            x, w, window_strides=(1, 1), padding="SAME",
            dimension_numbers=("NHWC", "HWIO", "NHWC"))
        x = jnp.maximum(x + b, 0.0)
        n_, hh, ww, cc = x.shape
        x = jnp.max(x.reshape(n_, hh // 2, 2, ww // 2, 2, cc), axis=(2, 4))
    # torch.flatten(x, start_dim=1) on an NCHW tensor -> (C, H, W) order
    x = jnp.transpose(x, (0, 3, 1, 2)).reshape(x.shape[0], -1)
    (w0, b0), (w1, b1), (w2, b2) = params["fc"]
    x = jnp.maximum(x @ w0 + b0, 0.0)
    x = jnp.maximum(x @ w1 + b1, 0.0)
    return x @ w2 + b2


# ----------------------------------------------------------------------------
if __name__ == "__main__":
    key = jax.random.PRNGKey(0)
    key, kx = jax.random.split(key)
    x = jax.random.normal(kx, (2, IN_CH, IMG_H, IMG_W), dtype=jnp.float32)

    params = init_vgg_params(key)
    kparams = prepare_kernel_params(params)

    out = jax.block_until_ready(vgg_forward_pallas(kparams, x))
    ref = jax.block_until_ready(vgg_reference(params, x))

    assert out.shape == (2, NUM_CLASSES), out.shape
    assert jnp.allclose(out, ref, rtol=1e-4, atol=1e-4), (
        float(jnp.max(jnp.abs(out - ref))))
    print("KERNEL_OK")
</pallas_src>

<mosaic_0001>
module attributes {stable_mosaic.version = 11 : i64} {
  func.func @vgg_fused_kernel(%arg0: i32, %arg1: memref<1x18x18x3xf32, #tpu.memory_space<vmem>>, %arg2: memref<100x256xf32, #tpu.memory_space<vmem>>, %arg3: memref<16x64xf32, #tpu.memory_space<vmem>>, %arg4: memref<27x8xf32, #tpu.memory_space<vmem>>, %arg5: memref<1x8xf32, #tpu.memory_space<vmem>>, %arg6: memref<72x16xf32, #tpu.memory_space<vmem>>, %arg7: memref<1x16xf32, #tpu.memory_space<vmem>>, %arg8: memref<256x64xf32, #tpu.memory_space<vmem>>, %arg9: memref<1x64xf32, #tpu.memory_space<vmem>>, %arg10: memref<64x64xf32, #tpu.memory_space<vmem>>, %arg11: memref<1x64xf32, #tpu.memory_space<vmem>>, %arg12: memref<64x10xf32, #tpu.memory_space<vmem>>, %arg13: memref<1x10xf32, #tpu.memory_space<vmem>>, %arg14: memref<1x1x10xf32, #tpu.memory_space<vmem>>) attributes {dimension_semantics = [#tpu.dimension_semantics<parallel>], iteration_bounds = array<i64: 2>, scalar_prefetch = 0 : i64, scratch_operands = 0 : i64, tpu.core_type = #tpu.core_type<tc>, window_params = [{transform_indices = @transform_0, window_bounds = array<i64: 1, 18, 18, 3>}, {pipeline_mode = #tpu.pipeline_mode<synchronous>, transform_indices = @transform_1, window_bounds = array<i64: 100, 256>}, {pipeline_mode = #tpu.pipeline_mode<synchronous>, transform_indices = @transform_2, window_bounds = array<i64: 16, 64>}, {pipeline_mode = #tpu.pipeline_mode<synchronous>, transform_indices = @transform_3, window_bounds = array<i64: 27, 8>}, {pipeline_mode = #tpu.pipeline_mode<synchronous>, transform_indices = @transform_4, window_bounds = array<i64: 1, 8>}, {pipeline_mode = #tpu.pipeline_mode<synchronous>, transform_indices = @transform_5, window_bounds = array<i64: 72, 16>}, {pipeline_mode = #tpu.pipeline_mode<synchronous>, transform_indices = @transform_6, window_bounds = array<i64: 1, 16>}, {pipeline_mode = #tpu.pipeline_mode<synchronous>, transform_indices = @transform_7, window_bounds = array<i64: 256, 64>}, {pipeline_mode = #tpu.pipeline_mode<synchronous>, transform_indices = @transform_8, window_bounds = array<i64: 1, 64>}, {pipeline_mode = #tpu.pipeline_mode<synchronous>, transform_indices = @transform_9, window_bounds = array<i64: 64, 64>}, {pipeline_mode = #tpu.pipeline_mode<synchronous>, transform_indices = @transform_10, window_bounds = array<i64: 1, 64>}, {pipeline_mode = #tpu.pipeline_mode<synchronous>, transform_indices = @transform_11, window_bounds = array<i64: 64, 10>}, {pipeline_mode = #tpu.pipeline_mode<synchronous>, transform_indices = @transform_12, window_bounds = array<i64: 1, 10>}, {transform_indices = @transform_13, window_bounds = array<i64: 1, 1, 10>}]} {
    %c0 = arith.constant 0 : index
    %c0_0 = arith.constant 0 : index
    %c0_1 = arith.constant 0 : index
    %c0_2 = arith.constant 0 : index
    %0 = vector.load %arg1[%c0, %c0_0, %c0_1, %c0_2] : memref<1x18x18x3xf32, #tpu.memory_space<vmem>>, vector<1x1x16x3xf32>
    %1 = vector.shape_cast %0 : vector<1x1x16x3xf32> to vector<16x3xf32>
    %c0_3 = arith.constant 0 : index
    %c0_4 = arith.constant 0 : index
    %c1 = arith.constant 1 : index
    %c0_5 = arith.constant 0 : index
    %2 = vector.load %arg1[%c0_3, %c0_4, %c1, %c0_5] : memref<1x18x18x3xf32, #tpu.memory_space<vmem>>, vector<1x1x16x3xf32>
    %3 = vector.shape_cast %2 : vector<1x1x16x3xf32> to vector<16x3xf32>
    %c0_6 = arith.constant 0 : index
    %c0_7 = arith.constant 0 : index
    %c2 = arith.constant 2 : index
    %c0_8 = arith.constant 0 : index
    %4 = vector.load %arg1[%c0_6, %c0_7, %c2, %c0_8] : memref<1x18x18x3xf32, #tpu.memory_space<vmem>>, vector<1x1x16x3xf32>
    %5 = vector.shape_cast %4 : vector<1x1x16x3xf32> to vector<16x3xf32>
    %c0_9 = arith.constant 0 : index
    %c1_10 = arith.constant 1 : index
    %c0_11 = arith.constant 0 : index
    %c0_12 = arith.constant 0 : index
    %6 = vector.load %arg1[%c0_9, %c1_10, %c0_11, %c0_12] : memref<1x18x18x3xf32, #tpu.memory_space<vmem>>, vector<1x1x16x3xf32>
    %7 = vector.shape_cast %6 : vector<1x1x16x3xf32> to vector<16x3xf32>
    %c0_13 = arith.constant 0 : index
    %c1_14 = arith.constant 1 : index
    %c1_15 = arith.constant 1 : index
    %c0_16 = arith.constant 0 : index
    %8 = vector.load %arg1[%c0_13, %c1_14, %c1_15, %c0_16] : memref<1x18x18x3xf32, #tpu.memory_space<vmem>>, vector<1x1x16x3xf32>
    %9 = vector.shape_cast %8 : vector<1x1x16x3xf32> to vector<16x3xf32>
    %c0_17 = arith.constant 0 : index
    %c1_18 = arith.constant 1 : index
    %c2_19 = arith.constant 2 : index
    %c0_20 = arith.constant 0 : index
    %10 = vector.load %arg1[%c0_17, %c1_18, %c2_19, %c0_20] : memref<1x18x18x3xf32, #tpu.memory_space<vmem>>, vector<1x1x16x3xf32>
    %11 = vector.shape_cast %10 : vector<1x1x16x3xf32> to vector<16x3xf32>
    %c0_21 = arith.constant 0 : index
    %c2_22 = arith.constant 2 : index
    %c0_23 = arith.constant 0 : index
    %c0_24 = arith.constant 0 : index
    %12 = vector.load %arg1[%c0_21, %c2_22, %c0_23, %c0_24] : memref<1x18x18x3xf32, #tpu.memory_space<vmem>>, vector<1x1x16x3xf32>
    %13 = vector.shape_cast %12 : vector<1x1x16x3xf32> to vector<16x3xf32>
    %c0_25 = arith.constant 0 : index
    %c2_26 = arith.constant 2 : index
    %c1_27 = arith.constant 1 : index
    %c0_28 = arith.constant 0 : index
    %14 = vector.load %arg1[%c0_25, %c2_26, %c1_27, %c0_28] : memref<1x18x18x3xf32, #tpu.memory_space<vmem>>, vector<1x1x16x3xf32>
    %15 = vector.shape_cast %14 : vector<1x1x16x3xf32> to vector<16x3xf32>
    %c0_29 = arith.constant 0 : index
    %c2_30 = arith.constant 2 : index
    %c2_31 = arith.constant 2 : index
    %c0_32 = arith.constant 0 : index
    %16 = vector.load %arg1[%c0_29, %c2_30, %c2_31, %c0_32] : memref<1x18x18x3xf32, #tpu.memory_space<vmem>>, vector<1x1x16x3xf32>
    %17 = vector.shape_cast %16 : vector<1x1x16x3xf32> to vector<16x3xf32>
    %18 = tpu.concatenate %1, %3, %5, %7, %9, %11, %13, %15, %17 in 1 : vector<16x3xf32>, vector<16x3xf32>, vector<16x3xf32>, vector<16x3xf32>, vector<16x3xf32>, vector<16x3xf32>, vector<16x3xf32>, vector<16x3xf32>, vector<16x3xf32> -> vector<16x27xf32>
    %c0_33 = arith.constant 0 : index
    %c1_34 = arith.constant 1 : index
    %c0_35 = arith.constant 0 : index
    %c0_36 = arith.constant 0 : index
    %19 = vector.load %arg1[%c0_33, %c1_34, %c0_35, %c0_36] : memref<1x18x18x3xf32, #tpu.memory_space<vmem>>, vector<1x1x16x3xf32>
    %20 = vector.shape_cast %19 : vector<1x1x16x3xf32> to vector<16x3xf32>
    %c0_37 = arith.constant 0 : index
    %c1_38 = arith.constant 1 : index
    %c1_39 = arith.constant 1 : index
    %c0_40 = arith.constant 0 : index
    %21 = vector.load %arg1[%c0_37, %c1_38, %c1_39, %c0_40] : memref<1x18x18x3xf32, #tpu.memory_space<vmem>>, vector<1x1x16x3xf32>
    %22 = vector.shape_cast %21 : vector<1x1x16x3xf32> to vector<16x3xf32>
    %c0_41 = arith.constant 0 : index
    %c1_42 = arith.constant 1 : index
    %c2_43 = arith.constant 2 : index
    %c0_44 = arith.constant 0 : index
    %23 = vector.load %arg1[%c0_41, %c1_42, %c2_43, %c0_44] : memref<1x18x18x3xf32, #tpu.memory_space<vmem>>, vector<1x1x16x3xf32>
    %24 = vector.shape_cast %23 : vector<1x1x16x3xf32> to vector<16x3xf32>
    %c0_45 = arith.constant 0 : index
    %c2_46 = arith.constant 2 : index
    %c0_47 = arith.constant 0 : index
    %c0_48 = arith.constant 0 : index
    %25 = vector.load %arg1[%c0_45, %c2_46, %c0_47, %c0_48] : memref<1x18x18x3xf32, #tpu.memory_space<vmem>>, vector<1x1x16x3xf32>
    %26 = vector.shape_cast %25 : vector<1x1x16x3xf32> to vector<16x3xf32>
    %c0_49 = arith.constant 0 : index
    %c2_50 = arith.constant 2 : index
    %c1_51 = arith.constant 1 : index
    %c0_52 = arith.constant 0 : index
    %27 = vector.load %arg1[%c0_49, %c2_50, %c1_51, %c0_52] : memref<1x18x18x3xf32, #tpu.memory_space<vmem>>, vector<1x1x16x3xf32>
    %28 = vector.shape_cast %27 : vector<1x1x16x3xf32> to vector<16x3xf32>
    %c0_53 = arith.constant 0 : index
    %c2_54 = arith.constant 2 : index
    %c2_55 = arith.constant 2 : index
    %c0_56 = arith.constant 0 : index
    %29 = vector.load %arg1[%c0_53, %c2_54, %c2_55, %c0_56] : memref<1x18x18x3xf32, #tpu.memory_space<vmem>>, vector<1x1x16x3xf32>
    %30 = vector.shape_cast %29 : vector<1x1x16x3xf32> to vector<16x3xf32>
    %c0_57 = arith.constant 0 : index
    %c3 = arith.constant 3 : index
    %c0_58 = arith.constant 0 : index
    %c0_59 = arith.constant 0 : index
    %31 = vector.load %arg1[%c0_57, %c3, %c0_58, %c0_59] : memref<1x18x18x3xf32, #tpu.memory_space<vmem>>, vector<1x1x16x3xf32>
    %32 = vector.shape_cast %31 : vector<1x1x16x3xf32> to vector<16x3xf32>
    %c0_60 = arith.constant 0 : index
    %c3_61 = arith.constant 3 : index
    %c1_62 = arith.constant 1 : index
    %c0_63 = arith.constant 0 : index
    %33 = vector.load %arg1[%c0_60, %c3_61, %c1_62, %c0_63] : memref<1x18x18x3xf32, #tpu.memory_space<vmem>>, vector<1x1x16x3xf32>
    %34 = vector.shape_cast %33 : vector<1x1x16x3xf32> to vector<16x3xf32>
    %c0_64 = arith.constant 0 : index
    %c3_65 = arith.constant 3 : index
    %c2_66 = arith.constant 2 : index
    %c0_67 = arith.constant 0 : index
    %35 = vector.load %arg1[%c0_64, %c3_65, %c2_66, %c0_67] : memref<1x18x18x3xf32, #tpu.memory_space<vmem>>, vector<1x1x16x3xf32>
    %36 = vector.shape_cast %35 : vector<1x1x16x3xf32> to vector<16x3xf32>
    %37 = tpu.concatenate %20, %22, %24, %26, %28, %30, %32, %34, %36 in 1 : vector<16x3xf32>, vector<16x3xf32>, vector<16x3xf32>, vector<16x3xf32>, vector<16x3xf32>, vector<16x3xf32>, vector<16x3xf32>, vector<16x3xf32>, vector<16x3xf32> -> vector<16x27xf32>
    %c0_68 = arith.constant 0 : index
    %c2_69 = arith.constant 2 : index
    %c0_70 = arith.constant 0 : index
    %c0_71 = arith.constant 0 : index
    %38 = vector.load %arg1[%c0_68, %c2_69, %c0_70, %c0_71] : memref<1x18x18x3xf32, #tpu.memory_space<vmem>>, vector<1x1x16x3xf32>
    %39 = vector.shape_cast %38 : vector<1x1x16x3xf32> to vector<16x3xf32>
    %c0_72 = arith.constant 0 : index
    %c2_73 = arith.constant 2 : index
    %c1_74 = arith.constant 1 : index
    %c0_75 = arith.constant 0 : index
    %40 = vector.load %arg1[%c0_72, %c2_73, %c1_74, %c0_75] : memref<1x18x18x3xf32, #tpu.memory_space<vmem>>, vector<1x1x16x3xf32>
    %41 = vector.shape_cast %40 : vector<1x1x16x3xf32> to vector<16x3xf32>
    %c0_76 = arith.constant 0 : index
    %c2_77 = arith.constant 2 : index
    %c2_78 = arith.constant 2 : index
    %c0_79 = arith.constant 0 : index
    %42 = vector.load %arg1[%c0_76, %c2_77, %c2_78, %c0_79] : memref<1x18x18x3xf32, #tpu.memory_space<vmem>>, vector<1x1x16x3xf32>
    %43 = vector.shape_cast %42 : vector<1x1x16x3xf32> to vector<16x3xf32>
    %c0_80 = arith.constant 0 : index
    %c3_81 = arith.constant 3 : index
    %c0_82 = arith.constant 0 : index
    %c0_83 = arith.constant 0 : index
    %44 = vector.load %arg1[%c0_80, %c3_81, %c0_82, %c0_83] : memref<1x18x18x3xf32, #tpu.memory_space<vmem>>, vector<1x1x16x3xf32>
    %45 = vector.shape_cast %44 : vector<1x1x16x3xf32> to vector<16x3xf32>
    %c0_84 = arith.constant 0 : index
    %c3_85 = arith.constant 3 : index
    %c1_86 = arith.constant 1 : index
    %c0_87 = arith.constant 0 : index
    %46 = vector.load %arg1[%c0_84, %c3_85, %c1_86, %c0_87] : memref<1x18x18x3xf32, #tpu.memory_space<vmem>>, vector<1x1x16x3xf32>
    %47 = vector.shape_cast %46 : vector<1x1x16x3xf32> to vector<16x3xf32>
    %c0_88 = arith.constant 0 : index
    %c3_89 = arith.constant 3 : index
    %c2_90 = arith.constant 2 : index
    %c0_91 = arith.constant 0 : index
    %48 = vector.load %arg1[%c0_88, %c3_89, %c2_90, %c0_91] : memref<1x18x18x3xf32, #tpu.memory_space<vmem>>, vector<1x1x16x3xf32>
    %49 = vector.shape_cast %48 : vector<1x1x16x3xf32> to vector<16x3xf32>
    %c0_92 = arith.constant 0 : index
    %c4 = arith.constant 4 : index
    %c0_93 = arith.constant 0 : index
    %c0_94 = arith.constant 0 : index
    %50 = vector.load %arg1[%c0_92, %c4, %c0_93, %c0_94] : memref<1x18x18x3xf32, #tpu.memory_space<vmem>>, vector<1x1x16x3xf32>
    %51 = vector.shape_cast %50 : vector<1x1x16x3xf32> to vector<16x3xf32>
    %c0_95 = arith.constant 0 : index
    %c4_96 = arith.constant 4 : index
    %c1_97 = arith.constant 1 : index
    %c0_98 = arith.constant 0 : index
    %52 = vector.load %arg1[%c0_95, %c4_96, %c1_97, %c0_98] : memref<1x18x18x3xf32, #tpu.memory_space<vmem>>, vector<1x1x16x3xf32>
    %53 = vector.shape_cast %52 : vector<1x1x16x3xf32> to vector<16x3xf32>
    %c0_99 = arith.constant 0 : index
    %c4_100 = arith.constant 4 : index
    %c2_101 = arith.constant 2 : index
    %c0_102 = arith.constant 0 : index
    %54 = vector.load %arg1[%c0_99, %c4_100, %c2_101, %c0_102] : memref<1x18x18x3xf32, #tpu.memory_space<vmem>>, vector<1x1x16x3xf32>
    %55 = vector.shape_cast %54 : vector<1x1x16x3xf32> to vector<16x3xf32>
    %56 = tpu.concatenate %39, %41, %43, %45, %47, %49, %51, %53, %55 in 1 : vector<16x3xf32>, vector<16x3xf32>, vector<16x3xf32>, vector<16x3xf32>, vector<16x3xf32>, vector<16x3xf32>, vector<16x3xf32>, vector<16x3xf32>, vector<16x3xf32> -> vector<16x27xf32>
    %c0_103 = arith.constant 0 : index
    %c3_104 = arith.constant 3 : index
    %c0_105 = arith.constant 0 : index
    %c0_106 = arith.constant 0 : index
    %57 = vector.load %arg1[%c0_103, %c3_104, %c0_105, %c0_106] : memref<1x18x18x3xf32, #tpu.memory_space<vmem>>, vector<1x1x16x3xf32>
    %58 = vector.shape_cast %57 : vector<1x1x16x3xf32> to vector<16x3xf32>
    %c0_107 = arith.constant 0 : index
    %c3_108 = arith.constant 3 : index
    %c1_109 = arith.constant 1 : index
    %c0_110 = arith.constant 0 : index
    %59 = vector.load %arg1[%c0_107, %c3_108, %c1_109, %c0_110] : memref<1x18x18x3xf32, #tpu.memory_space<vmem>>, vector<1x1x16x3xf32>
    %60 = vector.shape_cast %59 : vector<1x1x16x3xf32> to vector<16x3xf32>
    %c0_111 = arith.constant 0 : index
    %c3_112 = arith.constant 3 : index
    %c2_113 = arith.constant 2 : index
    %c0_114 = arith.constant 0 : index
    %61 = vector.load %arg1[%c0_111, %c3_112, %c2_113, %c0_114] : memref<1x18x18x3xf32, #tpu.memory_space<vmem>>, vector<1x1x16x3xf32>
    %62 = vector.shape_cast %61 : vector<1x1x16x3xf32> to vector<16x3xf32>
    %c0_115 = arith.constant 0 : index
    %c4_116 = arith.constant 4 : index
    %c0_117 = arith.constant 0 : index
    %c0_118 = arith.constant 0 : index
    %63 = vector.load %arg1[%c0_115, %c4_116, %c0_117, %c0_118] : memref<1x18x18x3xf32, #tpu.memory_space<vmem>>, vector<1x1x16x3xf32>
    %64 = vector.shape_cast %63 : vector<1x1x16x3xf32> to vector<16x3xf32>
    %c0_119 = arith.constant 0 : index
    %c4_120 = arith.constant 4 : index
    %c1_121 = arith.constant 1 : index
    %c0_122 = arith.constant 0 : index
    %65 = vector.load %arg1[%c0_119, %c4_120, %c1_121, %c0_122] : memref<1x18x18x3xf32, #tpu.memory_space<vmem>>, vector<1x1x16x3xf32>
    %66 = vector.shape_cast %65 : vector<1x1x16x3xf32> to vector<16x3xf32>
    %c0_123 = arith.constant 0 : index
    %c4_124 = arith.constant 4 : index
    %c2_125 = arith.constant 2 : index
    %c0_126 = arith.constant 0 : index
    %67 = vector.load %arg1[%c0_123, %c4_124, %c2_125, %c0_126] : memref<1x18x18x3xf32, #tpu.memory_space<vmem>>, vector<1x1x16x3xf32>
    %68 = vector.shape_cast %67 : vector<1x1x16x3xf32> to vector<16x3xf32>
    %c0_127 = arith.constant 0 : index
    %c5 = arith.constant 5 : index
    %c0_128 = arith.constant 0 : index
    %c0_129 = arith.constant 0 : index
    %69 = vector.load %arg1[%c0_127, %c5, %c0_128, %c0_129] : memref<1x18x18x3xf32, #tpu.memory_space<vmem>>, vector<1x1x16x3xf32>
    %70 = vector.shape_cast %69 : vector<1x1x16x3xf32> to vector<16x3xf32>
    %c0_130 = arith.constant 0 : index
    %c5_131 = arith.constant 5 : index
    %c1_132 = arith.constant 1 : index
    %c0_133 = arith.constant 0 : index
    %71 = vector.load %arg1[%c0_130, %c5_131, %c1_132, %c0_133] : memref<1x18x18x3xf32, #tpu.memory_space<vmem>>, vector<1x1x16x3xf32>
    %72 = vector.shape_cast %71 : vector<1x1x16x3xf32> to vector<16x3xf32>
    %c0_134 = arith.constant 0 : index
    %c5_135 = arith.constant 5 : index
    %c2_136 = arith.constant 2 : index
    %c0_137 = arith.constant 0 : index
    %73 = vector.load %arg1[%c0_134, %c5_135, %c2_136, %c0_137] : memref<1x18x18x3xf32, #tpu.memory_space<vmem>>, vector<1x1x16x3xf32>
    %74 = vector.shape_cast %73 : vector<1x1x16x3xf32> to vector<16x3xf32>
    %75 = tpu.concatenate %58, %60, %62, %64, %66, %68, %70, %72, %74 in 1 : vector<16x3xf32>, vector<16x3xf32>, vector<16x3xf32>, vector<16x3xf32>, vector<16x3xf32>, vector<16x3xf32>, vector<16x3xf32>, vector<16x3xf32>, vector<16x3xf32> -> vector<16x27xf32>
    %c0_138 = arith.constant 0 : index
    %c4_139 = arith.constant 4 : index
    %c0_140 = arith.constant 0 : index
    %c0_141 = arith.constant 0 : index
    %76 = vector.load %arg1[%c0_138, %c4_139, %c0_140, %c0_141] : memref<1x18x18x3xf32, #tpu.memory_space<vmem>>, vector<1x1x16x3xf32>
    %77 = vector.shape_cast %76 : vector<1x1x16x3xf32> to vector<16x3xf32>
    %c0_142 = arith.constant 0 : index
    %c4_143 = arith.constant 4 : index
    %c1_144 = arith.constant 1 : index
    %c0_145 = arith.constant 0 : index
    %78 = vector.load %arg1[%c0_142, %c4_143, %c1_144, %c0_145] : memref<1x18x18x3xf32, #tpu.memory_space<vmem>>, vector<1x1x16x3xf32>
    %79 = vector.shape_cast %78 : vector<1x1x16x3xf32> to vector<16x3xf32>
    %c0_146 = arith.constant 0 : index
    %c4_147 = arith.constant 4 : index
    %c2_148 = arith.constant 2 : index
    %c0_149 = arith.constant 0 : index
    %80 = vector.load %arg1[%c0_146, %c4_147, %c2_148, %c0_149] : memref<1x18x18x3xf32, #tpu.memory_space<vmem>>, vector<1x1x16x3xf32>
    %81 = vector.shape_cast %80 : vector<1x1x16x3xf32> to vector<16x3xf32>
    %c0_150 = arith.constant 0 : index
    %c5_151 = arith.constant 5 : index
    %c0_152 = arith.constant 0 : index
    %c0_153 = arith.constant 0 : index
    %82 = vector.load %arg1[%c0_150, %c5_151, %c0_152, %c0_153] : memref<1x18x18x3xf32, #tpu.memory_space<vmem>>, vector<1x1x16x3xf32>
    %83 = vector.shape_cast %82 : vector<1x1x16x3xf32> to vector<16x3xf32>
    %c0_154 = arith.constant 0 : index
    %c5_155 = arith.constant 5 : index
    %c1_156 = arith.constant 1 : index
    %c0_157 = arith.constant 0 : index
    %84 = vector.load %arg1[%c0_154, %c5_155, %c1_156, %c0_157] : memref<1x18x18x3xf32, #tpu.memory_space<vmem>>, vector<1x1x16x3xf32>
    %85 = vector.shape_cast %84 : vector<1x1x16x3xf32> to vector<16x3xf32>
    %c0_158 = arith.constant 0 : index
    %c5_159 = arith.constant 5 : index
    %c2_160 = arith.constant 2 : index
    %c0_161 = arith.constant 0 : index
    %86 = vector.load %arg1[%c0_158, %c5_159, %c2_160, %c0_161] : memref<1x18x18x3xf32, #tpu.memory_space<vmem>>, vector<1x1x16x3xf32>
    %87 = vector.shape_cast %86 : vector<1x1x16x3xf32> to vector<16x3xf32>
    %c0_162 = arith.constant 0 : index
    %c6 = arith.constant 6 : index
    %c0_163 = arith.constant 0 : index
    %c0_164 = arith.constant 0 : index
    %88 = vector.load %arg1[%c0_162, %c6, %c0_163, %c0_164] : memref<1x18x18x3xf32, #tpu.memory_space<vmem>>, vector<1x1x16x3xf32>
    %89 = vector.shape_cast %88 : vector<1x1x16x3xf32> to vector<16x3xf32>
    %c0_165 = arith.constant 0 : index
    %c6_166 = arith.constant 6 : index
    %c1_167 = arith.constant 1 : index
    %c0_168 = arith.constant 0 : index
    %90 = vector.load %arg1[%c0_165, %c6_166, %c1_167, %c0_168] : memref<1x18x18x3xf32, #tpu.memory_space<vmem>>, vector<1x1x16x3xf32>
    %91 = vector.shape_cast %90 : vector<1x1x16x3xf32> to vector<16x3xf32>
    %c0_169 = arith.constant 0 : index
    %c6_170 = arith.constant 6 : index
    %c2_171 = arith.constant 2 : index
    %c0_172 = arith.constant 0 : index
    %92 = vector.load %arg1[%c0_169, %c6_170, %c2_171, %c0_172] : memref<1x18x18x3xf32, #tpu.memory_space<vmem>>, vector<1x1x16x3xf32>
    %93 = vector.shape_cast %92 : vector<1x1x16x3xf32> to vector<16x3xf32>
    %94 = tpu.concatenate %77, %79, %81, %83, %85, %87, %89, %91, %93 in 1 : vector<16x3xf32>, vector<16x3xf32>, vector<16x3xf32>, vector<16x3xf32>, vector<16x3xf32>, vector<16x3xf32>, vector<16x3xf32>, vector<16x3xf32>, vector<16x3xf32> -> vector<16x27xf32>
    %c0_173 = arith.constant 0 : index
    %c5_174 = arith.constant 5 : index
    %c0_175 = arith.constant 0 : index
    %c0_176 = arith.constant 0 : index
    %95 = vector.load %arg1[%c0_173, %c5_174, %c0_175, %c0_176] : memref<1x18x18x3xf32, #tpu.memory_space<vmem>>, vector<1x1x16x3xf32>
    %96 = vector.shape_cast %95 : vector<1x1x16x3xf32> to vector<16x3xf32>
    %c0_177 = arith.constant 0 : index
    %c5_178 = arith.constant 5 : index
    %c1_179 = arith.constant 1 : index
    %c0_180 = arith.constant 0 : index
    %97 = vector.load %arg1[%c0_177, %c5_178, %c1_179, %c0_180] : memref<1x18x18x3xf32, #tpu.memory_space<vmem>>, vector<1x1x16x3xf32>
    %98 = vector.shape_cast %97 : vector<1x1x16x3xf32> to vector<16x3xf32>
    %c0_181 = arith.constant 0 : index
    %c5_182 = arith.constant 5 : index
    %c2_183 = arith.constant 2 : index
    %c0_184 = arith.constant 0 : index
    %99 = vector.load %arg1[%c0_181, %c5_182, %c2_183, %c0_184] : memref<1x18x18x3xf32, #tpu.memory_space<vmem>>, vector<1x1x16x3xf32>
    %100 = vector.shape_cast %99 : vector<1x1x16x3xf32> to vector<16x3xf32>
    %c0_185 = arith.constant 0 : index
    %c6_186 = arith.constant 6 : index
    %c0_187 = arith.constant 0 : index
    %c0_188 = arith.constant 0 : index
    %101 = vector.load %arg1[%c0_185, %c6_186, %c0_187, %c0_188] : memref<1x18x18x3xf32, #tpu.memory_space<vmem>>, vector<1x1x16x3xf32>
    %102 = vector.shape_cast %101 : vector<1x1x16x3xf32> to vector<16x3xf32>
    %c0_189 = arith.constant 0 : index
    %c6_190 = arith.constant 6 : index
    %c1_191 = arith.constant 1 : index
    %c0_192 = arith.constant 0 : index
    %103 = vector.load %arg1[%c0_189, %c6_190, %c1_191, %c0_192] : memref<1x18x18x3xf32, #tpu.memory_space<vmem>>, vector<1x1x16x3xf32>
    %104 = vector.shape_cast %103 : vector<1x1x16x3xf32> to vector<16x3xf32>
    %c0_193 = arith.constant 0 : index
    %c6_194 = arith.constant 6 : index
    %c2_195 = arith.constant 2 : index
    %c0_196 = arith.constant 0 : index
    %105 = vector.load %arg1[%c0_193, %c6_194, %c2_195, %c0_196] : memref<1x18x18x3xf32, #tpu.memory_space<vmem>>, vector<1x1x16x3xf32>
    %106 = vector.shape_cast %105 : vector<1x1x16x3xf32> to vector<16x3xf32>
    %c0_197 = arith.constant 0 : index
    %c7 = arith.constant 7 : index
    %c0_198 = arith.constant 0 : index
    %c0_199 = arith.constant 0 : index
    %107 = vector.load %arg1[%c0_197, %c7, %c0_198, %c0_199] : memref<1x18x18x3xf32, #tpu.memory_space<vmem>>, vector<1x1x16x3xf32>
    %108 = vector.shape_cast %107 : vector<1x1x16x3xf32> to vector<16x3xf32>
    %c0_200 = arith.constant 0 : index
    %c7_201 = arith.constant 7 : index
    %c1_202 = arith.constant 1 : index
    %c0_203 = arith.constant 0 : index
    %109 = vector.load %arg1[%c0_200, %c7_201, %c1_202, %c0_203] : memref<1x18x18x3xf32, #tpu.memory_space<vmem>>, vector<1x1x16x3xf32>
    %110 = vector.shape_cast %109 : vector<1x1x16x3xf32> to vector<16x3xf32>
    %c0_204 = arith.constant 0 : index
    %c7_205 = arith.constant 7 : index
    %c2_206 = arith.constant 2 : index
    %c0_207 = arith.constant 0 : index
    %111 = vector.load %arg1[%c0_204, %c7_205, %c2_206, %c0_207] : memref<1x18x18x3xf32, #tpu.memory_space<vmem>>, vector<1x1x16x3xf32>
    %112 = vector.shape_cast %111 : vector<1x1x16x3xf32> to vector<16x3xf32>
    %113 = tpu.concatenate %96, %98, %100, %102, %104, %106, %108, %110, %112 in 1 : vector<16x3xf32>, vector<16x3xf32>, vector<16x3xf32>, vector<16x3xf32>, vector<16x3xf32>, vector<16x3xf32>, vector<16x3xf32>, vector<16x3xf32>, vector<16x3xf32> -> vector<16x27xf32>
    %c0_208 = arith.constant 0 : index
    %c6_209 = arith.constant 6 : index
    %c0_210 = arith.constant 0 : index
    %c0_211 = arith.constant 0 : index
    %114 = vector.load %arg1[%c0_208, %c6_209, %c0_210, %c0_211] : memref<1x18x18x3xf32, #tpu.memory_space<vmem>>, vector<1x1x16x3xf32>
    %115 = vector.shape_cast %114 : vector<1x1x16x3xf32> to vector<16x3xf32>
    %c0_212 = arith.constant 0 : index
    %c6_213 = arith.constant 6 : index
    %c1_214 = arith.constant 1 : index
    %c0_215 = arith.constant 0 : index
    %116 = vector.load %arg1[%c0_212, %c6_213, %c1_214, %c0_215] : memref<1x18x18x3xf32, #tpu.memory_space<vmem>>, vector<1x1x16x3xf32>
    %117 = vector.shape_cast %116 : vector<1x1x16x3xf32> to vector<16x3xf32>
    %c0_216 = arith.constant 0 : index
    %c6_217 = arith.constant 6 : index
    %c2_218 = arith.constant 2 : index
    %c0_219 = arith.constant 0 : index
    %118 = vector.load %arg1[%c0_216, %c6_217, %c2_218, %c0_219] : memref<1x18x18x3xf32, #tpu.memory_space<vmem>>, vector<1x1x16x3xf32>
    %119 = vector.shape_cast %118 : vector<1x1x16x3xf32> to vector<16x3xf32>
    %c0_220 = arith.constant 0 : index
    %c7_221 = arith.constant 7 : index
    %c0_222 = arith.constant 0 : index
    %c0_223 = arith.constant 0 : index
    %120 = vector.load %arg1[%c0_220, %c7_221, %c0_222, %c0_223] : memref<1x18x18x3xf32, #tpu.memory_space<vmem>>, vector<1x1x16x3xf32>
    %121 = vector.shape_cast %120 : vector<1x1x16x3xf32> to vector<16x3xf32>
    %c0_224 = arith.constant 0 : index
    %c7_225 = arith.constant 7 : index
    %c1_226 = arith.constant 1 : index
    %c0_227 = arith.constant 0 : index
    %122 = vector.load %arg1[%c0_224, %c7_225, %c1_226, %c0_227] : memref<1x18x18x3xf32, #tpu.memory_space<vmem>>, vector<1x1x16x3xf32>
    %123 = vector.shape_cast %122 : vector<1x1x16x3xf32> to vector<16x3xf32>
    %c0_228 = arith.constant 0 : index
    %c7_229 = arith.constant 7 : index
    %c2_230 = arith.constant 2 : index
    %c0_231 = arith.constant 0 : index
    %124 = vector.load %arg1[%c0_228, %c7_229, %c2_230, %c0_231] : memref<1x18x18x3xf32, #tpu.memory_space<vmem>>, vector<1x1x16x3xf32>
    %125 = vector.shape_cast %124 : vector<1x1x16x3xf32> to vector<16x3xf32>
    %c0_232 = arith.constant 0 : index
    %c8 = arith.constant 8 : index
    %c0_233 = arith.constant 0 : index
    %c0_234 = arith.constant 0 : index
    %126 = vector.load %arg1[%c0_232, %c8, %c0_233, %c0_234] : memref<1x18x18x3xf32, #tpu.memory_space<vmem>>, vector<1x1x16x3xf32>
    %127 = vector.shape_cast %126 : vector<1x1x16x3xf32> to vector<16x3xf32>
    %c0_235 = arith.constant 0 : index
    %c8_236 = arith.constant 8 : index
    %c1_237 = arith.constant 1 : index
    %c0_238 = arith.constant 0 : index
    %128 = vector.load %arg1[%c0_235, %c8_236, %c1_237, %c0_238] : memref<1x18x18x3xf32, #tpu.memory_space<vmem>>, vector<1x1x16x3xf32>
    %129 = vector.shape_cast %128 : vector<1x1x16x3xf32> to vector<16x3xf32>
    %c0_239 = arith.constant 0 : index
    %c8_240 = arith.constant 8 : index
    %c2_241 = arith.constant 2 : index
    %c0_242 = arith.constant 0 : index
    %130 = vector.load %arg1[%c0_239, %c8_240, %c2_241, %c0_242] : memref<1x18x18x3xf32, #tpu.memory_space<vmem>>, vector<1x1x16x3xf32>
    %131 = vector.shape_cast %130 : vector<1x1x16x3xf32> to vector<16x3xf32>
    %132 = tpu.concatenate %115, %117, %119, %121, %123, %125, %127, %129, %131 in 1 : vector<16x3xf32>, vector<16x3xf32>, vector<16x3xf32>, vector<16x3xf32>, vector<16x3xf32>, vector<16x3xf32>, vector<16x3xf32>, vector<16x3xf32>, vector<16x3xf32> -> vector<16x27xf32>
    %c0_243 = arith.constant 0 : index
    %c7_244 = arith.constant 7 : index
    %c0_245 = arith.constant 0 : index
    %c0_246 = arith.constant 0 : index
    %133 = vector.load %arg1[%c0_243, %c7_244, %c0_245, %c0_246] : memref<1x18x18x3xf32, #tpu.memory_space<vmem>>, vector<1x1x16x3xf32>
    %134 = vector.shape_cast %133 : vector<1x1x16x3xf32> to vector<16x3xf32>
    %c0_247 = arith.constant 0 : index
    %c7_248 = arith.constant 7 : index
    %c1_249 = arith.constant 1 : index
    %c0_250 = arith.constant 0 : index
    %135 = vector.load %arg1[%c0_247, %c7_248, %c1_249, %c0_250] : memref<1x18x18x3xf32, #tpu.memory_space<vmem>>, vector<1x1x16x3xf32>
    %136 = vector.shape_cast %135 : vector<1x1x16x3xf32> to vector<16x3xf32>
    %c0_251 = arith.constant 0 : index
    %c7_252 = arith.constant 7 : index
    %c2_253 = arith.constant 2 : index
    %c0_254 = arith.constant 0 : index
    %137 = vector.load %arg1[%c0_251, %c7_252, %c2_253, %c0_254] : memref<1x18x18x3xf32, #tpu.memory_space<vmem>>, vector<1x1x16x3xf32>
    %138 = vector.shape_cast %137 : vector<1x1x16x3xf32> to vector<16x3xf32>
    %c0_255 = arith.constant 0 : index
    %c8_256 = arith.constant 8 : index
    %c0_257 = arith.constant 0 : index
    %c0_258 = arith.constant 0 : index
    %139 = vector.load %arg1[%c0_255, %c8_256, %c0_257, %c0_258] : memref<1x18x18x3xf32, #tpu.memory_space<vmem>>, vector<1x1x16x3xf32>
    %140 = vector.shape_cast %139 : vector<1x1x16x3xf32> to vector<16x3xf32>
    %c0_259 = arith.constant 0 : index
    %c8_260 = arith.constant 8 : index
    %c1_261 = arith.constant 1 : index
    %c0_262 = arith.constant 0 : index
    %141 = vector.load %arg1[%c0_259, %c8_260, %c1_261, %c0_262] : memref<1x18x18x3xf32, #tpu.memory_space<vmem>>, vector<1x1x16x3xf32>
    %142 = vector.shape_cast %141 : vector<1x1x16x3xf32> to vector<16x3xf32>
    %c0_263 = arith.constant 0 : index
    %c8_264 = arith.constant 8 : index
    %c2_265 = arith.constant 2 : index
    %c0_266 = arith.constant 0 : index
    %143 = vector.load %arg1[%c0_263, %c8_264, %c2_265, %c0_266] : memref<1x18x18x3xf32, #tpu.memory_space<vmem>>, vector<1x1x16x3xf32>
    %144 = vector.shape_cast %143 : vector<1x1x16x3xf32> to vector<16x3xf32>
    %c0_267 = arith.constant 0 : index
    %c9 = arith.constant 9 : index
    %c0_268 = arith.constant 0 : index
    %c0_269 = arith.constant 0 : index
    %145 = vector.load %arg1[%c0_267, %c9, %c0_268, %c0_269] : memref<1x18x18x3xf32, #tpu.memory_space<vmem>>, vector<1x1x16x3xf32>
    %146 = vector.shape_cast %145 : vector<1x1x16x3xf32> to vector<16x3xf32>
    %c0_270 = arith.constant 0 : index
    %c9_271 = arith.constant 9 : index
    %c1_272 = arith.constant 1 : index
    %c0_273 = arith.constant 0 : index
    %147 = vector.load %arg1[%c0_270, %c9_271, %c1_272, %c0_273] : memref<1x18x18x3xf32, #tpu.memory_space<vmem>>, vector<1x1x16x3xf32>
    %148 = vector.shape_cast %147 : vector<1x1x16x3xf32> to vector<16x3xf32>
    %c0_274 = arith.constant 0 : index
    %c9_275 = arith.constant 9 : index
    %c2_276 = arith.constant 2 : index
    %c0_277 = arith.constant 0 : index
    %149 = vector.load %arg1[%c0_274, %c9_275, %c2_276, %c0_277] : memref<1x18x18x3xf32, #tpu.memory_space<vmem>>, vector<1x1x16x3xf32>
    %150 = vector.shape_cast %149 : vector<1x1x16x3xf32> to vector<16x3xf32>
    %151 = tpu.concatenate %134, %136, %138, %140, %142, %144, %146, %148, %150 in 1 : vector<16x3xf32>, vector<16x3xf32>, vector<16x3xf32>, vector<16x3xf32>, vector<16x3xf32>, vector<16x3xf32>, vector<16x3xf32>, vector<16x3xf32>, vector<16x3xf32> -> vector<16x27xf32>
    %c0_278 = arith.constant 0 : index
    %c8_279 = arith.constant 8 : index
    %c0_280 = arith.constant 0 : index
    %c0_281 = arith.constant 0 : index
    %152 = vector.load %arg1[%c0_278, %c8_279, %c0_280, %c0_281] : memref<1x18x18x3xf32, #tpu.memory_space<vmem>>, vector<1x1x16x3xf32>
    %153 = vector.shape_cast %152 : vector<1x1x16x3xf32> to vector<16x3xf32>
    %c0_282 = arith.constant 0 : index
    %c8_283 = arith.constant 8 : index
    %c1_284 = arith.constant 1 : index
    %c0_285 = arith.constant 0 : index
    %154 = vector.load %arg1[%c0_282, %c8_283, %c1_284, %c0_285] : memref<1x18x18x3xf32, #tpu.memory_space<vmem>>, vector<1x1x16x3xf32>
    %155 = vector.shape_cast %154 : vector<1x1x16x3xf32> to vector<16x3xf32>
    %c0_286 = arith.constant 0 : index
    %c8_287 = arith.constant 8 : index
    %c2_288 = arith.constant 2 : index
    %c0_289 = arith.constant 0 : index
    %156 = vector.load %arg1[%c0_286, %c8_287, %c2_288, %c0_289] : memref<1x18x18x3xf32, #tpu.memory_space<vmem>>, vector<1x1x16x3xf32>
    %157 = vector.shape_cast %156 : vector<1x1x16x3xf32> to vector<16x3xf32>
    %c0_290 = arith.constant 0 : index
    %c9_291 = arith.constant 9 : index
    %c0_292 = arith.constant 0 : index
    %c0_293 = arith.constant 0 : index
    %158 = vector.load %arg1[%c0_290, %c9_291, %c0_292, %c0_293] : memref<1x18x18x3xf32, #tpu.memory_space<vmem>>, vector<1x1x16x3xf32>
    %159 = vector.shape_cast %158 : vector<1x1x16x3xf32> to vector<16x3xf32>
    %c0_294 = arith.constant 0 : index
    %c9_295 = arith.constant 9 : index
    %c1_296 = arith.constant 1 : index
    %c0_297 = arith.constant 0 : index
    %160 = vector.load %arg1[%c0_294, %c9_295, %c1_296, %c0_297] : memref<1x18x18x3xf32, #tpu.memory_space<vmem>>, vector<1x1x16x3xf32>
    %161 = vector.shape_cast %160 : vector<1x1x16x3xf32> to vector<16x3xf32>
    %c0_298 = arith.constant 0 : index
    %c9_299 = arith.constant 9 : index
    %c2_300 = arith.constant 2 : index
    %c0_301 = arith.constant 0 : index
    %162 = vector.load %arg1[%c0_298, %c9_299, %c2_300, %c0_301] : memref<1x18x18x3xf32, #tpu.memory_space<vmem>>, vector<1x1x16x3xf32>
    %163 = vector.shape_cast %162 : vector<1x1x16x3xf32> to vector<16x3xf32>
    %c0_302 = arith.constant 0 : index
    %c10 = arith.constant 10 : index
    %c0_303 = arith.constant 0 : index
    %c0_304 = arith.constant 0 : index
    %164 = vector.load %arg1[%c0_302, %c10, %c0_303, %c0_304] : memref<1x18x18x3xf32, #tpu.memory_space<vmem>>, vector<1x1x16x3xf32>
    %165 = vector.shape_cast %164 : vector<1x1x16x3xf32> to vector<16x3xf32>
    %c0_305 = arith.constant 0 : index
    %c10_306 = arith.constant 10 : index
    %c1_307 = arith.constant 1 : index
    %c0_308 = arith.constant 0 : index
    %166 = vector.load %arg1[%c0_305, %c10_306, %c1_307, %c0_308] : memref<1x18x18x3xf32, #tpu.memory_space<vmem>>, vector<1x1x16x3xf32>
    %167 = vector.shape_cast %166 : vector<1x1x16x3xf32> to vector<16x3xf32>
    %c0_309 = arith.constant 0 : index
    %c10_310 = arith.constant 10 : index
    %c2_311 = arith.constant 2 : index
    %c0_312 = arith.constant 0 : index
    %168 = vector.load %arg1[%c0_309, %c10_310, %c2_311, %c0_312] : memref<1x18x18x3xf32, #tpu.memory_space<vmem>>, vector<1x1x16x3xf32>
    %169 = vector.shape_cast %168 : vector<1x1x16x3xf32> to vector<16x3xf32>
    %170 = tpu.concatenate %153, %155, %157, %159, %161, %163, %165, %167, %169 in 1 : vector<16x3xf32>, vector<16x3xf32>, vector<16x3xf32>, vector<16x3xf32>, vector<16x3xf32>, vector<16x3xf32>, vector<16x3xf32>, vector<16x3xf32>, vector<16x3xf32> -> vector<16x27xf32>
    %c0_313 = arith.constant 0 : index
    %c9_314 = arith.constant 9 : index
    %c0_315 = arith.constant 0 : index
    %c0_316 = arith.constant 0 : index
    %171 = vector.load %arg1[%c0_313, %c9_314, %c0_315, %c0_316] : memref<1x18x18x3xf32, #tpu.memory_space<vmem>>, vector<1x1x16x3xf32>
    %172 = vector.shape_cast %171 : vector<1x1x16x3xf32> to vector<16x3xf32>
    %c0_317 = arith.constant 0 : index
    %c9_318 = arith.constant 9 : index
    %c1_319 = arith.constant 1 : index
    %c0_320 = arith.constant 0 : index
    %173 = vector.load %arg1[%c0_317, %c9_318, %c1_319, %c0_320] : memref<1x18x18x3xf32, #tpu.memory_space<vmem>>, vector<1x1x16x3xf32>
    %174 = vector.shape_cast %173 : vector<1x1x16x3xf32> to vector<16x3xf32>
    %c0_321 = arith.constant 0 : index
    %c9_322 = arith.constant 9 : index
    %c2_323 = arith.constant 2 : index
    %c0_324 = arith.constant 0 : index
    %175 = vector.load %arg1[%c0_321, %c9_322, %c2_323, %c0_324] : memref<1x18x18x3xf32, #tpu.memory_space<vmem>>, vector<1x1x16x3xf32>
    %176 = vector.shape_cast %175 : vector<1x1x16x3xf32> to vector<16x3xf32>
    %c0_325 = arith.constant 0 : index
    %c10_326 = arith.constant 10 : index
    %c0_327 = arith.constant 0 : index
    %c0_328 = arith.constant 0 : index
    %177 = vector.load %arg1[%c0_325, %c10_326, %c0_327, %c0_328] : memref<1x18x18x3xf32, #tpu.memory_space<vmem>>, vector<1x1x16x3xf32>
    %178 = vector.shape_cast %177 : vector<1x1x16x3xf32> to vector<16x3xf32>
    %c0_329 = arith.constant 0 : index
    %c10_330 = arith.constant 10 : index
    %c1_331 = arith.constant 1 : index
    %c0_332 = arith.constant 0 : index
    %179 = vector.load %arg1[%c0_329, %c10_330, %c1_331, %c0_332] : memref<1x18x18x3xf32, #tpu.memory_space<vmem>>, vector<1x1x16x3xf32>
    %180 = vector.shape_cast %179 : vector<1x1x16x3xf32> to vector<16x3xf32>
    %c0_333 = arith.constant 0 : index
    %c10_334 = arith.constant 10 : index
    %c2_335 = arith.constant 2 : index
    %c0_336 = arith.constant 0 : index
    %181 = vector.load %arg1[%c0_333, %c10_334, %c2_335, %c0_336] : memref<1x18x18x3xf32, #tpu.memory_space<vmem>>, vector<1x1x16x3xf32>
    %182 = vector.shape_cast %181 : vector<1x1x16x3xf32> to vector<16x3xf32>
    %c0_337 = arith.constant 0 : index
    %c11 = arith.constant 11 : index
    %c0_338 = arith.constant 0 : index
    %c0_339 = arith.constant 0 : index
    %183 = vector.load %arg1[%c0_337, %c11, %c0_338, %c0_339] : memref<1x18x18x3xf32, #tpu.memory_space<vmem>>, vector<1x1x16x3xf32>
    %184 = vector.shape_cast %183 : vector<1x1x16x3xf32> to vector<16x3xf32>
    %c0_340 = arith.constant 0 : index
    %c11_341 = arith.constant 11 : index
    %c1_342 = arith.constant 1 : index
    %c0_343 = arith.constant 0 : index
    %185 = vector.load %arg1[%c0_340, %c11_341, %c1_342, %c0_343] : memref<1x18x18x3xf32, #tpu.memory_space<vmem>>, vector<1x1x16x3xf32>
    %186 = vector.shape_cast %185 : vector<1x1x16x3xf32> to vector<16x3xf32>
    %c0_344 = arith.constant 0 : index
    %c11_345 = arith.constant 11 : index
    %c2_346 = arith.constant 2 : index
    %c0_347 = arith.constant 0 : index
    %187 = vector.load %arg1[%c0_344, %c11_345, %c2_346, %c0_347] : memref<1x18x18x3xf32, #tpu.memory_space<vmem>>, vector<1x1x16x3xf32>
    %188 = vector.shape_cast %187 : vector<1x1x16x3xf32> to vector<16x3xf32>
    %189 = tpu.concatenate %172, %174, %176, %178, %180, %182, %184, %186, %188 in 1 : vector<16x3xf32>, vector<16x3xf32>, vector<16x3xf32>, vector<16x3xf32>, vector<16x3xf32>, vector<16x3xf32>, vector<16x3xf32>, vector<16x3xf32>, vector<16x3xf32> -> vector<16x27xf32>
    %c0_348 = arith.constant 0 : index
    %c10_349 = arith.constant 10 : index
    %c0_350 = arith.constant 0 : index
    %c0_351 = arith.constant 0 : index
    %190 = vector.load %arg1[%c0_348, %c10_349, %c0_350, %c0_351] : memref<1x18x18x3xf32, #tpu.memory_space<vmem>>, vector<1x1x16x3xf32>
    %191 = vector.shape_cast %190 : vector<1x1x16x3xf32> to vector<16x3xf32>
    %c0_352 = arith.constant 0 : index
    %c10_353 = arith.constant 10 : index
    %c1_354 = arith.constant 1 : index
    %c0_355 = arith.constant 0 : index
    %192 = vector.load %arg1[%c0_352, %c10_353, %c1_354, %c0_355] : memref<1x18x18x3xf32, #tpu.memory_space<vmem>>, vector<1x1x16x3xf32>
    %193 = vector.shape_cast %192 : vector<1x1x16x3xf32> to vector<16x3xf32>
    %c0_356 = arith.constant 0 : index
    %c10_357 = arith.constant 10 : index
    %c2_358 = arith.constant 2 : index
    %c0_359 = arith.constant 0 : index
    %194 = vector.load %arg1[%c0_356, %c10_357, %c2_358, %c0_359] : memref<1x18x18x3xf32, #tpu.memory_space<vmem>>, vector<1x1x16x3xf32>
    %195 = vector.shape_cast %194 : vector<1x1x16x3xf32> to vector<16x3xf32>
    %c0_360 = arith.constant 0 : index
    %c11_361 = arith.constant 11 : index
    %c0_362 = arith.constant 0 : index
    %c0_363 = arith.constant 0 : index
    %196 = vector.load %arg1[%c0_360, %c11_361, %c0_362, %c0_363] : memref<1x18x18x3xf32, #tpu.memory_space<vmem>>, vector<1x1x16x3xf32>
    %197 = vector.shape_cast %196 : vector<1x1x16x3xf32> to vector<16x3xf32>
    %c0_364 = arith.constant 0 : index
    %c11_365 = arith.constant 11 : index
    %c1_366 = arith.constant 1 : index
    %c0_367 = arith.constant 0 : index
    %198 = vector.load %arg1[%c0_364, %c11_365, %c1_366, %c0_367] : memref<1x18x18x3xf32, #tpu.memory_space<vmem>>, vector<1x1x16x3xf32>
    %199 = vector.shape_cast %198 : vector<1x1x16x3xf32> to vector<16x3xf32>
    %c0_368 = arith.constant 0 : index
    %c11_369 = arith.constant 11 : index
    %c2_370 = arith.constant 2 : index
    %c0_371 = arith.constant 0 : index
    %200 = vector.load %arg1[%c0_368, %c11_369, %c2_370, %c0_371] : memref<1x18x18x3xf32, #tpu.memory_space<vmem>>, vector<1x1x16x3xf32>
    %201 = vector.shape_cast %200 : vector<1x1x16x3xf32> to vector<16x3xf32>
    %c0_372 = arith.constant 0 : index
    %c12 = arith.constant 12 : index
    %c0_373 = arith.constant 0 : index
    %c0_374 = arith.constant 0 : index
    %202 = vector.load %arg1[%c0_372, %c12, %c0_373, %c0_374] : memref<1x18x18x3xf32, #tpu.memory_space<vmem>>, vector<1x1x16x3xf32>
    %203 = vector.shape_cast %202 : vector<1x1x16x3xf32> to vector<16x3xf32>
    %c0_375 = arith.constant 0 : index
    %c12_376 = arith.constant 12 : index
    %c1_377 = arith.constant 1 : index
    %c0_378 = arith.constant 0 : index
    %204 = vector.load %arg1[%c0_375, %c12_376, %c1_377, %c0_378] : memref<1x18x18x3xf32, #tpu.memory_space<vmem>>, vector<1x1x16x3xf32>
    %205 = vector.shape_cast %204 : vector<1x1x16x3xf32> to vector<16x3xf32>
    %c0_379 = arith.constant 0 : index
    %c12_380 = arith.constant 12 : index
    %c2_381 = arith.constant 2 : index
    %c0_382 = arith.constant 0 : index
    %206 = vector.load %arg1[%c0_379, %c12_380, %c2_381, %c0_382] : memref<1x18x18x3xf32, #tpu.memory_space<vmem>>, vector<1x1x16x3xf32>
    %207 = vector.shape_cast %206 : vector<1x1x16x3xf32> to vector<16x3xf32>
    %208 = tpu.concatenate %191, %193, %195, %197, %199, %201, %203, %205, %207 in 1 : vector<16x3xf32>, vector<16x3xf32>, vector<16x3xf32>, vector<16x3xf32>, vector<16x3xf32>, vector<16x3xf32>, vector<16x3xf32>, vector<16x3xf32>, vector<16x3xf32> -> vector<16x27xf32>
    %c0_383 = arith.constant 0 : index
    %c11_384 = arith.constant 11 : index
    %c0_385 = arith.constant 0 : index
    %c0_386 = arith.constant 0 : index
    %209 = vector.load %arg1[%c0_383, %c11_384, %c0_385, %c0_386] : memref<1x18x18x3xf32, #tpu.memory_space<vmem>>, vector<1x1x16x3xf32>
    %210 = vector.shape_cast %209 : vector<1x1x16x3xf32> to vector<16x3xf32>
    %c0_387 = arith.constant 0 : index
    %c11_388 = arith.constant 11 : index
    %c1_389 = arith.constant 1 : index
    %c0_390 = arith.constant 0 : index
    %211 = vector.load %arg1[%c0_387, %c11_388, %c1_389, %c0_390] : memref<1x18x18x3xf32, #tpu.memory_space<vmem>>, vector<1x1x16x3xf32>
    %212 = vector.shape_cast %211 : vector<1x1x16x3xf32> to vector<16x3xf32>
    %c0_391 = arith.constant 0 : index
    %c11_392 = arith.constant 11 : index
    %c2_393 = arith.constant 2 : index
    %c0_394 = arith.constant 0 : index
    %213 = vector.load %arg1[%c0_391, %c11_392, %c2_393, %c0_394] : memref<1x18x18x3xf32, #tpu.memory_space<vmem>>, vector<1x1x16x3xf32>
    %214 = vector.shape_cast %213 : vector<1x1x16x3xf32> to vector<16x3xf32>
    %c0_395 = arith.constant 0 : index
    %c12_396 = arith.constant 12 : index
    %c0_397 = arith.constant 0 : index
    %c0_398 = arith.constant 0 : index
    %215 = vector.load %arg1[%c0_395, %c12_396, %c0_397, %c0_398] : memref<1x18x18x3xf32, #tpu.memory_space<vmem>>, vector<1x1x16x3xf32>
    %216 = vector.shape_cast %215 : vector<1x1x16x3xf32> to vector<16x3xf32>
    %c0_399 = arith.constant 0 : index
    %c12_400 = arith.constant 12 : index
    %c1_401 = arith.constant 1 : index
    %c0_402 = arith.constant 0 : index
    %217 = vector.load %arg1[%c0_399, %c12_400, %c1_401, %c0_402] : memref<1x18x18x3xf32, #tpu.memory_space<vmem>>, vector<1x1x16x3xf32>
    %218 = vector.shape_cast %217 : vector<1x1x16x3xf32> to vector<16x3xf32>
    %c0_403 = arith.constant 0 : index
    %c12_404 = arith.constant 12 : index
    %c2_405 = arith.constant 2 : index
    %c0_406 = arith.constant 0 : index
    %219 = vector.load %arg1[%c0_403, %c12_404, %c2_405, %c0_406] : memref<1x18x18x3xf32, #tpu.memory_space<vmem>>, vector<1x1x16x3xf32>
    %220 = vector.shape_cast %219 : vector<1x1x16x3xf32> to vector<16x3xf32>
    %c0_407 = arith.constant 0 : index
    %c13 = arith.constant 13 : index
    %c0_408 = arith.constant 0 : index
    %c0_409 = arith.constant 0 : index
    %221 = vector.load %arg1[%c0_407, %c13, %c0_408, %c0_409] : memref<1x18x18x3xf32, #tpu.memory_space<vmem>>, vector<1x1x16x3xf32>
    %222 = vector.shape_cast %221 : vector<1x1x16x3xf32> to vector<16x3xf32>
    %c0_410 = arith.constant 0 : index
    %c13_411 = arith.constant 13 : index
    %c1_412 = arith.constant 1 : index
    %c0_413 = arith.constant 0 : index
    %223 = vector.load %arg1[%c0_410, %c13_411, %c1_412, %c0_413] : memref<1x18x18x3xf32, #tpu.memory_space<vmem>>, vector<1x1x16x3xf32>
    %224 = vector.shape_cast %223 : vector<1x1x16x3xf32> to vector<16x3xf32>
    %c0_414 = arith.constant 0 : index
    %c13_415 = arith.constant 13 : index
    %c2_416 = arith.constant 2 : index
    %c0_417 = arith.constant 0 : index
    %225 = vector.load %arg1[%c0_414, %c13_415, %c2_416, %c0_417] : memref<1x18x18x3xf32, #tpu.memory_space<vmem>>, vector<1x1x16x3xf32>
    %226 = vector.shape_cast %225 : vector<1x1x16x3xf32> to vector<16x3xf32>
    %227 = tpu.concatenate %210, %212, %214, %216, %218, %220, %222, %224, %226 in 1 : vector<16x3xf32>, vector<16x3xf32>, vector<16x3xf32>, vector<16x3xf32>, vector<16x3xf32>, vector<16x3xf32>, vector<16x3xf32>, vector<16x3xf32>, vector<16x3xf32> -> vector<16x27xf32>
    %c0_418 = arith.constant 0 : index
    %c12_419 = arith.constant 12 : index
    %c0_420 = arith.constant 0 : index
    %c0_421 = arith.constant 0 : index
    %228 = vector.load %arg1[%c0_418, %c12_419, %c0_420, %c0_421] : memref<1x18x18x3xf32, #tpu.memory_space<vmem>>, vector<1x1x16x3xf32>
    %229 = vector.shape_cast %228 : vector<1x1x16x3xf32> to vector<16x3xf32>
    %c0_422 = arith.constant 0 : index
    %c12_423 = arith.constant 12 : index
    %c1_424 = arith.constant 1 : index
    %c0_425 = arith.constant 0 : index
    %230 = vector.load %arg1[%c0_422, %c12_423, %c1_424, %c0_425] : memref<1x18x18x3xf32, #tpu.memory_space<vmem>>, vector<1x1x16x3xf32>
    %231 = vector.shape_cast %230 : vector<1x1x16x3xf32> to vector<16x3xf32>
    %c0_426 = arith.constant 0 : index
    %c12_427 = arith.constant 12 : index
    %c2_428 = arith.constant 2 : index
    %c0_429 = arith.constant 0 : index
    %232 = vector.load %arg1[%c0_426, %c12_427, %c2_428, %c0_429] : memref<1x18x18x3xf32, #tpu.memory_space<vmem>>, vector<1x1x16x3xf32>
    %233 = vector.shape_cast %232 : vector<1x1x16x3xf32> to vector<16x3xf32>
    %c0_430 = arith.constant 0 : index
    %c13_431 = arith.constant 13 : index
    %c0_432 = arith.constant 0 : index
    %c0_433 = arith.constant 0 : index
    %234 = vector.load %arg1[%c0_430, %c13_431, %c0_432, %c0_433] : memref<1x18x18x3xf32, #tpu.memory_space<vmem>>, vector<1x1x16x3xf32>
    %235 = vector.shape_cast %234 : vector<1x1x16x3xf32> to vector<16x3xf32>
    %c0_434 = arith.constant 0 : index
    %c13_435 = arith.constant 13 : index
    %c1_436 = arith.constant 1 : index
    %c0_437 = arith.constant 0 : index
    %236 = vector.load %arg1[%c0_434, %c13_435, %c1_436, %c0_437] : memref<1x18x18x3xf32, #tpu.memory_space<vmem>>, vector<1x1x16x3xf32>
    %237 = vector.shape_cast %236 : vector<1x1x16x3xf32> to vector<16x3xf32>
    %c0_438 = arith.constant 0 : index
    %c13_439 = arith.constant 13 : index
    %c2_440 = arith.constant 2 : index
    %c0_441 = arith.constant 0 : index
    %238 = vector.load %arg1[%c0_438, %c13_439, %c2_440, %c0_441] : memref<1x18x18x3xf32, #tpu.memory_space<vmem>>, vector<1x1x16x3xf32>
    %239 = vector.shape_cast %238 : vector<1x1x16x3xf32> to vector<16x3xf32>
    %c0_442 = arith.constant 0 : index
    %c14 = arith.constant 14 : index
    %c0_443 = arith.constant 0 : index
    %c0_444 = arith.constant 0 : index
    %240 = vector.load %arg1[%c0_442, %c14, %c0_443, %c0_444] : memref<1x18x18x3xf32, #tpu.memory_space<vmem>>, vector<1x1x16x3xf32>
    %241 = vector.shape_cast %240 : vector<1x1x16x3xf32> to vector<16x3xf32>
    %c0_445 = arith.constant 0 : index
    %c14_446 = arith.constant 14 : index
    %c1_447 = arith.constant 1 : index
    %c0_448 = arith.constant 0 : index
    %242 = vector.load %arg1[%c0_445, %c14_446, %c1_447, %c0_448] : memref<1x18x18x3xf32, #tpu.memory_space<vmem>>, vector<1x1x16x3xf32>
    %243 = vector.shape_cast %242 : vector<1x1x16x3xf32> to vector<16x3xf32>
    %c0_449 = arith.constant 0 : index
    %c14_450 = arith.constant 14 : index
    %c2_451 = arith.constant 2 : index
    %c0_452 = arith.constant 0 : index
    %244 = vector.load %arg1[%c0_449, %c14_450, %c2_451, %c0_452] : memref<1x18x18x3xf32, #tpu.memory_space<vmem>>, vector<1x1x16x3xf32>
    %245 = vector.shape_cast %244 : vector<1x1x16x3xf32> to vector<16x3xf32>
    %246 = tpu.concatenate %229, %231, %233, %235, %237, %239, %241, %243, %245 in 1 : vector<16x3xf32>, vector<16x3xf32>, vector<16x3xf32>, vector<16x3xf32>, vector<16x3xf32>, vector<16x3xf32>, vector<16x3xf32>, vector<16x3xf32>, vector<16x3xf32> -> vector<16x27xf32>
    %c0_453 = arith.constant 0 : index
    %c13_454 = arith.constant 13 : index
    %c0_455 = arith.constant 0 : index
    %c0_456 = arith.constant 0 : index
    %247 = vector.load %arg1[%c0_453, %c13_454, %c0_455, %c0_456] : memref<1x18x18x3xf32, #tpu.memory_space<vmem>>, vector<1x1x16x3xf32>
    %248 = vector.shape_cast %247 : vector<1x1x16x3xf32> to vector<16x3xf32>
    %c0_457 = arith.constant 0 : index
    %c13_458 = arith.constant 13 : index
    %c1_459 = arith.constant 1 : index
    %c0_460 = arith.constant 0 : index
    %249 = vector.load %arg1[%c0_457, %c13_458, %c1_459, %c0_460] : memref<1x18x18x3xf32, #tpu.memory_space<vmem>>, vector<1x1x16x3xf32>
    %250 = vector.shape_cast %249 : vector<1x1x16x3xf32> to vector<16x3xf32>
    %c0_461 = arith.constant 0 : index
    %c13_462 = arith.constant 13 : index
    %c2_463 = arith.constant 2 : index
    %c0_464 = arith.constant 0 : index
    %251 = vector.load %arg1[%c0_461, %c13_462, %c2_463, %c0_464] : memref<1x18x18x3xf32, #tpu.memory_space<vmem>>, vector<1x1x16x3xf32>
    %252 = vector.shape_cast %251 : vector<1x1x16x3xf32> to vector<16x3xf32>
    %c0_465 = arith.constant 0 : index
    %c14_466 = arith.constant 14 : index
    %c0_467 = arith.constant 0 : index
    %c0_468 = arith.constant 0 : index
    %253 = vector.load %arg1[%c0_465, %c14_466, %c0_467, %c0_468] : memref<1x18x18x3xf32, #tpu.memory_space<vmem>>, vector<1x1x16x3xf32>
    %254 = vector.shape_cast %253 : vector<1x1x16x3xf32> to vector<16x3xf32>
    %c0_469 = arith.constant 0 : index
    %c14_470 = arith.constant 14 : index
    %c1_471 = arith.constant 1 : index
    %c0_472 = arith.constant 0 : index
    %255 = vector.load %arg1[%c0_469, %c14_470, %c1_471, %c0_472] : memref<1x18x18x3xf32, #tpu.memory_space<vmem>>, vector<1x1x16x3xf32>
    %256 = vector.shape_cast %255 : vector<1x1x16x3xf32> to vector<16x3xf32>
    %c0_473 = arith.constant 0 : index
    %c14_474 = arith.constant 14 : index
    %c2_475 = arith.constant 2 : index
    %c0_476 = arith.constant 0 : index
    %257 = vector.load %arg1[%c0_473, %c14_474, %c2_475, %c0_476] : memref<1x18x18x3xf32, #tpu.memory_space<vmem>>, vector<1x1x16x3xf32>
    %258 = vector.shape_cast %257 : vector<1x1x16x3xf32> to vector<16x3xf32>
    %c0_477 = arith.constant 0 : index
    %c15 = arith.constant 15 : index
    %c0_478 = arith.constant 0 : index
    %c0_479 = arith.constant 0 : index
    %259 = vector.load %arg1[%c0_477, %c15, %c0_478, %c0_479] : memref<1x18x18x3xf32, #tpu.memory_space<vmem>>, vector<1x1x16x3xf32>
    %260 = vector.shape_cast %259 : vector<1x1x16x3xf32> to vector<16x3xf32>
    %c0_480 = arith.constant 0 : index
    %c15_481 = arith.constant 15 : index
    %c1_482 = arith.constant 1 : index
    %c0_483 = arith.constant 0 : index
    %261 = vector.load %arg1[%c0_480, %c15_481, %c1_482, %c0_483] : memref<1x18x18x3xf32, #tpu.memory_space<vmem>>, vector<1x1x16x3xf32>
    %262 = vector.shape_cast %261 : vector<1x1x16x3xf32> to vector<16x3xf32>
    %c0_484 = arith.constant 0 : index
    %c15_485 = arith.constant 15 : index
    %c2_486 = arith.constant 2 : index
    %c0_487 = arith.constant 0 : index
    %263 = vector.load %arg1[%c0_484, %c15_485, %c2_486, %c0_487] : memref<1x18x18x3xf32, #tpu.memory_space<vmem>>, vector<1x1x16x3xf32>
    %264 = vector.shape_cast %263 : vector<1x1x16x3xf32> to vector<16x3xf32>
    %265 = tpu.concatenate %248, %250, %252, %254, %256, %258, %260, %262, %264 in 1 : vector<16x3xf32>, vector<16x3xf32>, vector<16x3xf32>, vector<16x3xf32>, vector<16x3xf32>, vector<16x3xf32>, vector<16x3xf32>, vector<16x3xf32>, vector<16x3xf32> -> vector<16x27xf32>
    %c0_488 = arith.constant 0 : index
    %c14_489 = arith.constant 14 : index
    %c0_490 = arith.constant 0 : index
    %c0_491 = arith.constant 0 : index
    %266 = vector.load %arg1[%c0_488, %c14_489, %c0_490, %c0_491] : memref<1x18x18x3xf32, #tpu.memory_space<vmem>>, vector<1x1x16x3xf32>
    %267 = vector.shape_cast %266 : vector<1x1x16x3xf32> to vector<16x3xf32>
    %c0_492 = arith.constant 0 : index
    %c14_493 = arith.constant 14 : index
    %c1_494 = arith.constant 1 : index
    %c0_495 = arith.constant 0 : index
    %268 = vector.load %arg1[%c0_492, %c14_493, %c1_494, %c0_495] : memref<1x18x18x3xf32, #tpu.memory_space<vmem>>, vector<1x1x16x3xf32>
    %269 = vector.shape_cast %268 : vector<1x1x16x3xf32> to vector<16x3xf32>
    %c0_496 = arith.constant 0 : index
    %c14_497 = arith.constant 14 : index
    %c2_498 = arith.constant 2 : index
    %c0_499 = arith.constant 0 : index
    %270 = vector.load %arg1[%c0_496, %c14_497, %c2_498, %c0_499] : memref<1x18x18x3xf32, #tpu.memory_space<vmem>>, vector<1x1x16x3xf32>
    %271 = vector.shape_cast %270 : vector<1x1x16x3xf32> to vector<16x3xf32>
    %c0_500 = arith.constant 0 : index
    %c15_501 = arith.constant 15 : index
    %c0_502 = arith.constant 0 : index
    %c0_503 = arith.constant 0 : index
    %272 = vector.load %arg1[%c0_500, %c15_501, %c0_502, %c0_503] : memref<1x18x18x3xf32, #tpu.memory_space<vmem>>, vector<1x1x16x3xf32>
    %273 = vector.shape_cast %272 : vector<1x1x16x3xf32> to vector<16x3xf32>
    %c0_504 = arith.constant 0 : index
    %c15_505 = arith.constant 15 : index
    %c1_506 = arith.constant 1 : index
    %c0_507 = arith.constant 0 : index
    %274 = vector.load %arg1[%c0_504, %c15_505, %c1_506, %c0_507] : memref<1x18x18x3xf32, #tpu.memory_space<vmem>>, vector<1x1x16x3xf32>
    %275 = vector.shape_cast %274 : vector<1x1x16x3xf32> to vector<16x3xf32>
    %c0_508 = arith.constant 0 : index
    %c15_509 = arith.constant 15 : index
    %c2_510 = arith.constant 2 : index
    %c0_511 = arith.constant 0 : index
    %276 = vector.load %arg1[%c0_508, %c15_509, %c2_510, %c0_511] : memref<1x18x18x3xf32, #tpu.memory_space<vmem>>, vector<1x1x16x3xf32>
    %277 = vector.shape_cast %276 : vector<1x1x16x3xf32> to vector<16x3xf32>
    %c0_512 = arith.constant 0 : index
    %c16 = arith.constant 16 : index
    %c0_513 = arith.constant 0 : index
    %c0_514 = arith.constant 0 : index
    %278 = vector.load %arg1[%c0_512, %c16, %c0_513, %c0_514] : memref<1x18x18x3xf32, #tpu.memory_space<vmem>>, vector<1x1x16x3xf32>
    %279 = vector.shape_cast %278 : vector<1x1x16x3xf32> to vector<16x3xf32>
    %c0_515 = arith.constant 0 : index
    %c16_516 = arith.constant 16 : index
    %c1_517 = arith.constant 1 : index
    %c0_518 = arith.constant 0 : index
    %280 = vector.load %arg1[%c0_515, %c16_516, %c1_517, %c0_518] : memref<1x18x18x3xf32, #tpu.memory_space<vmem>>, vector<1x1x16x3xf32>
    %281 = vector.shape_cast %280 : vector<1x1x16x3xf32> to vector<16x3xf32>
    %c0_519 = arith.constant 0 : index
    %c16_520 = arith.constant 16 : index
    %c2_521 = arith.constant 2 : index
    %c0_522 = arith.constant 0 : index
    %282 = vector.load %arg1[%c0_519, %c16_520, %c2_521, %c0_522] : memref<1x18x18x3xf32, #tpu.memory_space<vmem>>, vector<1x1x16x3xf32>
    %283 = vector.shape_cast %282 : vector<1x1x16x3xf32> to vector<16x3xf32>
    %284 = tpu.concatenate %267, %269, %271, %273, %275, %277, %279, %281, %283 in 1 : vector<16x3xf32>, vector<16x3xf32>, vector<16x3xf32>, vector<16x3xf32>, vector<16x3xf32>, vector<16x3xf32>, vector<16x3xf32>, vector<16x3xf32>, vector<16x3xf32> -> vector<16x27xf32>
    %c0_523 = arith.constant 0 : index
    %c15_524 = arith.constant 15 : index
    %c0_525 = arith.constant 0 : index
    %c0_526 = arith.constant 0 : index
    %285 = vector.load %arg1[%c0_523, %c15_524, %c0_525, %c0_526] : memref<1x18x18x3xf32, #tpu.memory_space<vmem>>, vector<1x1x16x3xf32>
    %286 = vector.shape_cast %285 : vector<1x1x16x3xf32> to vector<16x3xf32>
    %c0_527 = arith.constant 0 : index
    %c15_528 = arith.constant 15 : index
    %c1_529 = arith.constant 1 : index
    %c0_530 = arith.constant 0 : index
    %287 = vector.load %arg1[%c0_527, %c15_528, %c1_529, %c0_530] : memref<1x18x18x3xf32, #tpu.memory_space<vmem>>, vector<1x1x16x3xf32>
    %288 = vector.shape_cast %287 : vector<1x1x16x3xf32> to vector<16x3xf32>
    %c0_531 = arith.constant 0 : index
    %c15_532 = arith.constant 15 : index
    %c2_533 = arith.constant 2 : index
    %c0_534 = arith.constant 0 : index
    %289 = vector.load %arg1[%c0_531, %c15_532, %c2_533, %c0_534] : memref<1x18x18x3xf32, #tpu.memory_space<vmem>>, vector<1x1x16x3xf32>
    %290 = vector.shape_cast %289 : vector<1x1x16x3xf32> to vector<16x3xf32>
    %c0_535 = arith.constant 0 : index
    %c16_536 = arith.constant 16 : index
    %c0_537 = arith.constant 0 : index
    %c0_538 = arith.constant 0 : index
    %291 = vector.load %arg1[%c0_535, %c16_536, %c0_537, %c0_538] : memref<1x18x18x3xf32, #tpu.memory_space<vmem>>, vector<1x1x16x3xf32>
    %292 = vector.shape_cast %291 : vector<1x1x16x3xf32> to vector<16x3xf32>
    %c0_539 = arith.constant 0 : index
    %c16_540 = arith.constant 16 : index
    %c1_541 = arith.constant 1 : index
    %c0_542 = arith.constant 0 : index
    %293 = vector.load %arg1[%c0_539, %c16_540, %c1_541, %c0_542] : memref<1x18x18x3xf32, #tpu.memory_space<vmem>>, vector<1x1x16x3xf32>
    %294 = vector.shape_cast %293 : vector<1x1x16x3xf32> to vector<16x3xf32>
    %c0_543 = arith.constant 0 : index
    %c16_544 = arith.constant 16 : index
    %c2_545 = arith.constant 2 : index
    %c0_546 = arith.constant 0 : index
    %295 = vector.load %arg1[%c0_543, %c16_544, %c2_545, %c0_546] : memref<1x18x18x3xf32, #tpu.memory_space<vmem>>, vector<1x1x16x3xf32>
    %296 = vector.shape_cast %295 : vector<1x1x16x3xf32> to vector<16x3xf32>
    %c0_547 = arith.constant 0 : index
    %c17 = arith.constant 17 : index
    %c0_548 = arith.constant 0 : index
    %c0_549 = arith.constant 0 : index
    %297 = vector.load %arg1[%c0_547, %c17, %c0_548, %c0_549] : memref<1x18x18x3xf32, #tpu.memory_space<vmem>>, vector<1x1x16x3xf32>
    %298 = vector.shape_cast %297 : vector<1x1x16x3xf32> to vector<16x3xf32>
    %c0_550 = arith.constant 0 : index
    %c17_551 = arith.constant 17 : index
    %c1_552 = arith.constant 1 : index
    %c0_553 = arith.constant 0 : index
    %299 = vector.load %arg1[%c0_550, %c17_551, %c1_552, %c0_553] : memref<1x18x18x3xf32, #tpu.memory_space<vmem>>, vector<1x1x16x3xf32>
    %300 = vector.shape_cast %299 : vector<1x1x16x3xf32> to vector<16x3xf32>
    %c0_554 = arith.constant 0 : index
    %c17_555 = arith.constant 17 : index
    %c2_556 = arith.constant 2 : index
    %c0_557 = arith.constant 0 : index
    %301 = vector.load %arg1[%c0_554, %c17_555, %c2_556, %c0_557] : memref<1x18x18x3xf32, #tpu.memory_space<vmem>>, vector<1x1x16x3xf32>
    %302 = vector.shape_cast %301 : vector<1x1x16x3xf32> to vector<16x3xf32>
    %303 = tpu.concatenate %286, %288, %290, %292, %294, %296, %298, %300, %302 in 1 : vector<16x3xf32>, vector<16x3xf32>, vector<16x3xf32>, vector<16x3xf32>, vector<16x3xf32>, vector<16x3xf32>, vector<16x3xf32>, vector<16x3xf32>, vector<16x3xf32> -> vector<16x27xf32>
    %304 = tpu.concatenate %18, %37, %56, %75, %94, %113, %132, %151, %170, %189, %208, %227, %246, %265, %284, %303 in 0 : vector<16x27xf32>, vector<16x27xf32>, vector<16x27xf32>, vector<16x27xf32>, vector<16x27xf32>, vector<16x27xf32>, vector<16x27xf32>, vector<16x27xf32>, vector<16x27xf32>, vector<16x27xf32>, vector<16x27xf32>, vector<16x27xf32>, vector<16x27xf32>, vector<16x27xf32>, vector<16x27xf32>, vector<16x27xf32> -> vector<256x27xf32>
    %c0_558 = arith.constant 0 : index
    %c0_559 = arith.constant 0 : index
    %305 = vector.load %arg4[%c0_558, %c0_559] : memref<27x8xf32, #tpu.memory_space<vmem>>, vector<27x8xf32>
    %cst = arith.constant dense<0.000000e+00> : vector<256x8xf32>
    %306 = tpu.matmul %304, %305, %cst {dimension_numbers = #tpu.dot_dimension_numbers<[1], [0], [0], [1], [0, 0, 1, 1], [], []>} : vector<256x27xf32>, vector<27x8xf32>, vector<256x8xf32> -> vector<256x8xf32>
    %c0_560 = arith.constant 0 : index
    %c0_561 = arith.constant 0 : index
    %307 = vector.load %arg5[%c0_560, %c0_561] : memref<1x8xf32, #tpu.memory_space<vmem>>, vector<1x8xf32>
    %308 = vector.broadcast %307 : vector<1x8xf32> to vector<256x8xf32>
    %309 = arith.addf %306, %308 : vector<256x8xf32>
    %cst_562 = arith.constant 0.000000e+00 : f32
    %310 = vector.broadcast %cst_562 : f32 to vector<256x8xf32>
    %311 = arith.maximumf %309, %310 : vector<256x8xf32>
    %312 = vector.extract_strided_slice %311 {offsets = [1, 0], sizes = [255, 8], strides = [1, 1]} : vector<256x8xf32> to vector<255x8xf32>
    %313 = vector.extract_strided_slice %311 {offsets = [0, 0], sizes = [1, 8], strides = [1, 1]} : vector<256x8xf32> to vector<1x8xf32>
    %314 = tpu.concatenate %312, %313 in 0 : vector<255x8xf32>, vector<1x8xf32> -> vector<256x8xf32>
    %315 = arith.maximumf %311, %314 : vector<256x8xf32>
    %316 = vector.extract_strided_slice %315 {offsets = [16, 0], sizes = [240, 8], strides = [1, 1]} : vector<256x8xf32> to vector<240x8xf32>
    %317 = vector.extract_strided_slice %315 {offsets = [0, 0], sizes = [16, 8], strides = [1, 1]} : vector<256x8xf32> to vector<16x8xf32>
    %318 = tpu.concatenate %316, %317 in 0 : vector<240x8xf32>, vector<16x8xf32> -> vector<256x8xf32>
    %319 = arith.maximumf %315, %318 : vector<256x8xf32>
    %c0_563 = arith.constant 0 : index
    %c0_564 = arith.constant 0 : index
    %320 = vector.load %arg2[%c0_563, %c0_564] : memref<100x256xf32, #tpu.memory_space<vmem>>, vector<100x256xf32>
    %cst_565 = arith.constant dense<0.000000e+00> : vector<100x8xf32>
    %321 = tpu.matmul %320, %319, %cst_565 {dimension_numbers = #tpu.dot_dimension_numbers<[1], [0], [0], [1], [0, 0, 1, 1], [], []>} : vector<100x256xf32>, vector<256x8xf32>, vector<100x8xf32> -> vector<100x8xf32>
    %322 = vector.extract_strided_slice %321 {offsets = [0, 0], sizes = [8, 8], strides = [1, 1]} : vector<100x8xf32> to vector<8x8xf32>
    %323 = vector.extract_strided_slice %321 {offsets = [1, 0], sizes = [8, 8], strides = [1, 1]} : vector<100x8xf32> to vector<8x8xf32>
    %324 = vector.extract_strided_slice %321 {offsets = [2, 0], sizes = [8, 8], strides = [1, 1]} : vector<100x8xf32> to vector<8x8xf32>
    %325 = vector.extract_strided_slice %321 {offsets = [10, 0], sizes = [8, 8], strides = [1, 1]} : vector<100x8xf32> to vector<8x8xf32>
    %326 = vector.extract_strided_slice %321 {offsets = [11, 0], sizes = [8, 8], strides = [1, 1]} : vector<100x8xf32> to vector<8x8xf32>
    %327 = vector.extract_strided_slice %321 {offsets = [12, 0], sizes = [8, 8], strides = [1, 1]} : vector<100x8xf32> to vector<8x8xf32>
    %328 = vector.extract_strided_slice %321 {offsets = [20, 0], sizes = [8, 8], strides = [1, 1]} : vector<100x8xf32> to vector<8x8xf32>
    %329 = vector.extract_strided_slice %321 {offsets = [21, 0], sizes = [8, 8], strides = [1, 1]} : vector<100x8xf32> to vector<8x8xf32>
    %330 = vector.extract_strided_slice %321 {offsets = [22, 0], sizes = [8, 8], strides = [1, 1]} : vector<100x8xf32> to vector<8x8xf32>
    %331 = tpu.concatenate %322, %323, %324, %325, %326, %327, %328, %329, %330 in 1 : vector<8x8xf32>, vector<8x8xf32>, vector<8x8xf32>, vector<8x8xf32>, vector<8x8xf32>, vector<8x8xf32>, vector<8x8xf32>, vector<8x8xf32>, vector<8x8xf32> -> vector<8x72xf32>
    %332 = vector.extract_strided_slice %321 {offsets = [10, 0], sizes = [8, 8], strides = [1, 1]} : vector<100x8xf32> to vector<8x8xf32>
    %333 = vector.extract_strided_slice %321 {offsets = [11, 0], sizes = [8, 8], strides = [1, 1]} : vector<100x8xf32> to vector<8x8xf32>
    %334 = vector.extract_strided_slice %321 {offsets = [12, 0], sizes = [8, 8], strides = [1, 1]} : vector<100x8xf32> to vector<8x8xf32>
    %335 = vector.extract_strided_slice %321 {offsets = [20, 0], sizes = [8, 8], strides = [1, 1]} : vector<100x8xf32> to vector<8x8xf32>
    %336 = vector.extract_strided_slice %321 {offsets = [21, 0], sizes = [8, 8], strides = [1, 1]} : vector<100x8xf32> to vector<8x8xf32>
    %337 = vector.extract_strided_slice %321 {offsets = [22, 0], sizes = [8, 8], strides = [1, 1]} : vector<100x8xf32> to vector<8x8xf32>
    %338 = vector.extract_strided_slice %321 {offsets = [30, 0], sizes = [8, 8], strides = [1, 1]} : vector<100x8xf32> to vector<8x8xf32>
    %339 = vector.extract_strided_slice %321 {offsets = [31, 0], sizes = [8, 8], strides = [1, 1]} : vector<100x8xf32> to vector<8x8xf32>
    %340 = vector.extract_strided_slice %321 {offsets = [32, 0], sizes = [8, 8], strides = [1, 1]} : vector<100x8xf32> to vector<8x8xf32>
    %341 = tpu.concatenate %332, %333, %334, %335, %336, %337, %338, %339, %340 in 1 : vector<8x8xf32>, vector<8x8xf32>, vector<8x8xf32>, vector<8x8xf32>, vector<8x8xf32>, vector<8x8xf32>, vector<8x8xf32>, vector<8x8xf32>, vector<8x8xf32> -> vector<8x72xf32>
    %342 = vector.extract_strided_slice %321 {offsets = [20, 0], sizes = [8, 8], strides = [1, 1]} : vector<100x8xf32> to vector<8x8xf32>
    %343 = vector.extract_strided_slice %321 {offsets = [21, 0], sizes = [8, 8], strides = [1, 1]} : vector<100x8xf32> to vector<8x8xf32>
    %344 = vector.extract_strided_slice %321 {offsets = [22, 0], sizes = [8, 8], strides = [1, 1]} : vector<100x8xf32> to vector<8x8xf32>
    %345 = vector.extract_strided_slice %321 {offsets = [30, 0], sizes = [8, 8], strides = [1, 1]} : vector<100x8xf32> to vector<8x8xf32>
    %346 = vector.extract_strided_slice %321 {offsets = [31, 0], sizes = [8, 8], strides = [1, 1]} : vector<100x8xf32> to vector<8x8xf32>
    %347 = vector.extract_strided_slice %321 {offsets = [32, 0], sizes = [8, 8], strides = [1, 1]} : vector<100x8xf32> to vector<8x8xf32>
    %348 = vector.extract_strided_slice %321 {offsets = [40, 0], sizes = [8, 8], strides = [1, 1]} : vector<100x8xf32> to vector<8x8xf32>
    %349 = vector.extract_strided_slice %321 {offsets = [41, 0], sizes = [8, 8], strides = [1, 1]} : vector<100x8xf32> to vector<8x8xf32>
    %350 = vector.extract_strided_slice %321 {offsets = [42, 0], sizes = [8, 8], strides = [1, 1]} : vector<100x8xf32> to vector<8x8xf32>
    %351 = tpu.concatenate %342, %343, %344, %345, %346, %347, %348, %349, %350 in 1 : vector<8x8xf32>, vector<8x8xf32>, vector<8x8xf32>, vector<8x8xf32>, vector<8x8xf32>, vector<8x8xf32>, vector<8x8xf32>, vector<8x8xf32>, vector<8x8xf32> -> vector<8x72xf32>
    %352 = vector.extract_strided_slice %321 {offsets = [30, 0], sizes = [8, 8], strides = [1, 1]} : vector<100x8xf32> to vector<8x8xf32>
    %353 = vector.extract_strided_slice %321 {offsets = [31, 0], sizes = [8, 8], strides = [1, 1]} : vector<100x8xf32> to vector<8x8xf32>
    %354 = vector.extract_strided_slice %321 {offsets = [32, 0], sizes = [8, 8], strides = [1, 1]} : vector<100x8xf32> to vector<8x8xf32>
    %355 = vector.extract_strided_slice %321 {offsets = [40, 0], sizes = [8, 8], strides = [1, 1]} : vector<100x8xf32> to vector<8x8xf32>
    %356 = vector.extract_strided_slice %321 {offsets = [41, 0], sizes = [8, 8], strides = [1, 1]} : vector<100x8xf32> to vector<8x8xf32>
    %357 = vector.extract_strided_slice %321 {offsets = [42, 0], sizes = [8, 8], strides = [1, 1]} : vector<100x8xf32> to vector<8x8xf32>
    %358 = vector.extract_strided_slice %321 {offsets = [50, 0], sizes = [8, 8], strides = [1, 1]} : vector<100x8xf32> to vector<8x8xf32>
    %359 = vector.extract_strided_slice %321 {offsets = [51, 0], sizes = [8, 8], strides = [1, 1]} : vector<100x8xf32> to vector<8x8xf32>
    %360 = vector.extract_strided_slice %321 {offsets = [52, 0], sizes = [8, 8], strides = [1, 1]} : vector<100x8xf32> to vector<8x8xf32>
    %361 = tpu.concatenate %352, %353, %354, %355, %356, %357, %358, %359, %360 in 1 : vector<8x8xf32>, vector<8x8xf32>, vector<8x8xf32>, vector<8x8xf32>, vector<8x8xf32>, vector<8x8xf32>, vector<8x8xf32>, vector<8x8xf32>, vector<8x8xf32> -> vector<8x72xf32>
    %362 = vector.extract_strided_slice %321 {offsets = [40, 0], sizes = [8, 8], strides = [1, 1]} : vector<100x8xf32> to vector<8x8xf32>
    %363 = vector.extract_strided_slice %321 {offsets = [41, 0], sizes = [8, 8], strides = [1, 1]} : vector<100x8xf32> to vector<8x8xf32>
    %364 = vector.extract_strided_slice %321 {offsets = [42, 0], sizes = [8, 8], strides = [1, 1]} : vector<100x8xf32> to vector<8x8xf32>
    %365 = vector.extract_strided_slice %321 {offsets = [50, 0], sizes = [8, 8], strides = [1, 1]} : vector<100x8xf32> to vector<8x8xf32>
    %366 = vector.extract_strided_slice %321 {offsets = [51, 0], sizes = [8, 8], strides = [1, 1]} : vector<100x8xf32> to vector<8x8xf32>
    %367 = vector.extract_strided_slice %321 {offsets = [52, 0], sizes = [8, 8], strides = [1, 1]} : vector<100x8xf32> to vector<8x8xf32>
    %368 = vector.extract_strided_slice %321 {offsets = [60, 0], sizes = [8, 8], strides = [1, 1]} : vector<100x8xf32> to vector<8x8xf32>
    %369 = vector.extract_strided_slice %321 {offsets = [61, 0], sizes = [8, 8], strides = [1, 1]} : vector<100x8xf32> to vector<8x8xf32>
    %370 = vector.extract_strided_slice %321 {offsets = [62, 0], sizes = [8, 8], strides = [1, 1]} : vector<100x8xf32> to vector<8x8xf32>
    %371 = tpu.concatenate %362, %363, %364, %365, %366, %367, %368, %369, %370 in 1 : vector<8x8xf32>, vector<8x8xf32>, vector<8x8xf32>, vector<8x8xf32>, vector<8x8xf32>, vector<8x8xf32>, vector<8x8xf32>, vector<8x8xf32>, vector<8x8xf32> -> vector<8x72xf32>
    %372 = vector.extract_strided_slice %321 {offsets = [50, 0], sizes = [8, 8], strides = [1, 1]} : vector<100x8xf32> to vector<8x8xf32>
    %373 = vector.extract_strided_slice %321 {offsets = [51, 0], sizes = [8, 8], strides = [1, 1]} : vector<100x8xf32> to vector<8x8xf32>
    %374 = vector.extract_strided_slice %321 {offsets = [52, 0], sizes = [8, 8], strides = [1, 1]} : vector<100x8xf32> to vector<8x8xf32>
    %375 = vector.extract_strided_slice %321 {offsets = [60, 0], sizes = [8, 8], strides = [1, 1]} : vector<100x8xf32> to vector<8x8xf32>
    %376 = vector.extract_strided_slice %321 {offsets = [61, 0], sizes = [8, 8], strides = [1, 1]} : vector<100x8xf32> to vector<8x8xf32>
    %377 = vector.extract_strided_slice %321 {offsets = [62, 0], sizes = [8, 8], strides = [1, 1]} : vector<100x8xf32> to vector<8x8xf32>
    %378 = vector.extract_strided_slice %321 {offsets = [70, 0], sizes = [8, 8], strides = [1, 1]} : vector<100x8xf32> to vector<8x8xf32>
    %379 = vector.extract_strided_slice %321 {offsets = [71, 0], sizes = [8, 8], strides = [1, 1]} : vector<100x8xf32> to vector<8x8xf32>
    %380 = vector.extract_strided_slice %321 {offsets = [72, 0], sizes = [8, 8], strides = [1, 1]} : vector<100x8xf32> to vector<8x8xf32>
    %381 = tpu.concatenate %372, %373, %374, %375, %376, %377, %378, %379, %380 in 1 : vector<8x8xf32>, vector<8x8xf32>, vector<8x8xf32>, vector<8x8xf32>, vector<8x8xf32>, vector<8x8xf32>, vector<8x8xf32>, vector<8x8xf32>, vector<8x8xf32> -> vector<8x72xf32>
    %382 = vector.extract_strided_slice %321 {offsets = [60, 0], sizes = [8, 8], strides = [1, 1]} : vector<100x8xf32> to vector<8x8xf32>
    %383 = vector.extract_strided_slice %321 {offsets = [61, 0], sizes = [8, 8], strides = [1, 1]} : vector<100x8xf32> to vector<8x8xf32>
    %384 = vector.extract_strided_slice %321 {offsets = [62, 0], sizes = [8, 8], strides = [1, 1]} : vector<100x8xf32> to vector<8x8xf32>
    %385 = vector.extract_strided_slice %321 {offsets = [70, 0], sizes = [8, 8], strides = [1, 1]} : vector<100x8xf32> to vector<8x8xf32>
    %386 = vector.extract_strided_slice %321 {offsets = [71, 0], sizes = [8, 8], strides = [1, 1]} : vector<100x8xf32> to vector<8x8xf32>
    %387 = vector.extract_strided_slice %321 {offsets = [72, 0], sizes = [8, 8], strides = [1, 1]} : vector<100x8xf32> to vector<8x8xf32>
    %388 = vector.extract_strided_slice %321 {offsets = [80, 0], sizes = [8, 8], strides = [1, 1]} : vector<100x8xf32> to vector<8x8xf32>
    %389 = vector.extract_strided_slice %321 {offsets = [81, 0], sizes = [8, 8], strides = [1, 1]} : vector<100x8xf32> to vector<8x8xf32>
    %390 = vector.extract_strided_slice %321 {offsets = [82, 0], sizes = [8, 8], strides = [1, 1]} : vector<100x8xf32> to vector<8x8xf32>
    %391 = tpu.concatenate %382, %383, %384, %385, %386, %387, %388, %389, %390 in 1 : vector<8x8xf32>, vector<8x8xf32>, vector<8x8xf32>, vector<8x8xf32>, vector<8x8xf32>, vector<8x8xf32>, vector<8x8xf32>, vector<8x8xf32>, vector<8x8xf32> -> vector<8x72xf32>
    %392 = vector.extract_strided_slice %321 {offsets = [70, 0], sizes = [8, 8], strides = [1, 1]} : vector<100x8xf32> to vector<8x8xf32>
    %393 = vector.extract_strided_slice %321 {offsets = [71, 0], sizes = [8, 8], strides = [1, 1]} : vector<100x8xf32> to vector<8x8xf32>
    %394 = vector.extract_strided_slice %321 {offsets = [72, 0], sizes = [8, 8], strides = [1, 1]} : vector<100x8xf32> to vector<8x8xf32>
    %395 = vector.extract_strided_slice %321 {offsets = [80, 0], sizes = [8, 8], strides = [1, 1]} : vector<100x8xf32> to vector<8x8xf32>
    %396 = vector.extract_strided_slice %321 {offsets = [81, 0], sizes = [8, 8], strides = [1, 1]} : vector<100x8xf32> to vector<8x8xf32>
    %397 = vector.extract_strided_slice %321 {offsets = [82, 0], sizes = [8, 8], strides = [1, 1]} : vector<100x8xf32> to vector<8x8xf32>
    %398 = vector.extract_strided_slice %321 {offsets = [90, 0], sizes = [8, 8], strides = [1, 1]} : vector<100x8xf32> to vector<8x8xf32>
    %399 = vector.extract_strided_slice %321 {offsets = [91, 0], sizes = [8, 8], strides = [1, 1]} : vector<100x8xf32> to vector<8x8xf32>
    %400 = vector.extract_strided_slice %321 {offsets = [92, 0], sizes = [8, 8], strides = [1, 1]} : vector<100x8xf32> to vector<8x8xf32>
    %401 = tpu.concatenate %392, %393, %394, %395, %396, %397, %398, %399, %400 in 1 : vector<8x8xf32>, vector<8x8xf32>, vector<8x8xf32>, vector<8x8xf32>, vector<8x8xf32>, vector<8x8xf32>, vector<8x8xf32>, vector<8x8xf32>, vector<8x8xf32> -> vector<8x72xf32>
    %402 = tpu.concatenate %331, %341, %351, %361, %371, %381, %391, %401 in 0 : vector<8x72xf32>, vector<8x72xf32>, vector<8x72xf32>, vector<8x72xf32>, vector<8x72xf32>, vector<8x72xf32>, vector<8x72xf32>, vector<8x72xf32> -> vector<64x72xf32>
    %c0_566 = arith.constant 0 : index
    %c0_567 = arith.constant 0 : index
    %403 = vector.load %arg6[%c0_566, %c0_567] : memref<72x16xf32, #tpu.memory_space<vmem>>, vector<72x16xf32>
    %cst_568 = arith.constant dense<0.000000e+00> : vector<64x16xf32>
    %404 = tpu.matmul %402, %403, %cst_568 {dimension_numbers = #tpu.dot_dimension_numbers<[1], [0], [0], [1], [0, 0, 1, 1], [], []>} : vector<64x72xf32>, vector<72x16xf32>, vector<64x16xf32> -> vector<64x16xf32>
    %c0_569 = arith.constant 0 : index
    %c0_570 = arith.constant 0 : index
    %405 = vector.load %arg7[%c0_569, %c0_570] : memref<1x16xf32, #tpu.memory_space<vmem>>, vector<1x16xf32>
    %406 = vector.broadcast %405 : vector<1x16xf32> to vector<64x16xf32>
    %407 = arith.addf %404, %406 : vector<64x16xf32>
    %cst_571 = arith.constant 0.000000e+00 : f32
    %408 = vector.broadcast %cst_571 : f32 to vector<64x16xf32>
    %409 = arith.maximumf %407, %408 : vector<64x16xf32>
    %410 = vector.extract_strided_slice %409 {offsets = [1, 0], sizes = [63, 16], strides = [1, 1]} : vector<64x16xf32> to vector<63x16xf32>
    %411 = vector.extract_strided_slice %409 {offsets = [0, 0], sizes = [1, 16], strides = [1, 1]} : vector<64x16xf32> to vector<1x16xf32>
    %412 = tpu.concatenate %410, %411 in 0 : vector<63x16xf32>, vector<1x16xf32> -> vector<64x16xf32>
    %413 = arith.maximumf %409, %412 : vector<64x16xf32>
    %414 = vector.extract_strided_slice %413 {offsets = [8, 0], sizes = [56, 16], strides = [1, 1]} : vector<64x16xf32> to vector<56x16xf32>
    %415 = vector.extract_strided_slice %413 {offsets = [0, 0], sizes = [8, 16], strides = [1, 1]} : vector<64x16xf32> to vector<8x16xf32>
    %416 = tpu.concatenate %414, %415 in 0 : vector<56x16xf32>, vector<8x16xf32> -> vector<64x16xf32>
    %417 = arith.maximumf %413, %416 : vector<64x16xf32>
    %c0_572 = arith.constant 0 : index
    %c0_573 = arith.constant 0 : index
    %418 = vector.load %arg3[%c0_572, %c0_573] : memref<16x64xf32, #tpu.memory_space<vmem>>, vector<16x64xf32>
    %cst_574 = arith.constant dense<0.000000e+00> : vector<16x16xf32>
    %419 = tpu.matmul %418, %417, %cst_574 {dimension_numbers = #tpu.dot_dimension_numbers<[1], [0], [0], [1], [0, 0, 1, 1], [], []>} : vector<16x64xf32>, vector<64x16xf32>, vector<16x16xf32> -> vector<16x16xf32>
    %420 = vector.extract_strided_slice %419 {offsets = [0, 0], sizes = [1, 16], strides = [1, 1]} : vector<16x16xf32> to vector<1x16xf32>
    %421 = vector.extract_strided_slice %419 {offsets = [1, 0], sizes = [1, 16], strides = [1, 1]} : vector<16x16xf32> to vector<1x16xf32>
    %422 = vector.extract_strided_slice %419 {offsets = [2, 0], sizes = [1, 16], strides = [1, 1]} : vector<16x16xf32> to vector<1x16xf32>
    %423 = vector.extract_strided_slice %419 {offsets = [3, 0], sizes = [1, 16], strides = [1, 1]} : vector<16x16xf32> to vector<1x16xf32>
    %424 = vector.extract_strided_slice %419 {offsets = [4, 0], sizes = [1, 16], strides = [1, 1]} : vector<16x16xf32> to vector<1x16xf32>
    %425 = vector.extract_strided_slice %419 {offsets = [5, 0], sizes = [1, 16], strides = [1, 1]} : vector<16x16xf32> to vector<1x16xf32>
    %426 = vector.extract_strided_slice %419 {offsets = [6, 0], sizes = [1, 16], strides = [1, 1]} : vector<16x16xf32> to vector<1x16xf32>
    %427 = vector.extract_strided_slice %419 {offsets = [7, 0], sizes = [1, 16], strides = [1, 1]} : vector<16x16xf32> to vector<1x16xf32>
    %428 = vector.extract_strided_slice %419 {offsets = [8, 0], sizes = [1, 16], strides = [1, 1]} : vector<16x16xf32> to vector<1x16xf32>
    %429 = vector.extract_strided_slice %419 {offsets = [9, 0], sizes = [1, 16], strides = [1, 1]} : vector<16x16xf32> to vector<1x16xf32>
    %430 = vector.extract_strided_slice %419 {offsets = [10, 0], sizes = [1, 16], strides = [1, 1]} : vector<16x16xf32> to vector<1x16xf32>
    %431 = vector.extract_strided_slice %419 {offsets = [11, 0], sizes = [1, 16], strides = [1, 1]} : vector<16x16xf32> to vector<1x16xf32>
    %432 = vector.extract_strided_slice %419 {offsets = [12, 0], sizes = [1, 16], strides = [1, 1]} : vector<16x16xf32> to vector<1x16xf32>
    %433 = vector.extract_strided_slice %419 {offsets = [13, 0], sizes = [1, 16], strides = [1, 1]} : vector<16x16xf32> to vector<1x16xf32>
    %434 = vector.extract_strided_slice %419 {offsets = [14, 0], sizes = [1, 16], strides = [1, 1]} : vector<16x16xf32> to vector<1x16xf32>
    %435 = vector.extract_strided_slice %419 {offsets = [15, 0], sizes = [1, 16], strides = [1, 1]} : vector<16x16xf32> to vector<1x16xf32>
    %436 = tpu.concatenate %420, %421, %422, %423, %424, %425, %426, %427, %428, %429, %430, %431, %432, %433, %434, %435 in 1 : vector<1x16xf32>, vector<1x16xf32>, vector<1x16xf32>, vector<1x16xf32>, vector<1x16xf32>, vector<1x16xf32>, vector<1x16xf32>, vector<1x16xf32>, vector<1x16xf32>, vector<1x16xf32>, vector<1x16xf32>, vector<1x16xf32>, vector<1x16xf32>, vector<1x16xf32>, vector<1x16xf32>, vector<1x16xf32> -> vector<1x256xf32>
    %c0_575 = arith.constant 0 : index
    %c0_576 = arith.constant 0 : index
    %437 = vector.load %arg8[%c0_575, %c0_576] : memref<256x64xf32, #tpu.memory_space<vmem>>, vector<256x64xf32>
    %cst_577 = arith.constant dense<0.000000e+00> : vector<1x64xf32>
    %438 = tpu.matmul %436, %437, %cst_577 {dimension_numbers = #tpu.dot_dimension_numbers<[1], [0], [0], [1], [0, 0, 1, 1], [], []>} : vector<1x256xf32>, vector<256x64xf32>, vector<1x64xf32> -> vector<1x64xf32>
    %c0_578 = arith.constant 0 : index
    %c0_579 = arith.constant 0 : index
    %439 = vector.load %arg9[%c0_578, %c0_579] : memref<1x64xf32, #tpu.memory_space<vmem>>, vector<1x64xf32>
    %440 = arith.addf %438, %439 : vector<1x64xf32>
    %cst_580 = arith.constant 0.000000e+00 : f32
    %441 = vector.broadcast %cst_580 : f32 to vector<1x64xf32>
    %442 = arith.maximumf %440, %441 : vector<1x64xf32>
    %c0_581 = arith.constant 0 : index
    %c0_582 = arith.constant 0 : index
    %443 = vector.load %arg10[%c0_581, %c0_582] : memref<64x64xf32, #tpu.memory_space<vmem>>, vector<64x64xf32>
    %cst_583 = arith.constant dense<0.000000e+00> : vector<1x64xf32>
    %444 = tpu.matmul %442, %443, %cst_583 {dimension_numbers = #tpu.dot_dimension_numbers<[1], [0], [0], [1], [0, 0, 1, 1], [], []>} : vector<1x64xf32>, vector<64x64xf32>, vector<1x64xf32> -> vector<1x64xf32>
    %c0_584 = arith.constant 0 : index
    %c0_585 = arith.constant 0 : index
    %445 = vector.load %arg11[%c0_584, %c0_585] : memref<1x64xf32, #tpu.memory_space<vmem>>, vector<1x64xf32>
    %446 = arith.addf %444, %445 : vector<1x64xf32>
    %cst_586 = arith.constant 0.000000e+00 : f32
    %447 = vector.broadcast %cst_586 : f32 to vector<1x64xf32>
    %448 = arith.maximumf %446, %447 : vector<1x64xf32>
    %c0_587 = arith.constant 0 : index
    %c0_588 = arith.constant 0 : index
    %449 = vector.load %arg12[%c0_587, %c0_588] : memref<64x10xf32, #tpu.memory_space<vmem>>, vector<64x10xf32>
    %cst_589 = arith.constant dense<0.000000e+00> : vector<1x10xf32>
    %450 = tpu.matmul %448, %449, %cst_589 {dimension_numbers = #tpu.dot_dimension_numbers<[1], [0], [0], [1], [0, 0, 1, 1], [], []>} : vector<1x64xf32>, vector<64x10xf32>, vector<1x10xf32> -> vector<1x10xf32>
    %c0_590 = arith.constant 0 : index
    %c0_591 = arith.constant 0 : index
    %451 = vector.load %arg13[%c0_590, %c0_591] : memref<1x10xf32, #tpu.memory_space<vmem>>, vector<1x10xf32>
    %452 = arith.addf %450, %451 : vector<1x10xf32>
    %c0_592 = arith.constant 0 : index
    %c0_593 = arith.constant 0 : index
    %c0_594 = arith.constant 0 : index
    %453 = vector.load %arg14[%c0_592, %c0_593, %c0_594] : memref<1x1x10xf32, #tpu.memory_space<vmem>>, vector<1x1x10xf32>
    %454 = vector.shape_cast %453 : vector<1x1x10xf32> to vector<1x10xf32>
    %455 = vector.shape_cast %452 : vector<1x10xf32> to vector<1x1x10xf32>
    tpu.vector_store %arg14[%c0_592, %c0_593, %c0_594], %455 {strides = array<i32>} : memref<1x1x10xf32, #tpu.memory_space<vmem>>, vector<1x1x10xf32>,
    return
  }
  func.func @transform_0(%arg0: i32) -> (i32, i32, i32, i32) {
    %c0_i32 = arith.constant 0 : i32
    %c0_i32_0 = arith.constant 0 : i32
    %c0_i32_1 = arith.constant 0 : i32
    %c0_i32_2 = arith.constant 0 : i32
    return %arg0, %c0_i32, %c0_i32_0, %c0_i32_1 : i32, i32, i32, i32
  }
  func.func @transform_1(%arg0: i32) -> (i32, i32) {
    %c0_i32 = arith.constant 0 : i32
    %c0_i32_0 = arith.constant 0 : i32
    %c0_i32_1 = arith.constant 0 : i32
    return %c0_i32, %c0_i32_0 : i32, i32
  }
  func.func @transform_2(%arg0: i32) -> (i32, i32) {
    %c0_i32 = arith.constant 0 : i32
    %c0_i32_0 = arith.constant 0 : i32
    %c0_i32_1 = arith.constant 0 : i32
    return %c0_i32, %c0_i32_0 : i32, i32
  }
  func.func @transform_3(%arg0: i32) -> (i32, i32) {
    %c0_i32 = arith.constant 0 : i32
    %c0_i32_0 = arith.constant 0 : i32
    %c0_i32_1 = arith.constant 0 : i32
    return %c0_i32, %c0_i32_0 : i32, i32
  }
  func.func @transform_4(%arg0: i32) -> (i32, i32) {
    %c0_i32 = arith.constant 0 : i32
    %c0_i32_0 = arith.constant 0 : i32
    %c0_i32_1 = arith.constant 0 : i32
    return %c0_i32, %c0_i32_0 : i32, i32
  }
  func.func @transform_5(%arg0: i32) -> (i32, i32) {
    %c0_i32 = arith.constant 0 : i32
    %c0_i32_0 = arith.constant 0 : i32
    %c0_i32_1 = arith.constant 0 : i32
    return %c0_i32, %c0_i32_0 : i32, i32
  }
  func.func @transform_6(%arg0: i32) -> (i32, i32) {
    %c0_i32 = arith.constant 0 : i32
    %c0_i32_0 = arith.constant 0 : i32
    %c0_i32_1 = arith.constant 0 : i32
    return %c0_i32, %c0_i32_0 : i32, i32
  }
  func.func @transform_7(%arg0: i32) -> (i32, i32) {
    %c0_i32 = arith.constant 0 : i32
    %c0_i32_0 = arith.constant 0 : i32
    %c0_i32_1 = arith.constant 0 : i32
    return %c0_i32, %c0_i32_0 : i32, i32
  }
  func.func @transform_8(%arg0: i32) -> (i32, i32) {
    %c0_i32 = arith.constant 0 : i32
    %c0_i32_0 = arith.constant 0 : i32
    %c0_i32_1 = arith.constant 0 : i32
    return %c0_i32, %c0_i32_0 : i32, i32
  }
  func.func @transform_9(%arg0: i32) -> (i32, i32) {
    %c0_i32 = arith.constant 0 : i32
    %c0_i32_0 = arith.constant 0 : i32
    %c0_i32_1 = arith.constant 0 : i32
    return %c0_i32, %c0_i32_0 : i32, i32
  }
  func.func @transform_10(%arg0: i32) -> (i32, i32) {
    %c0_i32 = arith.constant 0 : i32
    %c0_i32_0 = arith.constant 0 : i32
    %c0_i32_1 = arith.constant 0 : i32
    return %c0_i32, %c0_i32_0 : i32, i32
  }
  func.func @transform_11(%arg0: i32) -> (i32, i32) {
    %c0_i32 = arith.constant 0 : i32
    %c0_i32_0 = arith.constant 0 : i32
    %c0_i32_1 = arith.constant 0 : i32
    return %c0_i32, %c0_i32_0 : i32, i32
  }
  func.func @transform_12(%arg0: i32) -> (i32, i32) {
    %c0_i32 = arith.constant 0 : i32
    %c0_i32_0 = arith.constant 0 : i32
    %c0_i32_1 = arith.constant 0 : i32
    return %c0_i32, %c0_i32_0 : i32, i32
  }
  func.func @transform_13(%arg0: i32) -> (i32, i32, i32) {
    %c0_i32 = arith.constant 0 : i32
    %c0_i32_0 = arith.constant 0 : i32
    %c0_i32_1 = arith.constant 0 : i32
    return %arg0, %c0_i32, %c0_i32_0 : i32, i32, i32
  }
}

</mosaic_0001>

<llo_original>
// kernel: vgg_forward_pallas.1
$region0: #{vgg_forward_pallas.1}
  #allocation0 [shape = 'u32[]', space=smem, size = 0x4, offset = 0x4, fixed_abs, tag = 'smem constant byte address 0x4 - core index']
  #allocation1 [shape = 'u32[144,128]{1,0:T(1,128)}', space=vmem, size = 0x12000, scoped, tag = 'internal scratch']
  %s0 = inlined_call_operand.vmem [shape: f32[2,18,18,3], index: 0, kind: input, shape index: {}]
  %s1 = inlined_call_operand.vmem [shape: f32[100,256], index: 1, kind: input, shape index: {}]
  %s2 = inlined_call_operand.vmem [shape: f32[16,64], index: 2, kind: input, shape index: {}]
  %s3 = inlined_call_operand.vmem [shape: f32[27,8], index: 3, kind: input, shape index: {}]
  %s4 = inlined_call_operand.vmem [shape: f32[1,8], index: 4, kind: input, shape index: {}]
  %s5 = inlined_call_operand.vmem [shape: f32[72,16], index: 5, kind: input, shape index: {}]
  %s6 = inlined_call_operand.vmem [shape: f32[1,16], index: 6, kind: input, shape index: {}]
  %s7 = inlined_call_operand.vmem [shape: f32[256,64], index: 7, kind: input, shape index: {}]
  %s8 = inlined_call_operand.vmem [shape: f32[1,64], index: 8, kind: input, shape index: {}]
  %s9 = inlined_call_operand.vmem [shape: f32[64,64], index: 9, kind: input, shape index: {}]
  %s10 = inlined_call_operand.vmem [shape: f32[1,64], index: 10, kind: input, shape index: {}]
  %s11 = inlined_call_operand.vmem [shape: f32[64,10], index: 11, kind: input, shape index: {}]
  %s12 = inlined_call_operand.vmem [shape: f32[1,10], index: 12, kind: input, shape index: {}]
  %s13 = inlined_call_operand.hbm [shape: f32[2,1,10], index: 13, kind: output, shape index: {}]
  %s14 = sld [smem:[#allocation0]]
  $region85: #{vgg_forward_pallas.1} parent=0
    _
  %s16 = ssub.s32 1, %s14
  %s17 = scalar_select 0, %s16, %s14
  $region1: #{vgg_forward_pallas.1} parent=0
    #allocation2 [shape = 'u8[1024]{0}', space=vmem, size = 0x400, scoped, tag = 'output window, operand 0']
    #allocation3 [shape = 's32[2]{0}', space=sflag, size = 0x8, scoped, tag = 'scoped memory for vgg_forward_pallas.1']
    %18 = vsyncpa [#allocation3], 0
    %s19 = scalar_lea.sflag [#allocation3], 1
    %20 = vsyncpa %s19, 0
    loop: start=0, step=1, limit=4
    $region2: #{vgg_forward_pallas.1} parent=1 // loop_pre_header
      _
    $region3: #{vgg_forward_pallas.1} parent=1 // loop_header
      %s22 = sphi 0, %s26
      %p23 = scmp.ge.s32.totalorder %s22, 4
      %s32 = sphi 0, %s34
      %s35 = sphi 0, %s32
      %s36 = sphi 0, %s35
      %s52 = sphi 0, %s36
      %s56 = sphi 0, %s56
      %s58 = sphi 0, %s56
      %s59 = sphi 0, %s58
      %s73 = sphi 0, %s59
      %s77 = sphi 0, %s77
      %s79 = sphi 0, %s77
      %s80 = sphi 0, %s79
      %s94 = sphi 0, %s80
      %s98 = sphi 0, %s98
      %s100 = sphi 0, %s98
      %s101 = sphi 0, %s100
      %s115 = sphi 0, %s101
      %s119 = sphi 0, %s119
      %s121 = sphi 0, %s119
      %s122 = sphi 0, %s121
      %s136 = sphi 0, %s122
      %s140 = sphi 0, %s140
      %s142 = sphi 0, %s140
      %s143 = sphi 0, %s142
      %s157 = sphi 0, %s143
      %s161 = sphi 0, %s161
      %s163 = sphi 0, %s161
      %s164 = sphi 0, %s163
      %s178 = sphi 0, %s164
      %s182 = sphi 0, %s182
      %s184 = sphi 0, %s182
      %s185 = sphi 0, %s184
      %s199 = sphi 0, %s185
      %s203 = sphi 0, %s203
      %s205 = sphi 0, %s203
      %s206 = sphi 0, %s205
      %s220 = sphi 0, %s206
      %s224 = sphi 0, %s224
      %s226 = sphi 0, %s224
      %s227 = sphi 0, %s226
      %s241 = sphi 0, %s227
      %s245 = sphi 0, %s245
      %s247 = sphi 0, %s245
      %s248 = sphi 0, %s247
      %s262 = sphi 0, %s248
      %s266 = sphi 0, %s266
      %s268 = sphi 0, %s266
      %s269 = sphi 0, %s268
      %s283 = sphi 0, %s269
      %s287 = sphi 0, %s287
      %s289 = sphi 0, %s287
      %s290 = sphi 0, %s289
      %s304 = sphi 0, %s290
      %s310 = sphi 0, %s312
      %s313 = sphi 0, %s310
      %s314 = sphi 0, %s313
      %s330 = sphi 0, %s314
    $region4: #{vgg_forward_pallas.1} parent=1 // loop_header_branch
      %25 = sbr.rel (%p23) target = $region8
    $region5: #{vgg_forward_pallas.1} parent=1 // loop_body
      %s27 = ssub.s32 %s22, 1
      %s28 = ssub.s32 %s22, 2
      %s29 = sadd.s32 %s22, 1
      %s30 = ssub.s32 %s22, %s29
      %p31 = scmp.eq.s32.totalorder %s30, 0
      %s33 = sadd.s32 %s32, 1
      %s34 = scalar_select %p31, %s32, %s33
      %p37 = pneg %p31
      %p38 = scmp.eq.s32.totalorder %s22, 1
      %p39 = por %p37, %p38
      %p40 = scmp.ne.s32.totalorder %s32, %s35
      %p41 = scmp.eq.s32.totalorder %s22, 0
      %p42 = por %p40, %p41
      %p43 = scmp.ne.s32.totalorder %s32, %s35
      %p44 = scmp.eq.s32.totalorder %s27, 1
      %p45 = por %p43, %p44
      %p46 = scmp.ne.s32.totalorder %s35, %s36
      %p47 = scmp.eq.s32.totalorder %s27, 0
      %p48 = por %p46, %p47
      %p49 = scmp.ne.s32.totalorder %s35, %s36
      %p50 = scmp.eq.s32.totalorder %s28, 1
      %p51 = por %p49, %p50
      %p53 = scmp.ne.s32.totalorder %s36, %s52
      %p54 = scmp.eq.s32.totalorder %s28, 0
      %p55 = por %p53, %p54
      %s57 = sadd.s32 %s56, 1
      %p60 = scmp.eq.s32.totalorder %s22, 1
      %p61 = scmp.ne.s32.totalorder %s56, %s58
      %p62 = scmp.eq.s32.totalorder %s22, 0
      %p63 = por %p61, %p62
      %p64 = scmp.ne.s32.totalorder %s56, %s58
      %p65 = scmp.eq.s32.totalorder %s27, 1
      %p66 = por %p64, %p65
      %p67 = scmp.ne.s32.totalorder %s58, %s59
      %p68 = scmp.eq.s32.totalorder %s27, 0
      %p69 = por %p67, %p68
      %p70 = scmp.ne.s32.totalorder %s58, %s59
      %p71 = scmp.eq.s32.totalorder %s28, 1
      %p72 = por %p70, %p71
      %p74 = scmp.ne.s32.totalorder %s59, %s73
      %p75 = scmp.eq.s32.totalorder %s28, 0
      %p76 = por %p74, %p75
      %s78 = sadd.s32 %s77, 1
      %p81 = scmp.eq.s32.totalorder %s22, 1
      %p82 = scmp.ne.s32.totalorder %s77, %s79
      %p83 = scmp.eq.s32.totalorder %s22, 0
      %p84 = por %p82, %p83
      %p85 = scmp.ne.s32.totalorder %s77, %s79
      %p86 = scmp.eq.s32.totalorder %s27, 1
      %p87 = por %p85, %p86
      %p88 = scmp.ne.s32.totalorder %s79, %s80
      %p89 = scmp.eq.s32.totalorder %s27, 0
      %p90 = por %p88, %p89
      %p91 = scmp.ne.s32.totalorder %s79, %s80
      %p92 = scmp.eq.s32.totalorder %s28, 1
      %p93 = por %p91, %p92
      %p95 = scmp.ne.s32.totalorder %s80, %s94
      %p96 = scmp.eq.s32.totalorder %s28, 0
      %p97 = por %p95, %p96
      %s99 = sadd.s32 %s98, 1
      %p102 = scmp.eq.s32.totalorder %s22, 1
      %p103 = scmp.ne.s32.totalorder %s98, %s100
      %p104 = scmp.eq.s32.totalorder %s22, 0
      %p105 = por %p103, %p104
      %p106 = scmp.ne.s32.totalorder %s98, %s100
      %p107 = scmp.eq.s32.totalorder %s27, 1
      %p108 = por %p106, %p107
      %p109 = scmp.ne.s32.totalorder %s100, %s101
      %p110 = scmp.eq.s32.totalorder %s27, 0
      %p111 = por %p109, %p110
      %p112 = scmp.ne.s32.totalorder %s100, %s101
      %p113 = scmp.eq.s32.totalorder %s28, 1
      %p114 = por %p112, %p113
      %p116 = scmp.ne.s32.totalorder %s101, %s115
      %p117 = scmp.eq.s32.totalorder %s28, 0
      %p118 = por %p116, %p117
      %s120 = sadd.s32 %s119, 1
      %p123 = scmp.eq.s32.totalorder %s22, 1
      %p124 = scmp.ne.s32.totalorder %s119, %s121
      %p125 = scmp.eq.s32.totalorder %s22, 0
      %p126 = por %p124, %p125
      %p127 = scmp.ne.s32.totalorder %s119, %s121
      %p128 = scmp.eq.s32.totalorder %s27, 1
      %p129 = por %p127, %p128
      %p130 = scmp.ne.s32.totalorder %s121, %s122
      %p131 = scmp.eq.s32.totalorder %s27, 0
      %p132 = por %p130, %p131
      %p133 = scmp.ne.s32.totalorder %s121, %s122
      %p134 = scmp.eq.s32.totalorder %s28, 1
      %p135 = por %p133, %p134
      %p137 = scmp.ne.s32.totalorder %s122, %s136
      %p138 = scmp.eq.s32.totalorder %s28, 0
      %p139 = por %p137, %p138
      %s141 = sadd.s32 %s140, 1
      %p144 = scmp.eq.s32.totalorder %s22, 1
      %p145 = scmp.ne.s32.totalorder %s140, %s142
      %p146 = scmp.eq.s32.totalorder %s22, 0
      %p147 = por %p145, %p146
      %p148 = scmp.ne.s32.totalorder %s140, %s142
      %p149 = scmp.eq.s32.totalorder %s27, 1
      %p150 = por %p148, %p149
      %p151 = scmp.ne.s32.totalorder %s142, %s143
      %p152 = scmp.eq.s32.totalorder %s27, 0
      %p153 = por %p151, %p152
      %p154 = scmp.ne.s32.totalorder %s142, %s143
      %p155 = scmp.eq.s32.totalorder %s28, 1
      %p156 = por %p154, %p155
      %p158 = scmp.ne.s32.totalorder %s143, %s157
      %p159 = scmp.eq.s32.totalorder %s28, 0
      %p160 = por %p158, %p159
      %s162 = sadd.s32 %s161, 1
      %p165 = scmp.eq.s32.totalorder %s22, 1
      %p166 = scmp.ne.s32.totalorder %s161, %s163
      %p167 = scmp.eq.s32.totalorder %s22, 0
      %p168 = por %p166, %p167
      %p169 = scmp.ne.s32.totalorder %s161, %s163
      %p170 = scmp.eq.s32.totalorder %s27, 1
      %p171 = por %p169, %p170
      %p172 = scmp.ne.s32.totalorder %s163, %s164
      %p173 = scmp.eq.s32.totalorder %s27, 0
      %p174 = por %p172, %p173
      %p175 = scmp.ne.s32.totalorder %s163, %s164
      %p176 = scmp.eq.s32.totalorder %s28, 1
      %p177 = por %p175, %p176
      %p179 = scmp.ne.s32.totalorder %s164, %s178
      %p180 = scmp.eq.s32.totalorder %s28, 0
      %p181 = por %p179, %p180
      %s183 = sadd.s32 %s182, 1
      %p186 = scmp.eq.s32.totalorder %s22, 1
      %p187 = scmp.ne.s32.totalorder %s182, %s184
      %p188 = scmp.eq.s32.totalorder %s22, 0
      %p189 = por %p187, %p188
      %p190 = scmp.ne.s32.totalorder %s182, %s184
      %p191 = scmp.eq.s32.totalorder %s27, 1
      %p192 = por %p190, %p191
      %p193 = scmp.ne.s32.totalorder %s184, %s185
      %p194 = scmp.eq.s32.totalorder %s27, 0
      %p195 = por %p193, %p194
      %p196 = scmp.ne.s32.totalorder %s184, %s185
      %p197 = scmp.eq.s32.totalorder %s28, 1
      %p198 = por %p196, %p197
      %p200 = scmp.ne.s32.totalorder %s185, %s199
      %p201 = scmp.eq.s32.totalorder %s28, 0
      %p202 = por %p200, %p201
      %s204 = sadd.s32 %s203, 1
      %p207 = scmp.eq.s32.totalorder %s22, 1
      %p208 = scmp.ne.s32.totalorder %s203, %s205
      %p209 = scmp.eq.s32.totalorder %s22, 0
      %p210 = por %p208, %p209
      %p211 = scmp.ne.s32.totalorder %s203, %s205
      %p212 = scmp.eq.s32.totalorder %s27, 1
      %p213 = por %p211, %p212
      %p214 = scmp.ne.s32.totalorder %s205, %s206
      %p215 = scmp.eq.s32.totalorder %s27, 0
      %p216 = por %p214, %p215
      %p217 = scmp.ne.s32.totalorder %s205, %s206
      %p218 = scmp.eq.s32.totalorder %s28, 1
      %p219 = por %p217, %p218
      %p221 = scmp.ne.s32.totalorder %s206, %s220
      %p222 = scmp.eq.s32.totalorder %s28, 0
      %p223 = por %p221, %p222
      %s225 = sadd.s32 %s224, 1
      %p228 = scmp.eq.s32.totalorder %s22, 1
      %p229 = scmp.ne.s32.totalorder %s224, %s226
      %p230 = scmp.eq.s32.totalorder %s22, 0
      %p231 = por %p229, %p230
      %p232 = scmp.ne.s32.totalorder %s224, %s226
      %p233 = scmp.eq.s32.totalorder %s27, 1
      %p234 = por %p232, %p233
      %p235 = scmp.ne.s32.totalorder %s226, %s227
      %p236 = scmp.eq.s32.totalorder %s27, 0
      %p237 = por %p235, %p236
      %p238 = scmp.ne.s32.totalorder %s226, %s227
      %p239 = scmp.eq.s32.totalorder %s28, 1
      %p240 = por %p238, %p239
      %p242 = scmp.ne.s32.totalorder %s227, %s241
      %p243 = scmp.eq.s32.totalorder %s28, 0
      %p244 = por %p242, %p243
      %s246 = sadd.s32 %s245, 1
      %p249 = scmp.eq.s32.totalorder %s22, 1
      %p250 = scmp.ne.s32.totalorder %s245, %s247
      %p251 = scmp.eq.s32.totalorder %s22, 0
      %p252 = por %p250, %p251
      %p253 = scmp.ne.s32.totalorder %s245, %s247
      %p254 = scmp.eq.s32.totalorder %s27, 1
      %p255 = por %p253, %p254
      %p256 = scmp.ne.s32.totalorder %s247, %s248
      %p257 = scmp.eq.s32.totalorder %s27, 0
      %p258 = por %p256, %p257
      %p259 = scmp.ne.s32.totalorder %s247, %s248
      %p260 = scmp.eq.s32.totalorder %s28, 1
      %p261 = por %p259, %p260
      %p263 = scmp.ne.s32.totalorder %s248, %s262
      %p264 = scmp.eq.s32.totalorder %s28, 0
      %p265 = por %p263, %p264
      %s267 = sadd.s32 %s266, 1
      %p270 = scmp.eq.s32.totalorder %s22, 1
      %p271 = scmp.ne.s32.totalorder %s266, %s268
      %p272 = scmp.eq.s32.totalorder %s22, 0
      %p273 = por %p271, %p272
      %p274 = scmp.ne.s32.totalorder %s266, %s268
      %p275 = scmp.eq.s32.totalorder %s27, 1
      %p276 = por %p274, %p275
      %p277 = scmp.ne.s32.totalorder %s268, %s269
      %p278 = scmp.eq.s32.totalorder %s27, 0
      %p279 = por %p277, %p278
      %p280 = scmp.ne.s32.totalorder %s268, %s269
      %p281 = scmp.eq.s32.totalorder %s28, 1
      %p282 = por %p280, %p281
      %p284 = scmp.ne.s32.totalorder %s269, %s283
      %p285 = scmp.eq.s32.totalorder %s28, 0
      %p286 = por %p284, %p285
      %s288 = sadd.s32 %s287, 1
      %p291 = scmp.eq.s32.totalorder %s22, 1
      %p292 = scmp.ne.s32.totalorder %s287, %s289
      %p293 = scmp.eq.s32.totalorder %s22, 0
      %p294 = por %p292, %p293
      %p295 = scmp.ne.s32.totalorder %s287, %s289
      %p296 = scmp.eq.s32.totalorder %s27, 1
      %p297 = por %p295, %p296
      %p298 = scmp.ne.s32.totalorder %s289, %s290
      %p299 = scmp.eq.s32.totalorder %s27, 0
      %p300 = por %p298, %p299
      %p301 = scmp.ne.s32.totalorder %s289, %s290
      %p302 = scmp.eq.s32.totalorder %s28, 1
      %p303 = por %p301, %p302
      %p305 = scmp.ne.s32.totalorder %s290, %s304
      %p306 = scmp.eq.s32.totalorder %s28, 0
      %p307 = por %p305, %p306
      %s308 = ssub.s32 %s22, %s29
      %p309 = scmp.eq.s32.totalorder %s308, 0
      %s311 = sadd.s32 %s310, 1
      %s312 = scalar_select %p309, %s310, %s311
      %p315 = pneg %p309
      %p316 = scmp.eq.s32.totalorder %s22, 1
      %p317 = por %p315, %p316
      %p318 = scmp.ne.s32.totalorder %s310, %s313
      %p319 = scmp.eq.s32.totalorder %s22, 0
      %p320 = por %p318, %p319
      %p321 = scmp.ne.s32.totalorder %s310, %s313
      %p322 = scmp.eq.s32.totalorder %s27, 1
      %p323 = por %p321, %p322
      %p324 = scmp.ne.s32.totalorder %s313, %s314
      %p325 = scmp.eq.s32.totalorder %s27, 0
      %p326 = por %p324, %p325
      %p327 = scmp.ne.s32.totalorder %s313, %s314
      %p328 = scmp.eq.s32.totalorder %s28, 1
      %p329 = por %p327, %p328
      %p331 = scmp.ne.s32.totalorder %s314, %s330
      %p332 = scmp.eq.s32.totalorder %s28, 0
      %p333 = por %p331, %p332
      %p334 = scmp.le.s32.totalorder 1, %s22
      %p335 = scmp.lt.s32.totalorder %s22, 3
      %p336 = pnand %p334, %p335
      %p337 = pneg %p336
      // Predicated region
      $region9: #{vgg_forward_pallas.1} parent=5 // pred_check
        _
      $region10: #{vgg_forward_pallas.1} parent=5 // pred_check_branch
        %339 = sbr.rel (%p336) target = $region12
      $region11: #{vgg_forward_pallas.1} parent=5 // pred_region
        %s340 = ssub.s32 %s22, 1
        // Predicated region
        $region13: #{vgg_forward_pallas.1} parent=11 // pred_check
          %p341 = pneg %p69
        $region14: #{vgg_forward_pallas.1} parent=11 // pred_check_branch
          %343 = sbr.rel (%p341) target = $region16
        $region15: #{vgg_forward_pallas.1} parent=11 // pred_region
          _
        $region16: #{vgg_forward_pallas.1} parent=11 // pred_fallthru
          _
        // Predicated region
        $region17: #{vgg_forward_pallas.1} parent=11 // pred_check
          %p344 = pneg %p90
        $region18: #{vgg_forward_pallas.1} parent=11 // pred_check_branch
          %346 = sbr.rel (%p344) target = $region20
        $region19: #{vgg_forward_pallas.1} parent=11 // pred_region
          _
        $region20: #{vgg_forward_pallas.1} parent=11 // pred_fallthru
          _
        // Predicated region
        $region21: #{vgg_forward_pallas.1} parent=11 // pred_check
          %p347 = pneg %p111
        $region22: #{vgg_forward_pallas.1} parent=11 // pred_check_branch
          %349 = sbr.rel (%p347) target = $region24
        $region23: #{vgg_forward_pallas.1} parent=11 // pred_region
          _
        $region24: #{vgg_forward_pallas.1} parent=11 // pred_fallthru
          _
        // Predicated region
        $region25: #{vgg_forward_pallas.1} parent=11 // pred_check
          %p350 = pneg %p132
        $region26: #{vgg_forward_pallas.1} parent=11 // pred_check_branch
          %352 = sbr.rel (%p350) target = $region28
        $region27: #{vgg_forward_pallas.1} parent=11 // pred_region
          _
        $region28: #{vgg_forward_pallas.1} parent=11 // pred_fallthru
          _
        // Predicated region
        $region29: #{vgg_forward_pallas.1} parent=11 // pred_check
          %p353 = pneg %p153
        $region30: #{vgg_forward_pallas.1} parent=11 // pred_check_branch
          %355 = sbr.rel (%p353) target = $region32
        $region31: #{vgg_forward_pallas.1} parent=11 // pred_region
          _
        $region32: #{vgg_forward_pallas.1} parent=11 // pred_fallthru
          _
        // Predicated region
        $region33: #{vgg_forward_pallas.1} parent=11 // pred_check
          %p356 = pneg %p174
        $region34: #{vgg_forward_pallas.1} parent=11 // pred_check_branch
          %358 = sbr.rel (%p356) target = $region36
        $region35: #{vgg_forward_pallas.1} parent=11 // pred_region
          _
        $region36: #{vgg_forward_pallas.1} parent=11 // pred_fallthru
          _
        // Predicated region
        $region37: #{vgg_forward_pallas.1} parent=11 // pred_check
          %p359 = pneg %p195
        $region38: #{vgg_forward_pallas.1} parent=11 // pred_check_branch
          %361 = sbr.rel (%p359) target = $region40
        $region39: #{vgg_forward_pallas.1} parent=11 // pred_region
          _
        $region40: #{vgg_forward_pallas.1} parent=11 // pred_fallthru
          _
        // Predicated region
        $region41: #{vgg_forward_pallas.1} parent=11 // pred_check
          %p362 = pneg %p216
        $region42: #{vgg_forward_pallas.1} parent=11 // pred_check_branch
          %364 = sbr.rel (%p362) target = $region44
        $region43: #{vgg_forward_pallas.1} parent=11 // pred_region
          _
        $region44: #{vgg_forward_pallas.1} parent=11 // pred_fallthru
          _
        // Predicated region
        $region45: #{vgg_forward_pallas.1} parent=11 // pred_check
          %p365 = pneg %p237
        $region46: #{vgg_forward_pallas.1} parent=11 // pred_check_branch
          %367 = sbr.rel (%p365) target = $region48
        $region47: #{vgg_forward_pallas.1} parent=11 // pred_region
          _
        $region48: #{vgg_forward_pallas.1} parent=11 // pred_fallthru
          _
        // Predicated region
        $region49: #{vgg_forward_pallas.1} parent=11 // pred_check
          %p368 = pneg %p258
        $region50: #{vgg_forward_pallas.1} parent=11 // pred_check_branch
          %370 = sbr.rel (%p368) target = $region52
        $region51: #{vgg_forward_pallas.1} parent=11 // pred_region
          _
        $region52: #{vgg_forward_pallas.1} parent=11 // pred_fallthru
          _
        // Predicated region
        $region53: #{vgg_forward_pallas.1} parent=11 // pred_check
          %p371 = pneg %p279
        $region54: #{vgg_forward_pallas.1} parent=11 // pred_check_branch
          %373 = sbr.rel (%p371) target = $region56
        $region55: #{vgg_forward_pallas.1} parent=11 // pred_region
          _
        $region56: #{vgg_forward_pallas.1} parent=11 // pred_fallthru
          _
        // Predicated region
        $region57: #{vgg_forward_pallas.1} parent=11 // pred_check
          %p374 = pneg %p300
        $region58: #{vgg_forward_pallas.1} parent=11 // pred_check_branch
          %376 = sbr.rel (%p374) target = $region60
        $region59: #{vgg_forward_pallas.1} parent=11 // pred_region
          _
        $region60: #{vgg_forward_pallas.1} parent=11 // pred_fallthru
          _
      $region12: #{vgg_forward_pallas.1} parent=5 // pred_fallthru
        _
      %p377 = scmp.lt.s32.totalorder %s22, 2
      // Predicated region
      $region61: #{vgg_forward_pallas.1} parent=5 // pred_check
        %p378 = pneg %p377
      $region62: #{vgg_forward_pallas.1} parent=5 // pred_check_branch
        %380 = sbr.rel (%p378) target = $region64
      $region63: #{vgg_forward_pallas.1} parent=5 // pred_region
        // Predicated region
        $region65: #{vgg_forward_pallas.1} parent=63 // pred_check
          %p381 = pneg %p42
        $region66: #{vgg_forward_pallas.1} parent=63 // pred_check_branch
          %383 = sbr.rel (%p381) target = $region68
        $region67: #{vgg_forward_pallas.1} parent=63 // pred_region
          %p384 = scmp.lt.s32.totalorder %s22, 1
          %s385 = scalar_select %p384, %s22, 1
          %s386 = smul.addr %s385, 54
          %s387 = smul.addr %s386, 8
          %s388 = scalar_lea.vmem %s0, %s387
        $region68: #{vgg_forward_pallas.1} parent=63 // pred_fallthru
          _
      $region64: #{vgg_forward_pallas.1} parent=5 // pred_fallthru
        _
      %p389 = scmp.le.s32.totalorder 1, %s22
      %p390 = scmp.lt.s32.totalorder %s22, 3
      %p391 = pnand %p389, %p390
      %p392 = pneg %p391
      // Predicated region
      $region69: #{vgg_forward_pallas.1} parent=5 // pred_check
        _
      $region70: #{vgg_forward_pallas.1} parent=5 // pred_check_branch
        %394 = sbr.rel (%p391) target = $region72
      $region71: #{vgg_forward_pallas.1} parent=5 // pred_region
        %s395 = ssub.s32 %s22, 1
        %p396 = scmp.lt.s32.totalorder %s27, 1
        %s397 = scalar_select %p396, %s27, 1
        %s398 = smul.addr %s397, 54
        %s399 = smul.addr %s398, 8
        %s400 = scalar_lea.vmem %s0, %s399
        %p401 = pneg %p48
        %p402 = pneg %p45
        %p403 = pneg %p69
        %p404 = pneg %p66
        %p405 = pneg %p90
        %p406 = pneg %p87
        %p407 = pneg %p111
        %p408 = pneg %p108
        %p409 = pneg %p132
        %p410 = pneg %p129
        %p411 = pneg %p153
        %p412 = pneg %p150
        %p413 = pneg %p174
        %p414 = pneg %p171
        %p415 = pneg %p195
        %p416 = pneg %p192
        %p417 = pneg %p216
        %p418 = pneg %p213
        %p419 = pneg %p237
        %p420 = pneg %p234
        %p421 = pneg %p258
        %p422 = pneg %p255
        %p423 = pneg %p279
        %p424 = pneg %p276
        %p425 = pneg %p300
        %p426 = pneg %p297
        %p427 = pneg %p326
        %p428 = pneg %p323
        %s429 = sand.u32 %s313, 1
        %s430 = scalar_lea.sflag [#allocation3], %s429
        %s431 = sand.u32 %s313, 1
        %s432 = scalar_lea.vmem [#allocation2], %s431
        %p433 = scmp.lt.s32.totalorder %s27, 1
        %s434 = scalar_select %p433, %s27, 1
        %s435 = smul.addr %s434, 54
        %s436 = smul.addr %s435, 8
        %s437 = scalar_lea.vmem %s0, %s436
        %v438 = vld [vmem:[%s437] sm:$0xff]
        %v439 = vld [vmem:[%s437 + $0x8] sm:$0xff]
        %v440 = vld [vmem:[%s437 + $0x1] sm:$0xff]
        %v441 = vld [vmem:[%s437 + $0x9] sm:$0xff]
        %v442 = vld [vmem:[%s437 + $0x2] sm:$0xff]
        %v443 = vld [vmem:[%s437 + $0xa] sm:$0xff]
        %s444 = scalar_lea.vmem %s437, 24
        %v445 = vld [vmem:[%s444] sm:$0xff]
        %v446 = vld [vmem:[%s444 + $0x8] sm:$0xff]
        %v447 = vld [vmem:[%s444 + $0x1] sm:$0xff]
        %v448 = vld [vmem:[%s444 + $0x9] sm:$0xff]
        %v449 = vld [vmem:[%s444 + $0x2] sm:$0xff]
        %v450 = vld [vmem:[%s444 + $0xa] sm:$0xff]
        %s451 = scalar_lea.vmem %s437, 48
        %v452 = vld [vmem:[%s451] sm:$0xff]
        %v453 = vld [vmem:[%s451 + $0x8] sm:$0xff]
        %v454 = vld [vmem:[%s451 + $0x1] sm:$0xff]
        %v455 = vld [vmem:[%s451 + $0x9] sm:$0xff]
        %v456 = vld [vmem:[%s451 + $0x2] sm:$0xff]
        %v457 = vld [vmem:[%s451 + $0xa] sm:$0xff]
        %460 = vrot.lane.b32.xlu0 %v440, 3
        %v461 = vpop.permute.xlu0 %460
        %462 = vrot.lane.b32.xlu0 %v441, 3
        %v463 = vpop.permute.xlu0 %462
        %468 = vrot.lane.b32.xlu0 %v442, 6
        %v469 = vpop.permute.xlu0 %468
        %470 = vrot.lane.b32.xlu0 %v443, 6
        %v471 = vpop.permute.xlu0 %470
        %476 = vrot.lane.b32.xlu0 %v445, 9
        %v477 = vpop.permute.xlu0 %476
        %478 = vrot.lane.b32.xlu0 %v446, 9
        %v479 = vpop.permute.xlu0 %478
        %484 = vrot.lane.b32.xlu0 %v447, 12
        %v485 = vpop.permute.xlu0 %484
        %486 = vrot.lane.b32.xlu0 %v448, 12
        %v487 = vpop.permute.xlu0 %486
        %492 = vrot.lane.b32.xlu0 %v449, 15
        %v493 = vpop.permute.xlu0 %492
        %494 = vrot.lane.b32.xlu0 %v450, 15
        %v495 = vpop.permute.xlu0 %494
        %500 = vrot.lane.b32.xlu0 %v452, 18
        %v501 = vpop.permute.xlu0 %500
        %502 = vrot.lane.b32.xlu0 %v453, 18
        %v503 = vpop.permute.xlu0 %502
        %508 = vrot.lane.b32.xlu0 %v454, 21
        %v509 = vpop.permute.xlu0 %508
        %510 = vrot.lane.b32.xlu0 %v455, 21
        %v511 = vpop.permute.xlu0 %510
        %516 = vrot.lane.b32.xlu0 %v456, 24
        %v517 = vpop.permute.xlu0 %516
        %518 = vrot.lane.b32.xlu0 %v457, 24
        %v519 = vpop.permute.xlu0 %518
        %vm522 = vcmask 23552
        %v523 = vsel %vm522, %v438, %v461
        %v524 = vsel %vm522, %v439, %v463
        %vm525 = vcmask 48128
        %v526 = vsel %vm525, %v523, %v469
        %v527 = vsel %vm525, %v524, %v471
        %vm528 = vcmask 72704
        %v529 = vsel %vm528, %v526, %v477
        %v530 = vsel %vm528, %v527, %v479
        %vm531 = vcmask 97280
        %v532 = vsel %vm531, %v529, %v485
        %v533 = vsel %vm531, %v530, %v487
        %vm534 = vcmask 121856
        %v535 = vsel %vm534, %v532, %v493
        %v536 = vsel %vm534, %v533, %v495
        %vm537 = vcmask 146432
        %v538 = vsel %vm537, %v535, %v501
        %v539 = vsel %vm537, %v536, %v503
        %vm540 = vcmask 171008
        %v541 = vsel %vm540, %v538, %v509
        %v542 = vsel %vm540, %v539, %v511
        %vm543 = vcmask 195584
        %v544 = vsel %vm543, %v541, %v517
        %v545 = vsel %vm543, %v542, %v519
        %s546 = scalar_lea.vmem %s437, 72
        %v547 = vld [vmem:[%s546] sm:$0xff]
        %v548 = vld [vmem:[%s546 + $0x8] sm:$0xff]
        %v549 = vld [vmem:[%s546 + $0x1] sm:$0xff]
        %v550 = vld [vmem:[%s546 + $0x9] sm:$0xff]
        %v551 = vld [vmem:[%s546 + $0x2] sm:$0xff]
        %v552 = vld [vmem:[%s546 + $0xa] sm:$0xff]
        %553 = vrot.lane.b32.xlu0 %v447, 3
        %v554 = vpop.permute.xlu0 %553
        %555 = vrot.lane.b32.xlu0 %v448, 3
        %v556 = vpop.permute.xlu0 %555
        %559 = vrot.lane.b32.xlu0 %v449, 6
        %v560 = vpop.permute.xlu0 %559
        %561 = vrot.lane.b32.xlu0 %v450, 6
        %v562 = vpop.permute.xlu0 %561
        %565 = vrot.lane.b32.xlu0 %v452, 9
        %v566 = vpop.permute.xlu0 %565
        %567 = vrot.lane.b32.xlu0 %v453, 9
        %v568 = vpop.permute.xlu0 %567
        %571 = vrot.lane.b32.xlu0 %v454, 12
        %v572 = vpop.permute.xlu0 %571
        %573 = vrot.lane.b32.xlu0 %v455, 12
        %v574 = vpop.permute.xlu0 %573
        %577 = vrot.lane.b32.xlu0 %v456, 15
        %v578 = vpop.permute.xlu0 %577
        %579 = vrot.lane.b32.xlu0 %v457, 15
        %v580 = vpop.permute.xlu0 %579
        %585 = vrot.lane.b32.xlu0 %v547, 18
        %v586 = vpop.permute.xlu0 %585
        %587 = vrot.lane.b32.xlu0 %v548, 18
        %v588 = vpop.permute.xlu0 %587
        %593 = vrot.lane.b32.xlu0 %v549, 21
        %v594 = vpop.permute.xlu0 %593
        %595 = vrot.lane.b32.xlu0 %v550, 21
        %v596 = vpop.permute.xlu0 %595
        %601 = vrot.lane.b32.xlu0 %v551, 24
        %v602 = vpop.permute.xlu0 %601
        %603 = vrot.lane.b32.xlu0 %v552, 24
        %v604 = vpop.permute.xlu0 %603
        %v607 = vsel %vm522, %v445, %v554
        %v608 = vsel %vm522, %v446, %v556
        %v609 = vsel %vm525, %v607, %v560
        %v610 = vsel %vm525, %v608, %v562
        %v611 = vsel %vm528, %v609, %v566
        %v612 = vsel %vm528, %v610, %v568
        %v613 = vsel %vm531, %v611, %v572
        %v614 = vsel %vm531, %v612, %v574
        %v615 = vsel %vm534, %v613, %v578
        %v616 = vsel %vm534, %v614, %v580
        %v617 = vsel %vm537, %v615, %v586
        %v618 = vsel %vm537, %v616, %v588
        %v619 = vsel %vm540, %v617, %v594
        %v620 = vsel %vm540, %v618, %v596
        %v621 = vsel %vm543, %v619, %v602
        %v622 = vsel %vm543, %v620, %v604
        %s623 = scalar_lea.vmem %s437, 96
        %v624 = vld [vmem:[%s623] sm:$0xff]
        %v625 = vld [vmem:[%s623 + $0x8] sm:$0xff]
        %v626 = vld [vmem:[%s623 + $0x1] sm:$0xff]
        %v627 = vld [vmem:[%s623 + $0x9] sm:$0xff]
        %v628 = vld [vmem:[%s623 + $0x2] sm:$0xff]
        %v629 = vld [vmem:[%s623 + $0xa] sm:$0xff]
        %630 = vrot.lane.b32.xlu0 %v454, 3
        %v631 = vpop.permute.xlu0 %630
        %632 = vrot.lane.b32.xlu0 %v455, 3
        %v633 = vpop.permute.xlu0 %632
        %636 = vrot.lane.b32.xlu0 %v456, 6
        %v637 = vpop.permute.xlu0 %636
        %638 = vrot.lane.b32.xlu0 %v457, 6
        %v639 = vpop.permute.xlu0 %638
        %642 = vrot.lane.b32.xlu0 %v547, 9
        %v643 = vpop.permute.xlu0 %642
        %644 = vrot.lane.b32.xlu0 %v548, 9
        %v645 = vpop.permute.xlu0 %644
        %648 = vrot.lane.b32.xlu0 %v549, 12
        %v649 = vpop.permute.xlu0 %648
        %650 = vrot.lane.b32.xlu0 %v550, 12
        %v651 = vpop.permute.xlu0 %650
        %654 = vrot.lane.b32.xlu0 %v551, 15
        %v655 = vpop.permute.xlu0 %654
        %656 = vrot.lane.b32.xlu0 %v552, 15
        %v657 = vpop.permute.xlu0 %656
        %662 = vrot.lane.b32.xlu0 %v624, 18
        %v663 = vpop.permute.xlu0 %662
        %664 = vrot.lane.b32.xlu0 %v625, 18
        %v665 = vpop.permute.xlu0 %664
        %670 = vrot.lane.b32.xlu0 %v626, 21
        %v671 = vpop.permute.xlu0 %670
        %672 = vrot.lane.b32.xlu0 %v627, 21
        %v673 = vpop.permute.xlu0 %672
        %678 = vrot.lane.b32.xlu0 %v628, 24
        %v679 = vpop.permute.xlu0 %678
        %680 = vrot.lane.b32.xlu0 %v629, 24
        %v681 = vpop.permute.xlu0 %680
        %v684 = vsel %vm522, %v452, %v631
        %v685 = vsel %vm522, %v453, %v633
        %v686 = vsel %vm525, %v684, %v637
        %v687 = vsel %vm525, %v685, %v639
        %v688 = vsel %vm528, %v686, %v643
        %v689 = vsel %vm528, %v687, %v645
        %v690 = vsel %vm531, %v688, %v649
        %v691 = vsel %vm531, %v689, %v651
        %v692 = vsel %vm534, %v690, %v655
        %v693 = vsel %vm534, %v691, %v657
        %v694 = vsel %vm537, %v692, %v663
        %v695 = vsel %vm537, %v693, %v665
        %v696 = vsel %vm540, %v694, %v671
        %v697 = vsel %vm540, %v695, %v673
        %v698 = vsel %vm543, %v696, %v679
        %v699 = vsel %vm543, %v697, %v681
        %s700 = scalar_lea.vmem %s437, 120
        %v701 = vld [vmem:[%s700] sm:$0xff]
        %v702 = vld [vmem:[%s700 + $0x8] sm:$0xff]
        %v703 = vld [vmem:[%s700 + $0x1] sm:$0xff]
        %v704 = vld [vmem:[%s700 + $0x9] sm:$0xff]
        %v705 = vld [vmem:[%s700 + $0x2] sm:$0xff]
        %v706 = vld [vmem:[%s700 + $0xa] sm:$0xff]
        %707 = vrot.lane.b32.xlu0 %v549, 3
        %v708 = vpop.permute.xlu0 %707
        %709 = vrot.lane.b32.xlu0 %v550, 3
        %v710 = vpop.permute.xlu0 %709
        %713 = vrot.lane.b32.xlu0 %v551, 6
        %v714 = vpop.permute.xlu0 %713
        %715 = vrot.lane.b32.xlu0 %v552, 6
        %v716 = vpop.permute.xlu0 %715
        %719 = vrot.lane.b32.xlu0 %v624, 9
        %v720 = vpop.permute.xlu0 %719
        %721 = vrot.lane.b32.xlu0 %v625, 9
        %v722 = vpop.permute.xlu0 %721
        %725 = vrot.lane.b32.xlu0 %v626, 12
        %v726 = vpop.permute.xlu0 %725
        %727 = vrot.lane.b32.xlu0 %v627, 12
        %v728 = vpop.permute.xlu0 %727
        %731 = vrot.lane.b32.xlu0 %v628, 15
        %v732 = vpop.permute.xlu0 %731
        %733 = vrot.lane.b32.xlu0 %v629, 15
        %v734 = vpop.permute.xlu0 %733
        %739 = vrot.lane.b32.xlu0 %v701, 18
        %v740 = vpop.permute.xlu0 %739
        %741 = vrot.lane.b32.xlu0 %v702, 18
        %v742 = vpop.permute.xlu0 %741
        %747 = vrot.lane.b32.xlu0 %v703, 21
        %v748 = vpop.permute.xlu0 %747
        %749 = vrot.lane.b32.xlu0 %v704, 21
        %v750 = vpop.permute.xlu0 %749
        %755 = vrot.lane.b32.xlu0 %v705, 24
        %v756 = vpop.permute.xlu0 %755
        %757 = vrot.lane.b32.xlu0 %v706, 24
        %v758 = vpop.permute.xlu0 %757
        %v761 = vsel %vm522, %v547, %v708
        %v762 = vsel %vm522, %v548, %v710
        %v763 = vsel %vm525, %v761, %v714
        %v764 = vsel %vm525, %v762, %v716
        %v765 = vsel %vm528, %v763, %v720
        %v766 = vsel %vm528, %v764, %v722
        %v767 = vsel %vm531, %v765, %v726
        %v768 = vsel %vm531, %v766, %v728
        %v769 = vsel %vm534, %v767, %v732
        %v770 = vsel %vm534, %v768, %v734
        %v771 = vsel %vm537, %v769, %v740
        %v772 = vsel %vm537, %v770, %v742
        %v773 = vsel %vm540, %v771, %v748
        %v774 = vsel %vm540, %v772, %v750
        %v775 = vsel %vm543, %v773, %v756
        %v776 = vsel %vm543, %v774, %v758
        %s777 = scalar_lea.vmem %s437, 144
        %v778 = vld [vmem:[%s777] sm:$0xff]
        %v779 = vld [vmem:[%s777 + $0x8] sm:$0xff]
        %v780 = vld [vmem:[%s777 + $0x1] sm:$0xff]
        %v781 = vld [vmem:[%s777 + $0x9] sm:$0xff]
        %v782 = vld [vmem:[%s777 + $0x2] sm:$0xff]
        %v783 = vld [vmem:[%s777 + $0xa] sm:$0xff]
        %784 = vrot.lane.b32.xlu0 %v626, 3
        %v785 = vpop.permute.xlu0 %784
        %786 = vrot.lane.b32.xlu0 %v627, 3
        %v787 = vpop.permute.xlu0 %786
        %790 = vrot.lane.b32.xlu0 %v628, 6
        %v791 = vpop.permute.xlu0 %790
        %792 = vrot.lane.b32.xlu0 %v629, 6
        %v793 = vpop.permute.xlu0 %792
        %796 = vrot.lane.b32.xlu0 %v701, 9
        %v797 = vpop.permute.xlu0 %796
        %798 = vrot.lane.b32.xlu0 %v702, 9
        %v799 = vpop.permute.xlu0 %798
        %802 = vrot.lane.b32.xlu0 %v703, 12
        %v803 = vpop.permute.xlu0 %802
        %804 = vrot.lane.b32.xlu0 %v704, 12
        %v805 = vpop.permute.xlu0 %804
        %808 = vrot.lane.b32.xlu0 %v705, 15
        %v809 = vpop.permute.xlu0 %808
        %810 = vrot.lane.b32.xlu0 %v706, 15
        %v811 = vpop.permute.xlu0 %810
        %816 = vrot.lane.b32.xlu0 %v778, 18
        %v817 = vpop.permute.xlu0 %816
        %818 = vrot.lane.b32.xlu0 %v779, 18
        %v819 = vpop.permute.xlu0 %818
        %824 = vrot.lane.b32.xlu0 %v780, 21
        %v825 = vpop.permute.xlu0 %824
        %826 = vrot.lane.b32.xlu0 %v781, 21
        %v827 = vpop.permute.xlu0 %826
        %832 = vrot.lane.b32.xlu0 %v782, 24
        %v833 = vpop.permute.xlu0 %832
        %834 = vrot.lane.b32.xlu0 %v783, 24
        %v835 = vpop.permute.xlu0 %834
        %v838 = vsel %vm522, %v624, %v785
        %v839 = vsel %vm522, %v625, %v787
        %v840 = vsel %vm525, %v838, %v791
        %v841 = vsel %vm525, %v839, %v793
        %v842 = vsel %vm528, %v840, %v797
        %v843 = vsel %vm528, %v841, %v799
        %v844 = vsel %vm531, %v842, %v803
        %v845 = vsel %vm531, %v843, %v805
        %v846 = vsel %vm534, %v844, %v809
        %v847 = vsel %vm534, %v845, %v811
        %v848 = vsel %vm537, %v846, %v817
        %v849 = vsel %vm537, %v847, %v819
        %v850 = vsel %vm540, %v848, %v825
        %v851 = vsel %vm540, %v849, %v827
        %v852 = vsel %vm543, %v850, %v833
        %v853 = vsel %vm543, %v851, %v835
        %s854 = scalar_lea.vmem %s437, 168
        %v855 = vld [vmem:[%s854] sm:$0xff]
        %v856 = vld [vmem:[%s854 + $0x8] sm:$0xff]
        %v857 = vld [vmem:[%s854 + $0x1] sm:$0xff]
        %v858 = vld [vmem:[%s854 + $0x9] sm:$0xff]
        %v859 = vld [vmem:[%s854 + $0x2] sm:$0xff]
        %v860 = vld [vmem:[%s854 + $0xa] sm:$0xff]
        %861 = vrot.lane.b32.xlu0 %v703, 3
        %v862 = vpop.permute.xlu0 %861
        %863 = vrot.lane.b32.xlu0 %v704, 3
        %v864 = vpop.permute.xlu0 %863
        %867 = vrot.lane.b32.xlu0 %v705, 6
        %v868 = vpop.permute.xlu0 %867
        %869 = vrot.lane.b32.xlu0 %v706, 6
        %v870 = vpop.permute.xlu0 %869
        %873 = vrot.lane.b32.xlu0 %v778, 9
        %v874 = vpop.permute.xlu0 %873
        %875 = vrot.lane.b32.xlu0 %v779, 9
        %v876 = vpop.permute.xlu0 %875
        %879 = vrot.lane.b32.xlu0 %v780, 12
        %v880 = vpop.permute.xlu0 %879
        %881 = vrot.lane.b32.xlu0 %v781, 12
        %v882 = vpop.permute.xlu0 %881
        %885 = vrot.lane.b32.xlu0 %v782, 15
        %v886 = vpop.permute.xlu0 %885
        %887 = vrot.lane.b32.xlu0 %v783, 15
        %v888 = vpop.permute.xlu0 %887
        %893 = vrot.lane.b32.xlu0 %v855, 18
        %v894 = vpop.permute.xlu0 %893
        %895 = vrot.lane.b32.xlu0 %v856, 18
        %v896 = vpop.permute.xlu0 %895
        %901 = vrot.lane.b32.xlu0 %v857, 21
        %v902 = vpop.permute.xlu0 %901
        %903 = vrot.lane.b32.xlu0 %v858, 21
        %v904 = vpop.permute.xlu0 %903
        %909 = vrot.lane.b32.xlu0 %v859, 24
        %v910 = vpop.permute.xlu0 %909
        %911 = vrot.lane.b32.xlu0 %v860, 24
        %v912 = vpop.permute.xlu0 %911
        %v915 = vsel %vm522, %v701, %v862
        %v916 = vsel %vm522, %v702, %v864
        %v917 = vsel %vm525, %v915, %v868
        %v918 = vsel %vm525, %v916, %v870
        %v919 = vsel %vm528, %v917, %v874
        %v920 = vsel %vm528, %v918, %v876
        %v921 = vsel %vm531, %v919, %v880
        %v922 = vsel %vm531, %v920, %v882
        %v923 = vsel %vm534, %v921, %v886
        %v924 = vsel %vm534, %v922, %v888
        %v925 = vsel %vm537, %v923, %v894
        %v926 = vsel %vm537, %v924, %v896
        %v927 = vsel %vm540, %v925, %v902
        %v928 = vsel %vm540, %v926, %v904
        %v929 = vsel %vm543, %v927, %v910
        %v930 = vsel %vm543, %v928, %v912
        %s931 = scalar_lea.vmem %s437, 192
        %v932 = vld [vmem:[%s931] sm:$0xff]
        %v933 = vld [vmem:[%s931 + $0x8] sm:$0xff]
        %v934 = vld [vmem:[%s931 + $0x1] sm:$0xff]
        %v935 = vld [vmem:[%s931 + $0x9] sm:$0xff]
        %v936 = vld [vmem:[%s931 + $0x2] sm:$0xff]
        %v937 = vld [vmem:[%s931 + $0xa] sm:$0xff]
        %938 = vrot.lane.b32.xlu0 %v780, 3
        %v939 = vpop.permute.xlu0 %938
        %940 = vrot.lane.b32.xlu0 %v781, 3
        %v941 = vpop.permute.xlu0 %940
        %944 = vrot.lane.b32.xlu0 %v782, 6
        %v945 = vpop.permute.xlu0 %944
        %946 = vrot.lane.b32.xlu0 %v783, 6
        %v947 = vpop.permute.xlu0 %946
        %950 = vrot.lane.b32.xlu0 %v855, 9
        %v951 = vpop.permute.xlu0 %950
        %952 = vrot.lane.b32.xlu0 %v856, 9
        %v953 = vpop.permute.xlu0 %952
        %956 = vrot.lane.b32.xlu0 %v857, 12
        %v957 = vpop.permute.xlu0 %956
        %958 = vrot.lane.b32.xlu0 %v858, 12
        %v959 = vpop.permute.xlu0 %958
        %962 = vrot.lane.b32.xlu0 %v859, 15
        %v963 = vpop.permute.xlu0 %962
        %964 = vrot.lane.b32.xlu0 %v860, 15
        %v965 = vpop.permute.xlu0 %964
        %970 = vrot.lane.b32.xlu0 %v932, 18
        %v971 = vpop.permute.xlu0 %970
        %972 = vrot.lane.b32.xlu0 %v933, 18
        %v973 = vpop.permute.xlu0 %972
        %978 = vrot.lane.b32.xlu0 %v934, 21
        %v979 = vpop.permute.xlu0 %978
        %980 = vrot.lane.b32.xlu0 %v935, 21
        %v981 = vpop.permute.xlu0 %980
        %986 = vrot.lane.b32.xlu0 %v936, 24
        %v987 = vpop.permute.xlu0 %986
        %988 = vrot.lane.b32.xlu0 %v937, 24
        %v989 = vpop.permute.xlu0 %988
        %v992 = vsel %vm522, %v778, %v939
        %v993 = vsel %vm522, %v779, %v941
        %v994 = vsel %vm525, %v992, %v945
        %v995 = vsel %vm525, %v993, %v947
        %v996 = vsel %vm528, %v994, %v951
        %v997 = vsel %vm528, %v995, %v953
        %v998 = vsel %vm531, %v996, %v957
        %v999 = vsel %vm531, %v997, %v959
        %v1000 = vsel %vm534, %v998, %v963
        %v1001 = vsel %vm534, %v999, %v965
        %v1002 = vsel %vm537, %v1000, %v971
        %v1003 = vsel %vm537, %v1001, %v973
        %v1004 = vsel %vm540, %v1002, %v979
        %v1005 = vsel %vm540, %v1003, %v981
        %v1006 = vsel %vm543, %v1004, %v987
        %v1007 = vsel %vm543, %v1005, %v989
        %s1008 = scalar_lea.vmem %s437, 216
        %v1009 = vld [vmem:[%s1008] sm:$0xff]
        %v1010 = vld [vmem:[%s1008 + $0x8] sm:$0xff]
        %v1011 = vld [vmem:[%s1008 + $0x1] sm:$0xff]
        %v1012 = vld [vmem:[%s1008 + $0x9] sm:$0xff]
        %v1013 = vld [vmem:[%s1008 + $0x2] sm:$0xff]
        %v1014 = vld [vmem:[%s1008 + $0xa] sm:$0xff]
        %1015 = vrot.lane.b32.xlu0 %v857, 3
        %v1016 = vpop.permute.xlu0 %1015
        %1017 = vrot.lane.b32.xlu0 %v858, 3
        %v1018 = vpop.permute.xlu0 %1017
        %1021 = vrot.lane.b32.xlu0 %v859, 6
        %v1022 = vpop.permute.xlu0 %1021
        %1023 = vrot.lane.b32.xlu0 %v860, 6
        %v1024 = vpop.permute.xlu0 %1023
        %1027 = vrot.lane.b32.xlu0 %v932, 9
        %v1028 = vpop.permute.xlu0 %1027
        %1029 = vrot.lane.b32.xlu0 %v933, 9
        %v1030 = vpop.permute.xlu0 %1029
        %1033 = vrot.lane.b32.xlu0 %v934, 12
        %v1034 = vpop.permute.xlu0 %1033
        %1035 = vrot.lane.b32.xlu0 %v935, 12
        %v1036 = vpop.permute.xlu0 %1035
        %1039 = vrot.lane.b32.xlu0 %v936, 15
        %v1040 = vpop.permute.xlu0 %1039
        %1041 = vrot.lane.b32.xlu0 %v937, 15
        %v1042 = vpop.permute.xlu0 %1041
        %1047 = vrot.lane.b32.xlu0 %v1009, 18
        %v1048 = vpop.permute.xlu0 %1047
        %1049 = vrot.lane.b32.xlu0 %v1010, 18
        %v1050 = vpop.permute.xlu0 %1049
        %1055 = vrot.lane.b32.xlu0 %v1011, 21
        %v1056 = vpop.permute.xlu0 %1055
        %1057 = vrot.lane.b32.xlu0 %v1012, 21
        %v1058 = vpop.permute.xlu0 %1057
        %1063 = vrot.lane.b32.xlu0 %v1013, 24
        %v1064 = vpop.permute.xlu0 %1063
        %1065 = vrot.lane.b32.xlu0 %v1014, 24
        %v1066 = vpop.permute.xlu0 %1065
        %v1069 = vsel %vm522, %v855, %v1016
        %v1070 = vsel %vm522, %v856, %v1018
        %v1071 = vsel %vm525, %v1069, %v1022
        %v1072 = vsel %vm525, %v1070, %v1024
        %v1073 = vsel %vm528, %v1071, %v1028
        %v1074 = vsel %vm528, %v1072, %v1030
        %v1075 = vsel %vm531, %v1073, %v1034
        %v1076 = vsel %vm531, %v1074, %v1036
        %v1077 = vsel %vm534, %v1075, %v1040
        %v1078 = vsel %vm534, %v1076, %v1042
        %v1079 = vsel %vm537, %v1077, %v1048
        %v1080 = vsel %vm537, %v1078, %v1050
        %v1081 = vsel %vm540, %v1079, %v1056
        %v1082 = vsel %vm540, %v1080, %v1058
        %v1083 = vsel %vm543, %v1081, %v1064
        %v1084 = vsel %vm543, %v1082, %v1066
        %s1085 = scalar_lea.vmem %s437, 240
        %v1086 = vld [vmem:[%s1085] sm:$0xff]
        %v1087 = vld [vmem:[%s1085 + $0x8] sm:$0xff]
        %v1088 = vld [vmem:[%s1085 + $0x1] sm:$0xff]
        %v1089 = vld [vmem:[%s1085 + $0x9] sm:$0xff]
        %v1090 = vld [vmem:[%s1085 + $0x2] sm:$0xff]
        %v1091 = vld [vmem:[%s1085 + $0xa] sm:$0xff]
        %1092 = vrot.lane.b32.xlu0 %v934, 3
        %v1093 = vpop.permute.xlu0 %1092
        %1094 = vrot.lane.b32.xlu0 %v935, 3
        %v1095 = vpop.permute.xlu0 %1094
        %1098 = vrot.lane.b32.xlu0 %v936, 6
        %v1099 = vpop.permute.xlu0 %1098
        %1100 = vrot.lane.b32.xlu0 %v937, 6
        %v1101 = vpop.permute.xlu0 %1100
        %1104 = vrot.lane.b32.xlu0 %v1009, 9
        %v1105 = vpop.permute.xlu0 %1104
        %1106 = vrot.lane.b32.xlu0 %v1010, 9
        %v1107 = vpop.permute.xlu0 %1106
        %1110 = vrot.lane.b32.xlu0 %v1011, 12
        %v1111 = vpop.permute.xlu0 %1110
        %1112 = vrot.lane.b32.xlu0 %v1012, 12
        %v1113 = vpop.permute.xlu0 %1112
        %1116 = vrot.lane.b32.xlu0 %v1013, 15
        %v1117 = vpop.permute.xlu0 %1116
        %1118 = vrot.lane.b32.xlu0 %v1014, 15
        %v1119 = vpop.permute.xlu0 %1118
        %1124 = vrot.lane.b32.xlu0 %v1086, 18
        %v1125 = vpop.permute.xlu0 %1124
        %1126 = vrot.lane.b32.xlu0 %v1087, 18
        %v1127 = vpop.permute.xlu0 %1126
        %1132 = vrot.lane.b32.xlu0 %v1088, 21
        %v1133 = vpop.permute.xlu0 %1132
        %1134 = vrot.lane.b32.xlu0 %v1089, 21
        %v1135 = vpop.permute.xlu0 %1134
        %1140 = vrot.lane.b32.xlu0 %v1090, 24
        %v1141 = vpop.permute.xlu0 %1140
        %1142 = vrot.lane.b32.xlu0 %v1091, 24
        %v1143 = vpop.permute.xlu0 %1142
        %v1146 = vsel %vm522, %v932, %v1093
        %v1147 = vsel %vm522, %v933, %v1095
        %v1148 = vsel %vm525, %v1146, %v1099
        %v1149 = vsel %vm525, %v1147, %v1101
        %v1150 = vsel %vm528, %v1148, %v1105
        %v1151 = vsel %vm528, %v1149, %v1107
        %v1152 = vsel %vm531, %v1150, %v1111
        %v1153 = vsel %vm531, %v1151, %v1113
        %v1154 = vsel %vm534, %v1152, %v1117
        %v1155 = vsel %vm534, %v1153, %v1119
        %v1156 = vsel %vm537, %v1154, %v1125
        %v1157 = vsel %vm537, %v1155, %v1127
        %v1158 = vsel %vm540, %v1156, %v1133
        %v1159 = vsel %vm540, %v1157, %v1135
        %v1160 = vsel %vm543, %v1158, %v1141
        %v1161 = vsel %vm543, %v1159, %v1143
        %s1162 = scalar_lea.vmem %s437, 264
        %v1163 = vld [vmem:[%s1162] sm:$0xff]
        %v1164 = vld [vmem:[%s1162 + $0x8] sm:$0xff]
        %v1165 = vld [vmem:[%s1162 + $0x1] sm:$0xff]
        %v1166 = vld [vmem:[%s1162 + $0x9] sm:$0xff]
        %v1167 = vld [vmem:[%s1162 + $0x2] sm:$0xff]
        %v1168 = vld [vmem:[%s1162 + $0xa] sm:$0xff]
        %1169 = vrot.lane.b32.xlu0 %v1011, 3
        %v1170 = vpop.permute.xlu0 %1169
        %1171 = vrot.lane.b32.xlu0 %v1012, 3
        %v1172 = vpop.permute.xlu0 %1171
        %1175 = vrot.lane.b32.xlu0 %v1013, 6
        %v1176 = vpop.permute.xlu0 %1175
        %1177 = vrot.lane.b32.xlu0 %v1014, 6
        %v1178 = vpop.permute.xlu0 %1177
        %1181 = vrot.lane.b32.xlu0 %v1086, 9
        %v1182 = vpop.permute.xlu0 %1181
        %1183 = vrot.lane.b32.xlu0 %v1087, 9
        %v1184 = vpop.permute.xlu0 %1183
        %1187 = vrot.lane.b32.xlu0 %v1088, 12
        %v1188 = vpop.permute.xlu0 %1187
        %1189 = vrot.lane.b32.xlu0 %v1089, 12
        %v1190 = vpop.permute.xlu0 %1189
        %1193 = vrot.lane.b32.xlu0 %v1090, 15
        %v1194 = vpop.permute.xlu0 %1193
        %1195 = vrot.lane.b32.xlu0 %v1091, 15
        %v1196 = vpop.permute.xlu0 %1195
        %1201 = vrot.lane.b32.xlu0 %v1163, 18
        %v1202 = vpop.permute.xlu0 %1201
        %1203 = vrot.lane.b32.xlu0 %v1164, 18
        %v1204 = vpop.permute.xlu0 %1203
        %1209 = vrot.lane.b32.xlu0 %v1165, 21
        %v1210 = vpop.permute.xlu0 %1209
        %1211 = vrot.lane.b32.xlu0 %v1166, 21
        %v1212 = vpop.permute.xlu0 %1211
        %1217 = vrot.lane.b32.xlu0 %v1167, 24
        %v1218 = vpop.permute.xlu0 %1217
        %1219 = vrot.lane.b32.xlu0 %v1168, 24
        %v1220 = vpop.permute.xlu0 %1219
        %v1223 = vsel %vm522, %v1009, %v1170
        %v1224 = vsel %vm522, %v1010, %v1172
        %v1225 = vsel %vm525, %v1223, %v1176
        %v1226 = vsel %vm525, %v1224, %v1178
        %v1227 = vsel %vm528, %v1225, %v1182
        %v1228 = vsel %vm528, %v1226, %v1184
        %v1229 = vsel %vm531, %v1227, %v1188
        %v1230 = vsel %vm531, %v1228, %v1190
        %v1231 = vsel %vm534, %v1229, %v1194
        %v1232 = vsel %vm534, %v1230, %v1196
        %v1233 = vsel %vm537, %v1231, %v1202
        %v1234 = vsel %vm537, %v1232, %v1204
        %v1235 = vsel %vm540, %v1233, %v1210
        %v1236 = vsel %vm540, %v1234, %v1212
        %v1237 = vsel %vm543, %v1235, %v1218
        %v1238 = vsel %vm543, %v1236, %v1220
        %s1239 = scalar_lea.vmem %s437, 288
        %v1240 = vld [vmem:[%s1239] sm:$0xff]
        %v1241 = vld [vmem:[%s1239 + $0x8] sm:$0xff]
        %v1242 = vld [vmem:[%s1239 + $0x1] sm:$0xff]
        %v1243 = vld [vmem:[%s1239 + $0x9] sm:$0xff]
        %v1244 = vld [vmem:[%s1239 + $0x2] sm:$0xff]
        %v1245 = vld [vmem:[%s1239 + $0xa] sm:$0xff]
        %1246 = vrot.lane.b32.xlu0 %v1088, 3
        %v1247 = vpop.permute.xlu0 %1246
        %1248 = vrot.lane.b32.xlu0 %v1089, 3
        %v1249 = vpop.permute.xlu0 %1248
        %1252 = vrot.lane.b32.xlu0 %v1090, 6
        %v1253 = vpop.permute.xlu0 %1252
        %1254 = vrot.lane.b32.xlu0 %v1091, 6
        %v1255 = vpop.permute.xlu0 %1254
        %1258 = vrot.lane.b32.xlu0 %v1163, 9
        %v1259 = vpop.permute.xlu0 %1258
        %1260 = vrot.lane.b32.xlu0 %v1164, 9
        %v1261 = vpop.permute.xlu0 %1260
        %1264 = vrot.lane.b32.xlu0 %v1165, 12
        %v1265 = vpop.permute.xlu0 %1264
        %1266 = vrot.lane.b32.xlu0 %v1166, 12
        %v1267 = vpop.permute.xlu0 %1266
        %1270 = vrot.lane.b32.xlu0 %v1167, 15
        %v1271 = vpop.permute.xlu0 %1270
        %1272 = vrot.lane.b32.xlu0 %v1168, 15
        %v1273 = vpop.permute.xlu0 %1272
        %1278 = vrot.lane.b32.xlu0 %v1240, 18
        %v1279 = vpop.permute.xlu0 %1278
        %1280 = vrot.lane.b32.xlu0 %v1241, 18
        %v1281 = vpop.permute.xlu0 %1280
        %1286 = vrot.lane.b32.xlu0 %v1242, 21
        %v1287 = vpop.permute.xlu0 %1286
        %1288 = vrot.lane.b32.xlu0 %v1243, 21
        %v1289 = vpop.permute.xlu0 %1288
        %1294 = vrot.lane.b32.xlu0 %v1244, 24
        %v1295 = vpop.permute.xlu0 %1294
        %1296 = vrot.lane.b32.xlu0 %v1245, 24
        %v1297 = vpop.permute.xlu0 %1296
        %v1300 = vsel %vm522, %v1086, %v1247
        %v1301 = vsel %vm522, %v1087, %v1249
        %v1302 = vsel %vm525, %v1300, %v1253
        %v1303 = vsel %vm525, %v1301, %v1255
        %v1304 = vsel %vm528, %v1302, %v1259
        %v1305 = vsel %vm528, %v1303, %v1261
        %v1306 = vsel %vm531, %v1304, %v1265
        %v1307 = vsel %vm531, %v1305, %v1267
        %v1308 = vsel %vm534, %v1306, %v1271
        %v1309 = vsel %vm534, %v1307, %v1273
        %v1310 = vsel %vm537, %v1308, %v1279
        %v1311 = vsel %vm537, %v1309, %v1281
        %v1312 = vsel %vm540, %v1310, %v1287
        %v1313 = vsel %vm540, %v1311, %v1289
        %v1314 = vsel %vm543, %v1312, %v1295
        %v1315 = vsel %vm543, %v1313, %v1297
        %s1316 = scalar_lea.vmem %s437, 312
        %v1317 = vld [vmem:[%s1316] sm:$0xff]
        %v1318 = vld [vmem:[%s1316 + $0x8] sm:$0xff]
        %v1319 = vld [vmem:[%s1316 + $0x1] sm:$0xff]
        %v1320 = vld [vmem:[%s1316 + $0x9] sm:$0xff]
        %v1321 = vld [vmem:[%s1316 + $0x2] sm:$0xff]
        %v1322 = vld [vmem:[%s1316 + $0xa] sm:$0xff]
        %1323 = vrot.lane.b32.xlu0 %v1165, 3
        %v1324 = vpop.permute.xlu0 %1323
        %1325 = vrot.lane.b32.xlu0 %v1166, 3
        %v1326 = vpop.permute.xlu0 %1325
        %1329 = vrot.lane.b32.xlu0 %v1167, 6
        %v1330 = vpop.permute.xlu0 %1329
        %1331 = vrot.lane.b32.xlu0 %v1168, 6
        %v1332 = vpop.permute.xlu0 %1331
        %1335 = vrot.lane.b32.xlu0 %v1240, 9
        %v1336 = vpop.permute.xlu0 %1335
        %1337 = vrot.lane.b32.xlu0 %v1241, 9
        %v1338 = vpop.permute.xlu0 %1337
        %1341 = vrot.lane.b32.xlu0 %v1242, 12
        %v1342 = vpop.permute.xlu0 %1341
        %1343 = vrot.lane.b32.xlu0 %v1243, 12
        %v1344 = vpop.permute.xlu0 %1343
        %1347 = vrot.lane.b32.xlu0 %v1244, 15
        %v1348 = vpop.permute.xlu0 %1347
        %1349 = vrot.lane.b32.xlu0 %v1245, 15
        %v1350 = vpop.permute.xlu0 %1349
        %1355 = vrot.lane.b32.xlu0 %v1317, 18
        %v1356 = vpop.permute.xlu0 %1355
        %1357 = vrot.lane.b32.xlu0 %v1318, 18
        %v1358 = vpop.permute.xlu0 %1357
        %1363 = vrot.lane.b32.xlu0 %v1319, 21
        %v1364 = vpop.permute.xlu0 %1363
        %1365 = vrot.lane.b32.xlu0 %v1320, 21
        %v1366 = vpop.permute.xlu0 %1365
        %1371 = vrot.lane.b32.xlu0 %v1321, 24
        %v1372 = vpop.permute.xlu0 %1371
        %1373 = vrot.lane.b32.xlu0 %v1322, 24
        %v1374 = vpop.permute.xlu0 %1373
        %v1377 = vsel %vm522, %v1163, %v1324
        %v1378 = vsel %vm522, %v1164, %v1326
        %v1379 = vsel %vm525, %v1377, %v1330
        %v1380 = vsel %vm525, %v1378, %v1332
        %v1381 = vsel %vm528, %v1379, %v1336
        %v1382 = vsel %vm528, %v1380, %v1338
        %v1383 = vsel %vm531, %v1381, %v1342
        %v1384 = vsel %vm531, %v1382, %v1344
        %v1385 = vsel %vm534, %v1383, %v1348
        %v1386 = vsel %vm534, %v1384, %v1350
        %v1387 = vsel %vm537, %v1385, %v1356
        %v1388 = vsel %vm537, %v1386, %v1358
        %v1389 = vsel %vm540, %v1387, %v1364
        %v1390 = vsel %vm540, %v1388, %v1366
        %v1391 = vsel %vm543, %v1389, %v1372
        %v1392 = vsel %vm543, %v1390, %v1374
        %s1393 = scalar_lea.vmem %s437, 336
        %v1394 = vld [vmem:[%s1393] sm:$0xff]
        %v1395 = vld [vmem:[%s1393 + $0x8] sm:$0xff]
        %v1396 = vld [vmem:[%s1393 + $0x1] sm:$0xff]
        %v1397 = vld [vmem:[%s1393 + $0x9] sm:$0xff]
        %v1398 = vld [vmem:[%s1393 + $0x2] sm:$0xff]
        %v1399 = vld [vmem:[%s1393 + $0xa] sm:$0xff]
        %1400 = vrot.lane.b32.xlu0 %v1242, 3
        %v1401 = vpop.permute.xlu0 %1400
        %1402 = vrot.lane.b32.xlu0 %v1243, 3
        %v1403 = vpop.permute.xlu0 %1402
        %1406 = vrot.lane.b32.xlu0 %v1244, 6
        %v1407 = vpop.permute.xlu0 %1406
        %1408 = vrot.lane.b32.xlu0 %v1245, 6
        %v1409 = vpop.permute.xlu0 %1408
        %1412 = vrot.lane.b32.xlu0 %v1317, 9
        %v1413 = vpop.permute.xlu0 %1412
        %1414 = vrot.lane.b32.xlu0 %v1318, 9
        %v1415 = vpop.permute.xlu0 %1414
        %1418 = vrot.lane.b32.xlu0 %v1319, 12
        %v1419 = vpop.permute.xlu0 %1418
        %1420 = vrot.lane.b32.xlu0 %v1320, 12
        %v1421 = vpop.permute.xlu0 %1420
        %1424 = vrot.lane.b32.xlu0 %v1321, 15
        %v1425 = vpop.permute.xlu0 %1424
        %1426 = vrot.lane.b32.xlu0 %v1322, 15
        %v1427 = vpop.permute.xlu0 %1426
        %1432 = vrot.lane.b32.xlu0 %v1394, 18
        %v1433 = vpop.permute.xlu0 %1432
        %1434 = vrot.lane.b32.xlu0 %v1395, 18
        %v1435 = vpop.permute.xlu0 %1434
        %1440 = vrot.lane.b32.xlu0 %v1396, 21
        %v1441 = vpop.permute.xlu0 %1440
        %1442 = vrot.lane.b32.xlu0 %v1397, 21
        %v1443 = vpop.permute.xlu0 %1442
        %1448 = vrot.lane.b32.xlu0 %v1398, 24
        %v1449 = vpop.permute.xlu0 %1448
        %1450 = vrot.lane.b32.xlu0 %v1399, 24
        %v1451 = vpop.permute.xlu0 %1450
        %v1454 = vsel %vm522, %v1240, %v1401
        %v1455 = vsel %vm522, %v1241, %v1403
        %v1456 = vsel %vm525, %v1454, %v1407
        %v1457 = vsel %vm525, %v1455, %v1409
        %v1458 = vsel %vm528, %v1456, %v1413
        %v1459 = vsel %vm528, %v1457, %v1415
        %v1460 = vsel %vm531, %v1458, %v1419
        %v1461 = vsel %vm531, %v1459, %v1421
        %v1462 = vsel %vm534, %v1460, %v1425
        %v1463 = vsel %vm534, %v1461, %v1427
        %v1464 = vsel %vm537, %v1462, %v1433
        %v1465 = vsel %vm537, %v1463, %v1435
        %v1466 = vsel %vm540, %v1464, %v1441
        %v1467 = vsel %vm540, %v1465, %v1443
        %v1468 = vsel %vm543, %v1466, %v1449
        %v1469 = vsel %vm543, %v1467, %v1451
        %s1470 = scalar_lea.vmem %s437, 360
        %v1471 = vld [vmem:[%s1470] sm:$0xff]
        %v1472 = vld [vmem:[%s1470 + $0x8] sm:$0xff]
        %v1473 = vld [vmem:[%s1470 + $0x1] sm:$0xff]
        %v1474 = vld [vmem:[%s1470 + $0x9] sm:$0xff]
        %v1475 = vld [vmem:[%s1470 + $0x2] sm:$0xff]
        %v1476 = vld [vmem:[%s1470 + $0xa] sm:$0xff]
        %1477 = vrot.lane.b32.xlu0 %v1319, 3
        %v1478 = vpop.permute.xlu0 %1477
        %1479 = vrot.lane.b32.xlu0 %v1320, 3
        %v1480 = vpop.permute.xlu0 %1479
        %1483 = vrot.lane.b32.xlu0 %v1321, 6
        %v1484 = vpop.permute.xlu0 %1483
        %1485 = vrot.lane.b32.xlu0 %v1322, 6
        %v1486 = vpop.permute.xlu0 %1485
        %1489 = vrot.lane.b32.xlu0 %v1394, 9
        %v1490 = vpop.permute.xlu0 %1489
        %1491 = vrot.lane.b32.xlu0 %v1395, 9
        %v1492 = vpop.permute.xlu0 %1491
        %1495 = vrot.lane.b32.xlu0 %v1396, 12
        %v1496 = vpop.permute.xlu0 %1495
        %1497 = vrot.lane.b32.xlu0 %v1397, 12
        %v1498 = vpop.permute.xlu0 %1497
        %1501 = vrot.lane.b32.xlu0 %v1398, 15
        %v1502 = vpop.permute.xlu0 %1501
        %1503 = vrot.lane.b32.xlu0 %v1399, 15
        %v1504 = vpop.permute.xlu0 %1503
        %1509 = vrot.lane.b32.xlu0 %v1471, 18
        %v1510 = vpop.permute.xlu0 %1509
        %1511 = vrot.lane.b32.xlu0 %v1472, 18
        %v1512 = vpop.permute.xlu0 %1511
        %1517 = vrot.lane.b32.xlu0 %v1473, 21
        %v1518 = vpop.permute.xlu0 %1517
        %1519 = vrot.lane.b32.xlu0 %v1474, 21
        %v1520 = vpop.permute.xlu0 %1519
        %1525 = vrot.lane.b32.xlu0 %v1475, 24
        %v1526 = vpop.permute.xlu0 %1525
        %1527 = vrot.lane.b32.xlu0 %v1476, 24
        %v1528 = vpop.permute.xlu0 %1527
        %v1531 = vsel %vm522, %v1317, %v1478
        %v1532 = vsel %vm522, %v1318, %v1480
        %v1533 = vsel %vm525, %v1531, %v1484
        %v1534 = vsel %vm525, %v1532, %v1486
        %v1535 = vsel %vm528, %v1533, %v1490
        %v1536 = vsel %vm528, %v1534, %v1492
        %v1537 = vsel %vm531, %v1535, %v1496
        %v1538 = vsel %vm531, %v1536, %v1498
        %v1539 = vsel %vm534, %v1537, %v1502
        %v1540 = vsel %vm534, %v1538, %v1504
        %v1541 = vsel %vm537, %v1539, %v1510
        %v1542 = vsel %vm537, %v1540, %v1512
        %v1543 = vsel %vm540, %v1541, %v1518
        %v1544 = vsel %vm540, %v1542, %v1520
        %v1545 = vsel %vm543, %v1543, %v1526
        %v1546 = vsel %vm543, %v1544, %v1528
        %s1547 = scalar_lea.vmem %s437, 384
        %v1548 = vld [vmem:[%s1547] sm:$0xff]
        %v1549 = vld [vmem:[%s1547 + $0x8] sm:$0xff]
        %v1550 = vld [vmem:[%s1547 + $0x1] sm:$0xff]
        %v1551 = vld [vmem:[%s1547 + $0x9] sm:$0xff]
        %v1552 = vld [vmem:[%s1547 + $0x2] sm:$0xff]
        %v1553 = vld [vmem:[%s1547 + $0xa] sm:$0xff]
        %1554 = vrot.lane.b32.xlu0 %v1396, 3
        %v1555 = vpop.permute.xlu0 %1554
        %1556 = vrot.lane.b32.xlu0 %v1397, 3
        %v1557 = vpop.permute.xlu0 %1556
        %1560 = vrot.lane.b32.xlu0 %v1398, 6
        %v1561 = vpop.permute.xlu0 %1560
        %1562 = vrot.lane.b32.xlu0 %v1399, 6
        %v1563 = vpop.permute.xlu0 %1562
        %1566 = vrot.lane.b32.xlu0 %v1471, 9
        %v1567 = vpop.permute.xlu0 %1566
        %1568 = vrot.lane.b32.xlu0 %v1472, 9
        %v1569 = vpop.permute.xlu0 %1568
        %1572 = vrot.lane.b32.xlu0 %v1473, 12
        %v1573 = vpop.permute.xlu0 %1572
        %1574 = vrot.lane.b32.xlu0 %v1474, 12
        %v1575 = vpop.permute.xlu0 %1574
        %1578 = vrot.lane.b32.xlu0 %v1475, 15
        %v1579 = vpop.permute.xlu0 %1578
        %1580 = vrot.lane.b32.xlu0 %v1476, 15
        %v1581 = vpop.permute.xlu0 %1580
        %1586 = vrot.lane.b32.xlu0 %v1548, 18
        %v1587 = vpop.permute.xlu0 %1586
        %1588 = vrot.lane.b32.xlu0 %v1549, 18
        %v1589 = vpop.permute.xlu0 %1588
        %1594 = vrot.lane.b32.xlu0 %v1550, 21
        %v1595 = vpop.permute.xlu0 %1594
        %1596 = vrot.lane.b32.xlu0 %v1551, 21
        %v1597 = vpop.permute.xlu0 %1596
        %1602 = vrot.lane.b32.xlu0 %v1552, 24
        %v1603 = vpop.permute.xlu0 %1602
        %1604 = vrot.lane.b32.xlu0 %v1553, 24
        %v1605 = vpop.permute.xlu0 %1604
        %v1608 = vsel %vm522, %v1394, %v1555
        %v1609 = vsel %vm522, %v1395, %v1557
        %v1610 = vsel %vm525, %v1608, %v1561
        %v1611 = vsel %vm525, %v1609, %v1563
        %v1612 = vsel %vm528, %v1610, %v1567
        %v1613 = vsel %vm528, %v1611, %v1569
        %v1614 = vsel %vm531, %v1612, %v1573
        %v1615 = vsel %vm531, %v1613, %v1575
        %v1616 = vsel %vm534, %v1614, %v1579
        %v1617 = vsel %vm534, %v1615, %v1581
        %v1618 = vsel %vm537, %v1616, %v1587
        %v1619 = vsel %vm537, %v1617, %v1589
        %v1620 = vsel %vm540, %v1618, %v1595
        %v1621 = vsel %vm540, %v1619, %v1597
        %v1622 = vsel %vm543, %v1620, %v1603
        %v1623 = vsel %vm543, %v1621, %v1605
        %s1624 = scalar_lea.vmem %s437, 408
        %v1625 = vld [vmem:[%s1624] sm:$0xff]
        %v1626 = vld [vmem:[%s1624 + $0x8] sm:$0xff]
        %v1627 = vld [vmem:[%s1624 + $0x1] sm:$0xff]
        %v1628 = vld [vmem:[%s1624 + $0x9] sm:$0xff]
        %v1629 = vld [vmem:[%s1624 + $0x2] sm:$0xff]
        %v1630 = vld [vmem:[%s1624 + $0xa] sm:$0xff]
        %1631 = vrot.lane.b32.xlu0 %v1473, 3
        %v1632 = vpop.permute.xlu0 %1631
        %1633 = vrot.lane.b32.xlu0 %v1474, 3
        %v1634 = vpop.permute.xlu0 %1633
        %1637 = vrot.lane.b32.xlu0 %v1475, 6
        %v1638 = vpop.permute.xlu0 %1637
        %1639 = vrot.lane.b32.xlu0 %v1476, 6
        %v1640 = vpop.permute.xlu0 %1639
        %1643 = vrot.lane.b32.xlu0 %v1548, 9
        %v1644 = vpop.permute.xlu0 %1643
        %1645 = vrot.lane.b32.xlu0 %v1549, 9
        %v1646 = vpop.permute.xlu0 %1645
        %1649 = vrot.lane.b32.xlu0 %v1550, 12
        %v1650 = vpop.permute.xlu0 %1649
        %1651 = vrot.lane.b32.xlu0 %v1551, 12
        %v1652 = vpop.permute.xlu0 %1651
        %1655 = vrot.lane.b32.xlu0 %v1552, 15
        %v1656 = vpop.permute.xlu0 %1655
        %1657 = vrot.lane.b32.xlu0 %v1553, 15
        %v1658 = vpop.permute.xlu0 %1657
        %1663 = vrot.lane.b32.xlu0 %v1625, 18
        %v1664 = vpop.permute.xlu0 %1663
        %1665 = vrot.lane.b32.xlu0 %v1626, 18
        %v1666 = vpop.permute.xlu0 %1665
        %1671 = vrot.lane.b32.xlu0 %v1627, 21
        %v1672 = vpop.permute.xlu0 %1671
        %1673 = vrot.lane.b32.xlu0 %v1628, 21
        %v1674 = vpop.permute.xlu0 %1673
        %1679 = vrot.lane.b32.xlu0 %v1629, 24
        %v1680 = vpop.permute.xlu0 %1679
        %1681 = vrot.lane.b32.xlu0 %v1630, 24
        %v1682 = vpop.permute.xlu0 %1681
        %v1685 = vsel %vm522, %v1471, %v1632
        %v1686 = vsel %vm522, %v1472, %v1634
        %v1687 = vsel %vm525, %v1685, %v1638
        %v1688 = vsel %vm525, %v1686, %v1640
        %v1689 = vsel %vm528, %v1687, %v1644
        %v1690 = vsel %vm528, %v1688, %v1646
        %v1691 = vsel %vm531, %v1689, %v1650
        %v1692 = vsel %vm531, %v1690, %v1652
        %v1693 = vsel %vm534, %v1691, %v1656
        %v1694 = vsel %vm534, %v1692, %v1658
        %v1695 = vsel %vm537, %v1693, %v1664
        %v1696 = vsel %vm537, %v1694, %v1666
        %v1697 = vsel %vm540, %v1695, %v1672
        %v1698 = vsel %vm540, %v1696, %v1674
        %v1699 = vsel %vm543, %v1697, %v1680
        %v1700 = vsel %vm543, %v1698, %v1682
        %v1701 = vld [vmem:[%s3] sm:$0xff]
        %v1702 = vld [vmem:[%s3 + $0x8] sm:$0xff]
        %v1703 = vld [vmem:[%s3 + $0x10] sm:$0xff]
        %v1704 = vld [vmem:[%s3 + $0x18] sm:$0x7]
        %v1705 = vld [vmem:[%s4] sm:$0x1]
        %v1707 = vlaneseq
        %v1708 = vshrl.u32 %v1707, 7
        %v1709 = vsub.s32 0, %v1708
        %v1710 = vrot.slane %v1705, %v1709
        %vm1712 = vcmask 220160
        %v1714 = vsel %vm1712, %v544, 0
        %v1717 = vsel %vm1712, %v545, 0
        %v1720 = vsel %vm1712, %v621, 0
        %v1723 = vsel %vm1712, %v622, 0
        %v1726 = vsel %vm1712, %v698, 0
        %v1729 = vsel %vm1712, %v699, 0
        %v1732 = vsel %vm1712, %v775, 0
        %v1735 = vsel %vm1712, %v776, 0
        %v1738 = vsel %vm1712, %v852, 0
        %v1741 = vsel %vm1712, %v853, 0
        %v1744 = vsel %vm1712, %v929, 0
        %v1747 = vsel %vm1712, %v930, 0
        %v1750 = vsel %vm1712, %v1006, 0
        %v1753 = vsel %vm1712, %v1007, 0
        %v1756 = vsel %vm1712, %v1083, 0
        %v1759 = vsel %vm1712, %v1084, 0
        %v1762 = vsel %vm1712, %v1160, 0
        %v1765 = vsel %vm1712, %v1161, 0
        %v1768 = vsel %vm1712, %v1237, 0
        %v1771 = vsel %vm1712, %v1238, 0
        %v1774 = vsel %vm1712, %v1314, 0
        %v1777 = vsel %vm1712, %v1315, 0
        %v1780 = vsel %vm1712, %v1391, 0
        %v1783 = vsel %vm1712, %v1392, 0
        %v1786 = vsel %vm1712, %v1468, 0
        %v1789 = vsel %vm1712, %v1469, 0
        %v1792 = vsel %vm1712, %v1545, 0
        %v1795 = vsel %vm1712, %v1546, 0
        %v1798 = vsel %vm1712, %v1622, 0
        %v1801 = vsel %vm1712, %v1623, 0
        %v1804 = vsel %vm1712, %v1699, 0
        %v1807 = vsel %vm1712, %v1700, 0
        %vm1809 = vcmask 1042432
        %v1811 = vsel %vm1809, %v1704, 0
        %1813 = vmatprep.subr.mxu0 0.0
        %1814 = vmatpush1.msra.mxu0 %v1701
        %1815 = vmatprep.subr.mxu0 0.0
        %1816 = vmatpush1.msra.mxu0 %v1702
        %1817 = vmatprep.subr.mxu0 0.0
        %1818 = vmatpush1.msra.mxu0 %v1703
        %1819 = vmatprep.subr.mxu0 0.0
        %1820 = vmatpush1.msra.mxu0 %v1811
        %1821 = vmatprep.subr.mxu0 0.0
        %1822 = vmatpush1.msra.mxu0 0.0
        %1823 = vmatprep.subr.mxu0 0.0
        %1824 = vmatpush1.msra.mxu0 0.0
        %1825 = vmatprep.subr.mxu0 0.0
        %1826 = vmatpush1.msra.mxu0 0.0
        %1827 = vmatprep.subr.mxu0 0.0
        %1828 = vmatpush1.msra.mxu0 0.0
        %1829 = vmatprep.subr.mxu0 0.0
        %1830 = vmatpush1.msra.mxu0 0.0
        %1831 = vmatprep.subr.mxu0 0.0
        %1832 = vmatpush1.msra.mxu0 0.0
        %1833 = vmatprep.subr.mxu0 0.0
        %1834 = vmatpush1.msra.mxu0 0.0
        %1835 = vmatprep.subr.mxu0 0.0
        %1836 = vmatpush1.msra.mxu0 0.0
        %1837 = vmatprep.subr.mxu0 0.0
        %1838 = vmatpush1.msra.mxu0 0.0
        %1839 = vmatprep.subr.mxu0 0.0
        %1840 = vmatpush1.msra.mxu0 0.0
        %1841 = vmatprep.subr.mxu0 0.0
        %1842 = vmatpush1.msra.mxu0 0.0
        %1843 = vmatprep.subr.mxu0 0.0
        %1844 = vmatpush1.msra.mxu0 0.0
        %1845 = vmatprep.subr.mxu0 0.0
        %1846 = vmatpush1.msra.mxu0 0.0
        %1847 = vmatprep.subr.mxu0 0.0
        %1848 = vmatpush1.msra.mxu0 0.0
        %1849 = vmatprep.subr.mxu0 0.0
        %1850 = vmatpush1.msra.mxu0 0.0
        %1851 = vmatprep.subr.mxu0 0.0
        %1852 = vmatpush1.msra.mxu0 0.0
        %1853 = vmatprep.subr.mxu0 0.0
        %1854 = vmatpush1.msra.mxu0 0.0
        %1855 = vmatprep.subr.mxu0 0.0
        %1856 = vmatpush1.msra.mxu0 0.0
        %1857 = vmatprep.subr.mxu0 0.0
        %1858 = vmatpush1.msra.mxu0 0.0
        %1859 = vmatprep.subr.mxu0 0.0
        %1860 = vmatpush1.msra.mxu0 0.0
        %1861 = vmatprep.subr.mxu0 0.0
        %1862 = vmatpush1.msra.mxu0 0.0
        %1863 = vmatprep.subr.mxu0 0.0
        %1864 = vmatpush1.msra.mxu0 0.0
        %1865 = vmatprep.subr.mxu0 0.0
        %1866 = vmatpush1.msra.mxu0 0.0
        %1867 = vmatprep.subr.mxu0 0.0
        %1868 = vmatpush1.msra.mxu0 0.0
        %1869 = vmatprep.subr.mxu0 0.0
        %1870 = vmatpush1.msra.mxu0 0.0
        %1871 = vmatprep.subr.mxu0 0.0
        %1872 = vmatpush1.msra.mxu0 0.0
        %1873 = vmatprep.subr.mxu0 0.0
        %1874 = vmatpush1.msra.mxu0 0.0
        %1875 = vmatprep.subr.mxu0 0.0
        %1876 = vmatpush1.msra.mxu0 0.0
        %1877 = vmatprep.mubr.f32.mxu0 0.0
        %1878 = vmatmul.mubr.f32.gmra.mrb[0].mxu0 %v1714
        %v1879 = vpop.f32.mrb[0].mxu0
        %v1880 = vadd.f32 %v1710, %v1879
        %v1881 = vpop.f32.mrb[0].mxu0
        %1882 = vmatprep.mubr.f32.mxu0 0.0
        %1883 = vmatmul.mubr.f32.gmra.mrb[0].mxu0 %v1717
        %v1884 = vpop.f32.mrb[0].mxu0
        %v1885 = vadd.f32 %v1710, %v1884
        %v1886 = vpop.f32.mrb[0].mxu0
        %1887 = vmatprep.mubr.f32.mxu0 0.0
        %1888 = vmatmul.mubr.f32.gmra.mrb[0].mxu0 %v1720
        %v1889 = vpop.f32.mrb[0].mxu0
        %v1890 = vadd.f32 %v1710, %v1889
        %v1891 = vpop.f32.mrb[0].mxu0
        %1892 = vmatprep.mubr.f32.mxu0 0.0
        %1893 = vmatmul.mubr.f32.gmra.mrb[0].mxu0 %v1723
        %v1894 = vpop.f32.mrb[0].mxu0
        %v1895 = vadd.f32 %v1710, %v1894
        %v1896 = vpop.f32.mrb[0].mxu0
        %1897 = vmatprep.mubr.f32.mxu0 0.0
        %1898 = vmatmul.mubr.f32.gmra.mrb[0].mxu0 %v1726
        %v1899 = vpop.f32.mrb[0].mxu0
        %v1900 = vadd.f32 %v1710, %v1899
        %v1901 = vpop.f32.mrb[0].mxu0
        %1902 = vmatprep.mubr.f32.mxu0 0.0
        %1903 = vmatmul.mubr.f32.gmra.mrb[0].mxu0 %v1729
        %v1904 = vpop.f32.mrb[0].mxu0
        %v1905 = vadd.f32 %v1710, %v1904
        %v1906 = vpop.f32.mrb[0].mxu0
        %1907 = vmatprep.mubr.f32.mxu0 0.0
        %1908 = vmatmul.mubr.f32.gmra.mrb[0].mxu0 %v1732
        %v1909 = vpop.f32.mrb[0].mxu0
        %v1910 = vadd.f32 %v1710, %v1909
        %v1911 = vpop.f32.mrb[0].mxu0
        %1912 = vmatprep.mubr.f32.mxu0 0.0
        %1913 = vmatmul.mubr.f32.gmra.mrb[0].mxu0 %v1735
        %v1914 = vpop.f32.mrb[0].mxu0
        %v1915 = vadd.f32 %v1710, %v1914
        %v1916 = vpop.f32.mrb[0].mxu0
        %1917 = vmatprep.mubr.f32.mxu0 0.0
        %1918 = vmatmul.mubr.f32.gmra.mrb[0].mxu0 %v1738
        %v1919 = vpop.f32.mrb[0].mxu0
        %v1920 = vadd.f32 %v1710, %v1919
        %v1921 = vpop.f32.mrb[0].mxu0
        %1922 = vmatprep.mubr.f32.mxu0 0.0
        %1923 = vmatmul.mubr.f32.gmra.mrb[0].mxu0 %v1741
        %v1924 = vpop.f32.mrb[0].mxu0
        %v1925 = vadd.f32 %v1710, %v1924
        %v1926 = vpop.f32.mrb[0].mxu0
        %1927 = vmatprep.mubr.f32.mxu0 0.0
        %1928 = vmatmul.mubr.f32.gmra.mrb[0].mxu0 %v1744
        %v1929 = vpop.f32.mrb[0].mxu0
        %v1930 = vadd.f32 %v1710, %v1929
        %v1931 = vpop.f32.mrb[0].mxu0
        %1932 = vmatprep.mubr.f32.mxu0 0.0
        %1933 = vmatmul.mubr.f32.gmra.mrb[0].mxu0 %v1747
        %v1934 = vpop.f32.mrb[0].mxu0
        %v1935 = vadd.f32 %v1710, %v1934
        %v1936 = vpop.f32.mrb[0].mxu0
        %1937 = vmatprep.mubr.f32.mxu0 0.0
        %1938 = vmatmul.mubr.f32.gmra.mrb[0].mxu0 %v1750
        %v1939 = vpop.f32.mrb[0].mxu0
        %v1940 = vadd.f32 %v1710, %v1939
        %v1941 = vpop.f32.mrb[0].mxu0
        %1942 = vmatprep.mubr.f32.mxu0 0.0
        %1943 = vmatmul.mubr.f32.gmra.mrb[0].mxu0 %v1753
        %v1944 = vpop.f32.mrb[0].mxu0
        %v1945 = vadd.f32 %v1710, %v1944
        %v1946 = vpop.f32.mrb[0].mxu0
        %1947 = vmatprep.mubr.f32.mxu0 0.0
        %1948 = vmatmul.mubr.f32.gmra.mrb[0].mxu0 %v1756
        %v1949 = vpop.f32.mrb[0].mxu0
        %v1950 = vadd.f32 %v1710, %v1949
        %v1951 = vpop.f32.mrb[0].mxu0
        %1952 = vmatprep.mubr.f32.mxu0 0.0
        %1953 = vmatmul.mubr.f32.gmra.mrb[0].mxu0 %v1759
        %v1954 = vpop.f32.mrb[0].mxu0
        %v1955 = vadd.f32 %v1710, %v1954
        %v1956 = vpop.f32.mrb[0].mxu0
        %1957 = vmatprep.mubr.f32.mxu0 0.0
        %1958 = vmatmul.mubr.f32.gmra.mrb[0].mxu0 %v1762
        %v1959 = vpop.f32.mrb[0].mxu0
        %v1960 = vadd.f32 %v1710, %v1959
        %v1961 = vpop.f32.mrb[0].mxu0
        %1962 = vmatprep.mubr.f32.mxu0 0.0
        %1963 = vmatmul.mubr.f32.gmra.mrb[0].mxu0 %v1765
        %v1964 = vpop.f32.mrb[0].mxu0
        %v1965 = vadd.f32 %v1710, %v1964
        %v1966 = vpop.f32.mrb[0].mxu0
        %1967 = vmatprep.mubr.f32.mxu0 0.0
        %1968 = vmatmul.mubr.f32.gmra.mrb[0].mxu0 %v1768
        %v1969 = vpop.f32.mrb[0].mxu0
        %v1970 = vadd.f32 %v1710, %v1969
        %v1971 = vpop.f32.mrb[0].mxu0
        %1972 = vmatprep.mubr.f32.mxu0 0.0
        %1973 = vmatmul.mubr.f32.gmra.mrb[0].mxu0 %v1771
        %v1974 = vpop.f32.mrb[0].mxu0
        %v1975 = vadd.f32 %v1710, %v1974
        %v1976 = vpop.f32.mrb[0].mxu0
        %1977 = vmatprep.mubr.f32.mxu0 0.0
        %1978 = vmatmul.mubr.f32.gmra.mrb[0].mxu0 %v1774
        %v1979 = vpop.f32.mrb[0].mxu0
        %v1980 = vadd.f32 %v1710, %v1979
        %v1981 = vpop.f32.mrb[0].mxu0
        %1982 = vmatprep.mubr.f32.mxu0 0.0
        %1983 = vmatmul.mubr.f32.gmra.mrb[0].mxu0 %v1777
        %v1984 = vpop.f32.mrb[0].mxu0
        %v1985 = vadd.f32 %v1710, %v1984
        %v1986 = vpop.f32.mrb[0].mxu0
        %1987 = vmatprep.mubr.f32.mxu0 0.0
        %1988 = vmatmul.mubr.f32.gmra.mrb[0].mxu0 %v1780
        %v1989 = vpop.f32.mrb[0].mxu0
        %v1990 = vadd.f32 %v1710, %v1989
        %v1991 = vpop.f32.mrb[0].mxu0
        %1992 = vmatprep.mubr.f32.mxu0 0.0
        %1993 = vmatmul.mubr.f32.gmra.mrb[0].mxu0 %v1783
        %v1994 = vpop.f32.mrb[0].mxu0
        %v1995 = vadd.f32 %v1710, %v1994
        %v1996 = vpop.f32.mrb[0].mxu0
        %1997 = vmatprep.mubr.f32.mxu0 0.0
        %1998 = vmatmul.mubr.f32.gmra.mrb[0].mxu0 %v1786
        %v1999 = vpop.f32.mrb[0].mxu0
        %v2000 = vadd.f32 %v1710, %v1999
        %v2001 = vpop.f32.mrb[0].mxu0
        %2002 = vmatprep.mubr.f32.mxu0 0.0
        %2003 = vmatmul.mubr.f32.gmra.mrb[0].mxu0 %v1789
        %v2004 = vpop.f32.mrb[0].mxu0
        %v2005 = vadd.f32 %v1710, %v2004
        %v2006 = vpop.f32.mrb[0].mxu0
        %2007 = vmatprep.mubr.f32.mxu0 0.0
        %2008 = vmatmul.mubr.f32.gmra.mrb[0].mxu0 %v1792
        %v2009 = vpop.f32.mrb[0].mxu0
        %v2010 = vadd.f32 %v1710, %v2009
        %v2011 = vpop.f32.mrb[0].mxu0
        %2012 = vmatprep.mubr.f32.mxu0 0.0
        %2013 = vmatmul.mubr.f32.gmra.mrb[0].mxu0 %v1795
        %v2014 = vpop.f32.mrb[0].mxu0
        %v2015 = vadd.f32 %v1710, %v2014
        %v2016 = vpop.f32.mrb[0].mxu0
        %2017 = vmatprep.mubr.f32.mxu0 0.0
        %2018 = vmatmul.mubr.f32.gmra.mrb[0].mxu0 %v1798
        %v2019 = vpop.f32.mrb[0].mxu0
        %v2020 = vadd.f32 %v1710, %v2019
        %v2021 = vpop.f32.mrb[0].mxu0
        %2022 = vmatprep.mubr.f32.mxu0 0.0
        %2023 = vmatmul.mubr.f32.gmra.mrb[0].mxu0 %v1801
        %v2024 = vpop.f32.mrb[0].mxu0
        %v2025 = vadd.f32 %v1710, %v2024
        %v2026 = vpop.f32.mrb[0].mxu0
        %2027 = vmatprep.mubr.f32.mxu0 0.0
        %2028 = vmatmul.mubr.f32.gmra.mrb[0].mxu0 %v1804
        %v2029 = vpop.f32.mrb[0].mxu0
        %v2030 = vadd.f32 %v1710, %v2029
        %v2031 = vpop.f32.mrb[0].mxu0
        %2032 = vmatprep.mubr.f32.mxu0 0.0
        %2033 = vmatmul.mubr.f32.gmra.mrb[0].mxu0 %v1807
        %v2034 = vpop.f32.mrb[0].mxu0
        %v2035 = vadd.f32 %v1710, %v2034
        %v2036 = vpop.f32.mrb[0].mxu0
        %2037 = vdwg.mxu0
        %v2038 = vmax.f32 %v1880, 0.0
        %v2039 = vmax.f32 %v1885, 0.0
        %v2040 = vmax.f32 %v1890, 0.0
        %v2041 = vmax.f32 %v1895, 0.0
        %v2042 = vmax.f32 %v1900, 0.0
        %v2043 = vmax.f32 %v1905, 0.0
        %v2044 = vmax.f32 %v1910, 0.0
        %v2045 = vmax.f32 %v1915, 0.0
        %v2046 = vmax.f32 %v1920, 0.0
        %v2047 = vmax.f32 %v1925, 0.0
        %v2048 = vmax.f32 %v1930, 0.0
        %v2049 = vmax.f32 %v1935, 0.0
        %v2050 = vmax.f32 %v1940, 0.0
        %v2051 = vmax.f32 %v1945, 0.0
        %v2052 = vmax.f32 %v1950, 0.0
        %v2053 = vmax.f32 %v1955, 0.0
        %v2054 = vmax.f32 %v1960, 0.0
        %v2055 = vmax.f32 %v1965, 0.0
        %v2056 = vmax.f32 %v1970, 0.0
        %v2057 = vmax.f32 %v1975, 0.0
        %v2058 = vmax.f32 %v1980, 0.0
        %v2059 = vmax.f32 %v1985, 0.0
        %v2060 = vmax.f32 %v1990, 0.0
        %v2061 = vmax.f32 %v1995, 0.0
        %v2062 = vmax.f32 %v2000, 0.0
        %v2063 = vmax.f32 %v2005, 0.0
        %v2064 = vmax.f32 %v2010, 0.0
        %v2065 = vmax.f32 %v2015, 0.0
        %v2066 = vmax.f32 %v2020, 0.0
        %v2067 = vmax.f32 %v2025, 0.0
        %v2068 = vmax.f32 %v2030, 0.0
        %v2069 = vmax.f32 %v2035, 0.0
        %vm2102 = vcmask 1046528
        %v2103 = vrot.slane %v2038, 1
        %v2104 = vrot.slane %v2039, 1
        %v2105 = vsel %vm2102, %v2103, %v2104
        %v2106 = vrot.slane %v2040, 1
        %v2107 = vsel %vm2102, %v2104, %v2106
        %v2108 = vrot.slane %v2041, 1
        %v2109 = vsel %vm2102, %v2106, %v2108
        %v2110 = vrot.slane %v2042, 1
        %v2111 = vsel %vm2102, %v2108, %v2110
        %v2112 = vrot.slane %v2043, 1
        %v2113 = vsel %vm2102, %v2110, %v2112
        %v2114 = vrot.slane %v2044, 1
        %v2115 = vsel %vm2102, %v2112, %v2114
        %v2116 = vrot.slane %v2045, 1
        %v2117 = vsel %vm2102, %v2114, %v2116
        %v2118 = vrot.slane %v2046, 1
        %v2119 = vsel %vm2102, %v2116, %v2118
        %v2120 = vrot.slane %v2047, 1
        %v2121 = vsel %vm2102, %v2118, %v2120
        %v2122 = vrot.slane %v2048, 1
        %v2123 = vsel %vm2102, %v2120, %v2122
        %v2124 = vrot.slane %v2049, 1
        %v2125 = vsel %vm2102, %v2122, %v2124
        %v2126 = vrot.slane %v2050, 1
        %v2127 = vsel %vm2102, %v2124, %v2126
        %v2128 = vrot.slane %v2051, 1
        %v2129 = vsel %vm2102, %v2126, %v2128
        %v2130 = vrot.slane %v2052, 1
        %v2131 = vsel %vm2102, %v2128, %v2130
        %v2132 = vrot.slane %v2053, 1
        %v2133 = vsel %vm2102, %v2130, %v2132
        %v2134 = vrot.slane %v2054, 1
        %v2135 = vsel %vm2102, %v2132, %v2134
        %v2136 = vrot.slane %v2055, 1
        %v2137 = vsel %vm2102, %v2134, %v2136
        %v2138 = vrot.slane %v2056, 1
        %v2139 = vsel %vm2102, %v2136, %v2138
        %v2140 = vrot.slane %v2057, 1
        %v2141 = vsel %vm2102, %v2138, %v2140
        %v2142 = vrot.slane %v2058, 1
        %v2143 = vsel %vm2102, %v2140, %v2142
        %v2144 = vrot.slane %v2059, 1
        %v2145 = vsel %vm2102, %v2142, %v2144
        %v2146 = vrot.slane %v2060, 1
        %v2147 = vsel %vm2102, %v2144, %v2146
        %v2148 = vrot.slane %v2061, 1
        %v2149 = vsel %vm2102, %v2146, %v2148
        %v2150 = vrot.slane %v2062, 1
        %v2151 = vsel %vm2102, %v2148, %v2150
        %v2152 = vrot.slane %v2063, 1
        %v2153 = vsel %vm2102, %v2150, %v2152
        %v2154 = vrot.slane %v2064, 1
        %v2155 = vsel %vm2102, %v2152, %v2154
        %v2156 = vrot.slane %v2065, 1
        %v2157 = vsel %vm2102, %v2154, %v2156
        %v2158 = vrot.slane %v2066, 1
        %v2159 = vsel %vm2102, %v2156, %v2158
        %v2160 = vrot.slane %v2067, 1
        %v2161 = vsel %vm2102, %v2158, %v2160
        %v2162 = vrot.slane %v2068, 1
        %v2163 = vsel %vm2102, %v2160, %v2162
        %v2164 = vrot.slane %v2069, 1
        %v2165 = vsel %vm2102, %v2162, %v2164
        %v2199 = vsel %vm2102, %v2164, %v2103
        %v2200 = vmax.f32 %v2038, %v2105
        %v2201 = vmax.f32 %v2039, %v2107
        %v2202 = vmax.f32 %v2040, %v2109
        %v2203 = vmax.f32 %v2041, %v2111
        %v2204 = vmax.f32 %v2042, %v2113
        %v2205 = vmax.f32 %v2043, %v2115
        %v2206 = vmax.f32 %v2044, %v2117
        %v2207 = vmax.f32 %v2045, %v2119
        %v2208 = vmax.f32 %v2046, %v2121
        %v2209 = vmax.f32 %v2047, %v2123
        %v2210 = vmax.f32 %v2048, %v2125
        %v2211 = vmax.f32 %v2049, %v2127
        %v2212 = vmax.f32 %v2050, %v2129
        %v2213 = vmax.f32 %v2051, %v2131
        %v2214 = vmax.f32 %v2052, %v2133
        %v2215 = vmax.f32 %v2053, %v2135
        %v2216 = vmax.f32 %v2054, %v2137
        %v2217 = vmax.f32 %v2055, %v2139
        %v2218 = vmax.f32 %v2056, %v2141
        %v2219 = vmax.f32 %v2057, %v2143
        %v2220 = vmax.f32 %v2058, %v2145
        %v2221 = vmax.f32 %v2059, %v2147
        %v2222 = vmax.f32 %v2060, %v2149
        %v2223 = vmax.f32 %v2061, %v2151
        %v2224 = vmax.f32 %v2062, %v2153
        %v2225 = vmax.f32 %v2063, %v2155
        %v2226 = vmax.f32 %v2064, %v2157
        %v2227 = vmax.f32 %v2065, %v2159
        %v2228 = vmax.f32 %v2066, %v2161
        %v2229 = vmax.f32 %v2067, %v2163
        %v2230 = vmax.f32 %v2068, %v2165
        %v2231 = vmax.f32 %v2069, %v2199
        %v2232 = vmax.f32 %v2200, %v2202
        %v2233 = vmax.f32 %v2201, %v2203
        %v2234 = vmax.f32 %v2202, %v2204
        %v2235 = vmax.f32 %v2203, %v2205
        %v2236 = vmax.f32 %v2204, %v2206
        %v2237 = vmax.f32 %v2205, %v2207
        %v2238 = vmax.f32 %v2206, %v2208
        %v2239 = vmax.f32 %v2207, %v2209
        %v2240 = vmax.f32 %v2208, %v2210
        %v2241 = vmax.f32 %v2209, %v2211
        %v2242 = vmax.f32 %v2210, %v2212
        %v2243 = vmax.f32 %v2211, %v2213
        %v2244 = vmax.f32 %v2212, %v2214
        %v2245 = vmax.f32 %v2213, %v2215
        %v2246 = vmax.f32 %v2214, %v2216
        %v2247 = vmax.f32 %v2215, %v2217
        %v2248 = vmax.f32 %v2216, %v2218
        %v2249 = vmax.f32 %v2217, %v2219
        %v2250 = vmax.f32 %v2218, %v2220
        %v2251 = vmax.f32 %v2219, %v2221
        %v2252 = vmax.f32 %v2220, %v2222
        %v2253 = vmax.f32 %v2221, %v2223
        %v2254 = vmax.f32 %v2222, %v2224
        %v2255 = vmax.f32 %v2223, %v2225
        %v2256 = vmax.f32 %v2224, %v2226
        %v2257 = vmax.f32 %v2225, %v2227
        %v2258 = vmax.f32 %v2226, %v2228
        %v2259 = vmax.f32 %v2227, %v2229
        %v2260 = vmax.f32 %v2228, %v2230
        %v2261 = vmax.f32 %v2229, %v2231
        %v2262 = vmax.f32 %v2230, %v2200
        %v2263 = vmax.f32 %v2231, %v2201
        %v2264 = vld [vmem:[%s1] sm:$0xff]
        %v2265 = vld [vmem:[%s1 + $0x8] sm:$0xff]
        %v2266 = vld [vmem:[%s1 + $0x10] sm:$0xff]
        %v2267 = vld [vmem:[%s1 + $0x18] sm:$0xff]
        %v2268 = vld [vmem:[%s1 + $0x20] sm:$0xff]
        %v2269 = vld [vmem:[%s1 + $0x28] sm:$0xff]
        %v2270 = vld [vmem:[%s1 + $0x30] sm:$0xff]
        %v2271 = vld [vmem:[%s1 + $0x38] sm:$0xff]
        %v2272 = vld [vmem:[%s1 + $0x40] sm:$0xff]
        %v2273 = vld [vmem:[%s1 + $0x48] sm:$0xff]
        %v2274 = vld [vmem:[%s1 + $0x50] sm:$0xff]
        %v2275 = vld [vmem:[%s1 + $0x58] sm:$0xff]
        %v2276 = vld [vmem:[%s1 + $0x60] sm:$0xff]
        %v2277 = vld [vmem:[%s1 + $0x68] sm:$0xff]
        %v2278 = vld [vmem:[%s1 + $0x70] sm:$0xff]
        %v2279 = vld [vmem:[%s1 + $0x78] sm:$0xff]
        %v2280 = vld [vmem:[%s1 + $0x80] sm:$0xff]
        %v2281 = vld [vmem:[%s1 + $0x88] sm:$0xff]
        %v2282 = vld [vmem:[%s1 + $0x90] sm:$0xff]
        %v2283 = vld [vmem:[%s1 + $0x98] sm:$0xff]
        %v2284 = vld [vmem:[%s1 + $0xa0] sm:$0xff]
        %v2285 = vld [vmem:[%s1 + $0xa8] sm:$0xff]
        %v2286 = vld [vmem:[%s1 + $0xb0] sm:$0xff]
        %v2287 = vld [vmem:[%s1 + $0xb8] sm:$0xff]
        %v2288 = vld [vmem:[%s1 + $0xc0] sm:$0xf]
        %v2289 = vld [vmem:[%s1 + $0xc8] sm:$0xf]
        %2290 = vmatprep.subr.mxu0 0.0
        %2291 = vmatpush1.msra.mxu0 %v2232
        %2292 = vmatprep.subr.mxu0 0.0
        %2293 = vmatpush1.msra.mxu0 %v2233
        %2294 = vmatprep.subr.mxu0 0.0
        %2295 = vmatpush1.msra.mxu0 %v2234
        %2296 = vmatprep.subr.mxu0 0.0
        %2297 = vmatpush1.msra.mxu0 %v2235
        %2298 = vmatprep.subr.mxu0 0.0
        %2299 = vmatpush1.msra.mxu0 %v2236
        %2300 = vmatprep.subr.mxu0 0.0
        %2301 = vmatpush1.msra.mxu0 %v2237
        %2302 = vmatprep.subr.mxu0 0.0
        %2303 = vmatpush1.msra.mxu0 %v2238
        %2304 = vmatprep.subr.mxu0 0.0
        %2305 = vmatpush1.msra.mxu0 %v2239
        %2306 = vmatprep.subr.mxu0 0.0
        %2307 = vmatpush1.msra.mxu0 %v2240
        %2308 = vmatprep.subr.mxu0 0.0
        %2309 = vmatpush1.msra.mxu0 %v2241
        %2310 = vmatprep.subr.mxu0 0.0
        %2311 = vmatpush1.msra.mxu0 %v2242
        %2312 = vmatprep.subr.mxu0 0.0
        %2313 = vmatpush1.msra.mxu0 %v2243
        %2314 = vmatprep.subr.mxu0 0.0
        %2315 = vmatpush1.msra.mxu0 %v2244
        %2316 = vmatprep.subr.mxu0 0.0
        %2317 = vmatpush1.msra.mxu0 %v2245
        %2318 = vmatprep.subr.mxu0 0.0
        %2319 = vmatpush1.msra.mxu0 %v2246
        %2320 = vmatprep.subr.mxu0 0.0
        %2321 = vmatpush1.msra.mxu0 %v2247
        %2322 = vmatprep.subr.mxu0 0.0
        %2323 = vmatpush1.msra.mxu0 %v2248
        %2324 = vmatprep.subr.mxu0 0.0
        %2325 = vmatpush1.msra.mxu0 %v2249
        %2326 = vmatprep.subr.mxu0 0.0
        %2327 = vmatpush1.msra.mxu0 %v2250
        %2328 = vmatprep.subr.mxu0 0.0
        %2329 = vmatpush1.msra.mxu0 %v2251
        %2330 = vmatprep.subr.mxu0 0.0
        %2331 = vmatpush1.msra.mxu0 %v2252
        %2332 = vmatprep.subr.mxu0 0.0
        %2333 = vmatpush1.msra.mxu0 %v2253
        %2334 = vmatprep.subr.mxu0 0.0
        %2335 = vmatpush1.msra.mxu0 %v2254
        %2336 = vmatprep.subr.mxu0 0.0
        %2337 = vmatpush1.msra.mxu0 %v2255
        %2338 = vmatprep.subr.mxu0 0.0
        %2339 = vmatpush1.msra.mxu0 %v2256
        %2340 = vmatprep.subr.mxu0 0.0
        %2341 = vmatpush1.msra.mxu0 %v2257
        %2342 = vmatprep.subr.mxu0 0.0
        %2343 = vmatpush1.msra.mxu0 %v2258
        %2344 = vmatprep.subr.mxu0 0.0
        %2345 = vmatpush1.msra.mxu0 %v2259
        %2346 = vmatprep.subr.mxu0 0.0
        %2347 = vmatpush1.msra.mxu0 %v2260
        %2348 = vmatprep.subr.mxu0 0.0
        %2349 = vmatpush1.msra.mxu0 %v2261
        %2350 = vmatprep.subr.mxu0 0.0
        %2351 = vmatpush1.msra.mxu0 %v2262
        %2352 = vmatprep.subr.mxu0 0.0
        %2353 = vmatpush1.msra.mxu0 %v2263
        %2354 = vmatprep.mubr.f32.mxu0 %v2265
        %2355 = vmatmul.mubr.f32.gmra.mrb[0].mxu0 %v2264
        %v2356 = vpop.f32.mrb[0].mxu0
        %v2357 = vadd.f32 0.0, %v2356
        %v2358 = vpop.f32.mrb[0].mxu0
        %2359 = vmatprep.mubr.f32.mxu0 %v2267
        %2360 = vmatmul.mubr.f32.gmra.mrb[0].mxu0 %v2266
        %v2361 = vpop.f32.mrb[0].mxu0
        %v2362 = vadd.f32 0.0, %v2361
        %v2363 = vpop.f32.mrb[0].mxu0
        %2364 = vmatprep.mubr.f32.mxu0 %v2269
        %2365 = vmatmul.mubr.f32.gmra.mrb[0].mxu0 %v2268
        %v2366 = vpop.f32.mrb[0].mxu0
        %v2367 = vadd.f32 0.0, %v2366
        %v2368 = vpop.f32.mrb[0].mxu0
        %2369 = vmatprep.mubr.f32.mxu0 %v2271
        %2370 = vmatmul.mubr.f32.gmra.mrb[0].mxu0 %v2270
        %v2371 = vpop.f32.mrb[0].mxu0
        %v2372 = vadd.f32 0.0, %v2371
        %v2373 = vpop.f32.mrb[0].mxu0
        %2374 = vmatprep.mubr.f32.mxu0 %v2273
        %2375 = vmatmul.mubr.f32.gmra.mrb[0].mxu0 %v2272
        %v2376 = vpop.f32.mrb[0].mxu0
        %v2377 = vadd.f32 0.0, %v2376
        %v2378 = vpop.f32.mrb[0].mxu0
        %2379 = vmatprep.mubr.f32.mxu0 %v2275
        %2380 = vmatmul.mubr.f32.gmra.mrb[0].mxu0 %v2274
        %v2381 = vpop.f32.mrb[0].mxu0
        %v2382 = vadd.f32 0.0, %v2381
        %v2383 = vpop.f32.mrb[0].mxu0
        %2384 = vmatprep.mubr.f32.mxu0 %v2277
        %2385 = vmatmul.mubr.f32.gmra.mrb[0].mxu0 %v2276
        %v2386 = vpop.f32.mrb[0].mxu0
        %v2387 = vadd.f32 0.0, %v2386
        %v2388 = vpop.f32.mrb[0].mxu0
        %2389 = vmatprep.mubr.f32.mxu0 %v2279
        %2390 = vmatmul.mubr.f32.gmra.mrb[0].mxu0 %v2278
        %v2391 = vpop.f32.mrb[0].mxu0
        %v2392 = vadd.f32 0.0, %v2391
        %v2393 = vpop.f32.mrb[0].mxu0
        %2394 = vmatprep.mubr.f32.mxu0 %v2281
        %2395 = vmatmul.mubr.f32.gmra.mrb[0].mxu0 %v2280
        %v2396 = vpop.f32.mrb[0].mxu0
        %v2397 = vadd.f32 0.0, %v2396
        %v2398 = vpop.f32.mrb[0].mxu0
        %2399 = vmatprep.mubr.f32.mxu0 %v2283
        %2400 = vmatmul.mubr.f32.gmra.mrb[0].mxu0 %v2282
        %v2401 = vpop.f32.mrb[0].mxu0
        %v2402 = vadd.f32 0.0, %v2401
        %v2403 = vpop.f32.mrb[0].mxu0
        %2404 = vmatprep.mubr.f32.mxu0 %v2285
        %2405 = vmatmul.mubr.f32.gmra.mrb[0].mxu0 %v2284
        %v2406 = vpop.f32.mrb[0].mxu0
        %v2407 = vadd.f32 0.0, %v2406
        %v2408 = vpop.f32.mrb[0].mxu0
        %2409 = vmatprep.mubr.f32.mxu0 %v2287
        %2410 = vmatmul.mubr.f32.gmra.mrb[0].mxu0 %v2286
        %v2411 = vpop.f32.mrb[0].mxu0
        %v2412 = vadd.f32 0.0, %v2411
        %v2413 = vpop.f32.mrb[0].mxu0
        %2414 = vmatprep.mubr.f32.mxu0 %v2289
        %2415 = vmatmul.mubr.f32.gmra.mrb[0].mxu0 %v2288
        %v2416 = vpop.f32.mrb[0].mxu0
        %v2417 = vadd.f32 0.0, %v2416
        %v2418 = vpop.f32.mrb[0].mxu0
        %2419 = vdwg.mxu0
        %v2422 = vrot.slane %v2357, 1
        %v2423 = vrot.slane %v2362, 1
        %v2424 = vsel %vm2102, %v2422, %v2423
        %2425 = vrot.lane.b32.xlu0 %v2424, 8
        %v2426 = vpop.permute.xlu0 %2425
        %vm2428 = vcmask 1045504
        %v2429 = vrot.slane %v2357, 2
        %v2430 = vrot.slane %v2362, 2
        %v2431 = vsel %vm2428, %v2429, %v2430
        %2432 = vrot.lane.b32.xlu0 %v2431, 16
        %v2433 = vpop.permute.xlu0 %2432
        %v2436 = vrot.slane %v2367, 2
        %v2437 = vsel %vm2428, %v2430, %v2436
        %2438 = vrot.lane.b32.xlu0 %v2437, 24
        %v2439 = vpop.permute.xlu0 %2438
        %vm2441 = vcmask 1044480
        %v2442 = vrot.slane %v2362, 3
        %v2443 = vrot.slane %v2367, 3
        %v2444 = vsel %vm2441, %v2442, %v2443
        %2445 = vrot.lane.b32.xlu0 %v2444, 32
        %v2446 = vpop.permute.xlu0 %2445
        %vm2448 = vcmask 1043456
        %v2449 = vrot.slane %v2362, 4
        %v2450 = vrot.slane %v2367, 4
        %v2451 = vsel %vm2448, %v2449, %v2450
        %2452 = vrot.lane.b32.xlu0 %v2451, 40
        %v2453 = vpop.permute.xlu0 %2452
        %v2456 = vrot.slane %v2372, 4
        %v2457 = vsel %vm2448, %v2450, %v2456
        %2458 = vrot.lane.b32.xlu0 %v2457, 48
        %v2459 = vpop.permute.xlu0 %2458
        %v2461 = vrot.slane %v2367, 5
        %v2462 = vrot.slane %v2372, 5
        %v2463 = vsel %vm1809, %v2461, %v2462
        %2464 = vrot.lane.b32.xlu0 %v2463, 56
        %v2465 = vpop.permute.xlu0 %2464
        %vm2467 = vcmask 1041408
        %v2468 = vrot.slane %v2367, 6
        %v2469 = vrot.slane %v2372, 6
        %v2470 = vsel %vm2467, %v2468, %v2469
        %2471 = vrot.lane.b32.xlu0 %v2470, 64
        %v2472 = vpop.permute.xlu0 %2471
        %vm2474 = vcmask 64512
        %v2475 = vsel %vm2474, %v2357, %v2426
        %vm2476 = vcmask 130048
        %v2477 = vsel %vm2476, %v2475, %v2433
        %v2478 = vsel %vm543, %v2477, %v2439
        %vm2479 = vcmask 261120
        %v2480 = vsel %vm2479, %v2478, %v2446
        %vm2481 = vcmask 326656
        %v2482 = vsel %vm2481, %v2480, %v2453
        %vm2483 = vcmask 392192
        %v2484 = vsel %vm2483, %v2482, %v2459
        %vm2485 = vcmask 457728
        %v2486 = vsel %vm2485, %v2484, %v2465
        %vm2487 = vcmask 523264
        %v2488 = vsel %vm2487, %v2486, %v2472
        %v2489 = vrot.slane %v2367, 1
        %v2490 = vsel %vm2102, %v2423, %v2489
        %2491 = vrot.lane.b32.xlu0 %v2490, 8
        %v2492 = vpop.permute.xlu0 %2491
        %2493 = vrot.lane.b32.xlu0 %v2489, 8
        %v2494 = vpop.permute.xlu0 %2493
        %2497 = vrot.lane.b32.xlu0 %v2437, 16
        %v2498 = vpop.permute.xlu0 %2497
        %2499 = vrot.lane.b32.xlu0 %v2436, 16
        %v2500 = vpop.permute.xlu0 %2499
        %v2503 = vrot.slane %v2372, 2
        %v2504 = vsel %vm2428, %v2436, %v2503
        %2505 = vrot.lane.b32.xlu0 %v2504, 24
        %v2506 = vpop.permute.xlu0 %2505
        %2507 = vrot.lane.b32.xlu0 %v2503, 24
        %v2508 = vpop.permute.xlu0 %2507
        %v2511 = vrot.slane %v2372, 3
        %v2512 = vsel %vm2441, %v2443, %v2511
        %2513 = vrot.lane.b32.xlu0 %v2512, 32
        %v2514 = vpop.permute.xlu0 %2513
        %2515 = vrot.lane.b32.xlu0 %v2511, 32
        %v2516 = vpop.permute.xlu0 %2515
        %2519 = vrot.lane.b32.xlu0 %v2457, 40
        %v2520 = vpop.permute.xlu0 %2519
        %2521 = vrot.lane.b32.xlu0 %v2456, 40
        %v2522 = vpop.permute.xlu0 %2521
        %v2526 = vrot.slane %v2377, 4
        %v2527 = vsel %vm2448, %v2456, %v2526
        %2528 = vrot.lane.b32.xlu0 %v2527, 48
        %v2529 = vpop.permute.xlu0 %2528
        %2530 = vrot.lane.b32.xlu0 %v2526, 48
        %v2531 = vpop.permute.xlu0 %2530
        %v2534 = vrot.slane %v2377, 5
        %v2535 = vsel %vm1809, %v2462, %v2534
        %2536 = vrot.lane.b32.xlu0 %v2535, 56
        %v2537 = vpop.permute.xlu0 %2536
        %2538 = vrot.lane.b32.xlu0 %v2534, 56
        %v2539 = vpop.permute.xlu0 %2538
        %v2542 = vrot.slane %v2377, 6
        %2543 = vrot.lane.b32.xlu0 %v2542, 64
        %v2544 = vpop.permute.xlu0 %2543
        %v2546 = vsel %vm2474, %v2362, %v2492
        %v2547 = vsel %vm2474, %v2367, %v2494
        %v2548 = vsel %vm2476, %v2546, %v2498
        %v2549 = vsel %vm2476, %v2547, %v2500
        %v2550 = vsel %vm543, %v2548, %v2506
        %v2551 = vsel %vm543, %v2549, %v2508
        %v2552 = vsel %vm2479, %v2550, %v2514
        %v2553 = vsel %vm2479, %v2551, %v2516
        %v2554 = vsel %vm2481, %v2552, %v2520
        %v2555 = vsel %vm2481, %v2553, %v2522
        %v2556 = vsel %vm2483, %v2554, %v2529
        %v2557 = vsel %vm2483, %v2555, %v2531
        %v2558 = vsel %vm2485, %v2556, %v2537
        %v2559 = vsel %vm2485, %v2557, %v2539
        %v2560 = vsel %vm2487, %v2558, %v2544
        %v2561 = vsel %vm2487, %v2559, %v2544
        %v2562 = vrot.slane %v2372, 1
        %v2563 = vsel %vm2102, %v2489, %v2562
        %2564 = vrot.lane.b32.xlu0 %v2563, 8
        %v2565 = vpop.permute.xlu0 %2564
        %2566 = vrot.lane.b32.xlu0 %v2562, 8
        %v2567 = vpop.permute.xlu0 %2566
        %2570 = vrot.lane.b32.xlu0 %v2504, 16
        %v2571 = vpop.permute.xlu0 %2570
        %2572 = vrot.lane.b32.xlu0 %v2503, 16
        %v2573 = vpop.permute.xlu0 %2572
        %v2576 = vrot.slane %v2377, 2
        %v2577 = vsel %vm2428, %v2503, %v2576
        %2578 = vrot.lane.b32.xlu0 %v2577, 24
        %v2579 = vpop.permute.xlu0 %2578
        %2580 = vrot.lane.b32.xlu0 %v2576, 24
        %v2581 = vpop.permute.xlu0 %2580
        %v2584 = vrot.slane %v2377, 3
        %v2585 = vsel %vm2441, %v2511, %v2584
        %2586 = vrot.lane.b32.xlu0 %v2585, 32
        %v2587 = vpop.permute.xlu0 %2586
        %2588 = vrot.lane.b32.xlu0 %v2584, 32
        %v2589 = vpop.permute.xlu0 %2588
        %2592 = vrot.lane.b32.xlu0 %v2526, 40
        %v2593 = vpop.permute.xlu0 %2592
        %v2596 = vrot.slane %v2382, 4
        %2597 = vrot.lane.b32.xlu0 %v2596, 48
        %v2598 = vpop.permute.xlu0 %2597
        %v2601 = vrot.slane %v2382, 5
        %v2602 = vrot.slane %v2387, 5
        %v2603 = vsel %vm1809, %v2601, %v2602
        %2604 = vrot.lane.b32.xlu0 %v2601, 56
        %v2605 = vpop.permute.xlu0 %2604
        %2606 = vrot.lane.b32.xlu0 %v2603, 56
        %v2607 = vpop.permute.xlu0 %2606
        %v2610 = vrot.slane %v2382, 6
        %v2611 = vrot.slane %v2387, 6
        %v2612 = vsel %vm2467, %v2610, %v2611
        %2613 = vrot.lane.b32.xlu0 %v2610, 64
        %v2614 = vpop.permute.xlu0 %2613
        %2615 = vrot.lane.b32.xlu0 %v2612, 64
        %v2616 = vpop.permute.xlu0 %2615
        %v2619 = vsel %vm2474, %v2367, %v2565
        %v2620 = vsel %vm2474, %v2372, %v2567
        %v2621 = vsel %vm2476, %v2619, %v2571
        %v2622 = vsel %vm2476, %v2620, %v2573
        %v2623 = vsel %vm543, %v2621, %v2579
        %v2624 = vsel %vm543, %v2622, %v2581
        %v2625 = vsel %vm2479, %v2623, %v2587
        %v2626 = vsel %vm2479, %v2624, %v2589
        %v2627 = vsel %vm2481, %v2625, %v2593
        %v2628 = vsel %vm2481, %v2626, %v2593
        %v2629 = vsel %vm2483, %v2627, %v2598
        %v2630 = vsel %vm2483, %v2628, %v2598
        %v2631 = vsel %vm2485, %v2629, %v2605
        %v2632 = vsel %vm2485, %v2630, %v2607
        %v2633 = vsel %vm2487, %v2631, %v2614
        %v2634 = vsel %vm2487, %v2632, %v2616
        %v2635 = vrot.slane %v2377, 1
        %v2636 = vsel %vm2102, %v2562, %v2635
        %2637 = vrot.lane.b32.xlu0 %v2636, 8
        %v2638 = vpop.permute.xlu0 %2637
        %2639 = vrot.lane.b32.xlu0 %v2635, 8
        %v2640 = vpop.permute.xlu0 %2639
        %2643 = vrot.lane.b32.xlu0 %v2576, 16
        %v2644 = vpop.permute.xlu0 %2643
        %v2646 = vrot.slane %v2382, 2
        %2647 = vrot.lane.b32.xlu0 %v2646, 24
        %v2648 = vpop.permute.xlu0 %2647
        %v2650 = vrot.slane %v2382, 3
        %v2651 = vrot.slane %v2387, 3
        %v2652 = vsel %vm2441, %v2650, %v2651
        %2653 = vrot.lane.b32.xlu0 %v2650, 32
        %v2654 = vpop.permute.xlu0 %2653
        %2655 = vrot.lane.b32.xlu0 %v2652, 32
        %v2656 = vpop.permute.xlu0 %2655
        %v2659 = vrot.slane %v2387, 4
        %v2660 = vsel %vm2448, %v2596, %v2659
        %2661 = vrot.lane.b32.xlu0 %v2596, 40
        %v2662 = vpop.permute.xlu0 %2661
        %2663 = vrot.lane.b32.xlu0 %v2660, 40
        %v2664 = vpop.permute.xlu0 %2663
        %v2668 = vrot.slane %v2392, 4
        %v2669 = vsel %vm2448, %v2659, %v2668
        %2670 = vrot.lane.b32.xlu0 %v2659, 48
        %v2671 = vpop.permute.xlu0 %2670
        %2672 = vrot.lane.b32.xlu0 %v2669, 48
        %v2673 = vpop.permute.xlu0 %2672
        %v2676 = vrot.slane %v2392, 5
        %v2677 = vsel %vm1809, %v2602, %v2676
        %2678 = vrot.lane.b32.xlu0 %v2602, 56
        %v2679 = vpop.permute.xlu0 %2678
        %2680 = vrot.lane.b32.xlu0 %v2677, 56
        %v2681 = vpop.permute.xlu0 %2680
        %v2684 = vrot.slane %v2392, 6
        %v2685 = vsel %vm2467, %v2611, %v2684
        %2686 = vrot.lane.b32.xlu0 %v2611, 64
        %v2687 = vpop.permute.xlu0 %2686
        %2688 = vrot.lane.b32.xlu0 %v2685, 64
        %v2689 = vpop.permute.xlu0 %2688
        %v2692 = vsel %vm2474, %v2372, %v2638
        %v2693 = vsel %vm2474, %v2377, %v2640
        %v2694 = vsel %vm2476, %v2692, %v2644
        %v2695 = vsel %vm2476, %v2693, %v2644
        %v2696 = vsel %vm543, %v2694, %v2648
        %v2697 = vsel %vm543, %v2695, %v2648
        %v2698 = vsel %vm2479, %v2696, %v2654
        %v2699 = vsel %vm2479, %v2697, %v2656
        %v2700 = vsel %vm2481, %v2698, %v2662
        %v2701 = vsel %vm2481, %v2699, %v2664
        %v2702 = vsel %vm2483, %v2700, %v2671
        %v2703 = vsel %vm2483, %v2701, %v2673
        %v2704 = vsel %vm2485, %v2702, %v2679
        %v2705 = vsel %vm2485, %v2703, %v2681
        %v2706 = vsel %vm2487, %v2704, %v2687
        %v2707 = vsel %vm2487, %v2705, %v2689
        %v2708 = vrot.slane %v2382, 1
        %v2709 = vrot.slane %v2387, 1
        %v2710 = vsel %vm2102, %v2708, %v2709
        %2711 = vrot.lane.b32.xlu0 %v2710, 8
        %v2712 = vpop.permute.xlu0 %2711
        %v2714 = vrot.slane %v2387, 2
        %v2715 = vsel %vm2428, %v2646, %v2714
        %2716 = vrot.lane.b32.xlu0 %v2715, 16
        %v2717 = vpop.permute.xlu0 %2716
        %v2719 = vrot.slane %v2392, 2
        %v2720 = vsel %vm2428, %v2714, %v2719
        %2721 = vrot.lane.b32.xlu0 %v2720, 24
        %v2722 = vpop.permute.xlu0 %2721
        %v2724 = vrot.slane %v2392, 3
        %v2725 = vsel %vm2441, %v2651, %v2724
        %2726 = vrot.lane.b32.xlu0 %v2725, 32
        %v2727 = vpop.permute.xlu0 %2726
        %2729 = vrot.lane.b32.xlu0 %v2669, 40
        %v2730 = vpop.permute.xlu0 %2729
        %v2733 = vrot.slane %v2397, 4
        %v2734 = vsel %vm2448, %v2668, %v2733
        %2735 = vrot.lane.b32.xlu0 %v2734, 48
        %v2736 = vpop.permute.xlu0 %2735
        %v2738 = vrot.slane %v2397, 5
        %v2739 = vsel %vm1809, %v2676, %v2738
        %2740 = vrot.lane.b32.xlu0 %v2739, 56
        %v2741 = vpop.permute.xlu0 %2740
        %v2743 = vrot.slane %v2397, 6
        %v2744 = vsel %vm2467, %v2684, %v2743
        %2745 = vrot.lane.b32.xlu0 %v2744, 64
        %v2746 = vpop.permute.xlu0 %2745
        %v2748 = vsel %vm2474, %v2382, %v2712
        %v2749 = vsel %vm2476, %v2748, %v2717
        %v2750 = vsel %vm543, %v2749, %v2722
        %v2751 = vsel %vm2479, %v2750, %v2727
        %v2752 = vsel %vm2481, %v2751, %v2730
        %v2753 = vsel %vm2483, %v2752, %v2736
        %v2754 = vsel %vm2485, %v2753, %v2741
        %v2755 = vsel %vm2487, %v2754, %v2746
        %v2756 = vrot.slane %v2392, 1
        %v2757 = vsel %vm2102, %v2709, %v2756
        %2758 = vrot.lane.b32.xlu0 %v2757, 8
        %v2759 = vpop.permute.xlu0 %2758
        %2760 = vrot.lane.b32.xlu0 %v2756, 8
        %v2761 = vpop.permute.xlu0 %2760
        %2764 = vrot.lane.b32.xlu0 %v2720, 16
        %v2765 = vpop.permute.xlu0 %2764
        %2766 = vrot.lane.b32.xlu0 %v2719, 16
        %v2767 = vpop.permute.xlu0 %2766
        %v2770 = vrot.slane %v2397, 2
        %v2771 = vsel %vm2428, %v2719, %v2770
        %2772 = vrot.lane.b32.xlu0 %v2771, 24
        %v2773 = vpop.permute.xlu0 %2772
        %2774 = vrot.lane.b32.xlu0 %v2770, 24
        %v2775 = vpop.permute.xlu0 %2774
        %v2778 = vrot.slane %v2397, 3
        %v2779 = vsel %vm2441, %v2724, %v2778
        %2780 = vrot.lane.b32.xlu0 %v2779, 32
        %v2781 = vpop.permute.xlu0 %2780
        %2782 = vrot.lane.b32.xlu0 %v2778, 32
        %v2783 = vpop.permute.xlu0 %2782
        %2786 = vrot.lane.b32.xlu0 %v2734, 40
        %v2787 = vpop.permute.xlu0 %2786
        %2788 = vrot.lane.b32.xlu0 %v2733, 40
        %v2789 = vpop.permute.xlu0 %2788
        %v2793 = vrot.slane %v2402, 4
        %v2794 = vsel %vm2448, %v2733, %v2793
        %2795 = vrot.lane.b32.xlu0 %v2794, 48
        %v2796 = vpop.permute.xlu0 %2795
        %2797 = vrot.lane.b32.xlu0 %v2793, 48
        %v2798 = vpop.permute.xlu0 %2797
        %v2801 = vrot.slane %v2402, 5
        %v2802 = vsel %vm1809, %v2738, %v2801
        %2803 = vrot.lane.b32.xlu0 %v2802, 56
        %v2804 = vpop.permute.xlu0 %2803
        %2805 = vrot.lane.b32.xlu0 %v2801, 56
        %v2806 = vpop.permute.xlu0 %2805
        %v2809 = vrot.slane %v2402, 6
        %2810 = vrot.lane.b32.xlu0 %v2809, 64
        %v2811 = vpop.permute.xlu0 %2810
        %v2813 = vsel %vm2474, %v2387, %v2759
        %v2814 = vsel %vm2474, %v2392, %v2761
        %v2815 = vsel %vm2476, %v2813, %v2765
        %v2816 = vsel %vm2476, %v2814, %v2767
        %v2817 = vsel %vm543, %v2815, %v2773
        %v2818 = vsel %vm543, %v2816, %v2775
        %v2819 = vsel %vm2479, %v2817, %v2781
        %v2820 = vsel %vm2479, %v2818, %v2783
        %v2821 = vsel %vm2481, %v2819, %v2787
        %v2822 = vsel %vm2481, %v2820, %v2789
        %v2823 = vsel %vm2483, %v2821, %v2796
        %v2824 = vsel %vm2483, %v2822, %v2798
        %v2825 = vsel %vm2485, %v2823, %v2804
        %v2826 = vsel %vm2485, %v2824, %v2806
        %v2827 = vsel %vm2487, %v2825, %v2811
        %v2828 = vsel %vm2487, %v2826, %v2811
        %v2829 = vrot.slane %v2397, 1
        %v2830 = vsel %vm2102, %v2756, %v2829
        %2831 = vrot.lane.b32.xlu0 %v2830, 8
        %v2832 = vpop.permute.xlu0 %2831
        %2833 = vrot.lane.b32.xlu0 %v2829, 8
        %v2834 = vpop.permute.xlu0 %2833
        %2837 = vrot.lane.b32.xlu0 %v2771, 16
        %v2838 = vpop.permute.xlu0 %2837
        %2839 = vrot.lane.b32.xlu0 %v2770, 16
        %v2840 = vpop.permute.xlu0 %2839
        %v2843 = vrot.slane %v2402, 2
        %v2844 = vsel %vm2428, %v2770, %v2843
        %2845 = vrot.lane.b32.xlu0 %v2844, 24
        %v2846 = vpop.permute.xlu0 %2845
        %2847 = vrot.lane.b32.xlu0 %v2843, 24
        %v2848 = vpop.permute.xlu0 %2847
        %v2851 = vrot.slane %v2402, 3
        %v2852 = vsel %vm2441, %v2778, %v2851
        %2853 = vrot.lane.b32.xlu0 %v2852, 32
        %v2854 = vpop.permute.xlu0 %2853
        %2855 = vrot.lane.b32.xlu0 %v2851, 32
        %v2856 = vpop.permute.xlu0 %2855
        %2859 = vrot.lane.b32.xlu0 %v2793, 40
        %v2860 = vpop.permute.xlu0 %2859
        %v2863 = vrot.slane %v2407, 4
        %2864 = vrot.lane.b32.xlu0 %v2863, 48
        %v2865 = vpop.permute.xlu0 %2864
        %v2868 = vrot.slane %v2407, 5
        %v2869 = vrot.slane %v2412, 5
        %v2870 = vsel %vm1809, %v2868, %v2869
        %2871 = vrot.lane.b32.xlu0 %v2868, 56
        %v2872 = vpop.permute.xlu0 %2871
        %2873 = vrot.lane.b32.xlu0 %v2870, 56
        %v2874 = vpop.permute.xlu0 %2873
        %v2877 = vrot.slane %v2407, 6
        %v2878 = vrot.slane %v2412, 6
        %v2879 = vsel %vm2467, %v2877, %v2878
        %2880 = vrot.lane.b32.xlu0 %v2877, 64
        %v2881 = vpop.permute.xlu0 %2880
        %2882 = vrot.lane.b32.xlu0 %v2879, 64
        %v2883 = vpop.permute.xlu0 %2882
        %v2886 = vsel %vm2474, %v2392, %v2832
        %v2887 = vsel %vm2474, %v2397, %v2834
        %v2888 = vsel %vm2476, %v2886, %v2838
        %v2889 = vsel %vm2476, %v2887, %v2840
        %v2890 = vsel %vm543, %v2888, %v2846
        %v2891 = vsel %vm543, %v2889, %v2848
        %v2892 = vsel %vm2479, %v2890, %v2854
        %v2893 = vsel %vm2479, %v2891, %v2856
        %v2894 = vsel %vm2481, %v2892, %v2860
        %v2895 = vsel %vm2481, %v2893, %v2860
        %v2896 = vsel %vm2483, %v2894, %v2865
        %v2897 = vsel %vm2483, %v2895, %v2865
        %v2898 = vsel %vm2485, %v2896, %v2872
        %v2899 = vsel %vm2485, %v2897, %v2874
        %v2900 = vsel %vm2487, %v2898, %v2881
        %v2901 = vsel %vm2487, %v2899, %v2883
        %v2902 = vrot.slane %v2402, 1
        %v2903 = vsel %vm2102, %v2829, %v2902
        %2904 = vrot.lane.b32.xlu0 %v2903, 8
        %v2905 = vpop.permute.xlu0 %2904
        %2906 = vrot.lane.b32.xlu0 %v2902, 8
        %v2907 = vpop.permute.xlu0 %2906
        %2910 = vrot.lane.b32.xlu0 %v2843, 16
        %v2911 = vpop.permute.xlu0 %2910
        %v2913 = vrot.slane %v2407, 2
        %2914 = vrot.lane.b32.xlu0 %v2913, 24
        %v2915 = vpop.permute.xlu0 %2914
        %v2917 = vrot.slane %v2407, 3
        %v2918 = vrot.slane %v2412, 3
        %v2919 = vsel %vm2441, %v2917, %v2918
        %2920 = vrot.lane.b32.xlu0 %v2917, 32
        %v2921 = vpop.permute.xlu0 %2920
        %2922 = vrot.lane.b32.xlu0 %v2919, 32
        %v2923 = vpop.permute.xlu0 %2922
        %v2926 = vrot.slane %v2412, 4
        %v2927 = vsel %vm2448, %v2863, %v2926
        %2928 = vrot.lane.b32.xlu0 %v2863, 40
        %v2929 = vpop.permute.xlu0 %2928
        %2930 = vrot.lane.b32.xlu0 %v2927, 40
        %v2931 = vpop.permute.xlu0 %2930
        %v2935 = vrot.slane %v2417, 4
        %v2936 = vsel %vm2448, %v2926, %v2935
        %2937 = vrot.lane.b32.xlu0 %v2926, 48
        %v2938 = vpop.permute.xlu0 %2937
        %2939 = vrot.lane.b32.xlu0 %v2936, 48
        %v2940 = vpop.permute.xlu0 %2939
        %v2943 = vrot.slane %v2417, 5
        %v2944 = vsel %vm1809, %v2869, %v2943
        %2945 = vrot.lane.b32.xlu0 %v2869, 56
        %v2946 = vpop.permute.xlu0 %2945
        %2947 = vrot.lane.b32.xlu0 %v2944, 56
        %v2948 = vpop.permute.xlu0 %2947
        %v2951 = vrot.slane %v2417, 6
        %v2952 = vsel %vm2467, %v2878, %v2951
        %2953 = vrot.lane.b32.xlu0 %v2878, 64
        %v2954 = vpop.permute.xlu0 %2953
        %2955 = vrot.lane.b32.xlu0 %v2952, 64
        %v2956 = vpop.permute.xlu0 %2955
        %v2959 = vsel %vm2474, %v2397, %v2905
        %v2960 = vsel %vm2474, %v2402, %v2907
        %v2961 = vsel %vm2476, %v2959, %v2911
        %v2962 = vsel %vm2476, %v2960, %v2911
        %v2963 = vsel %vm543, %v2961, %v2915
        %v2964 = vsel %vm543, %v2962, %v2915
        %v2965 = vsel %vm2479, %v2963, %v2921
        %v2966 = vsel %vm2479, %v2964, %v2923
        %v2967 = vsel %vm2481, %v2965, %v2929
        %v2968 = vsel %vm2481, %v2966, %v2931
        %v2969 = vsel %vm2483, %v2967, %v2938
        %v2970 = vsel %vm2483, %v2968, %v2940
        %v2971 = vsel %vm2485, %v2969, %v2946
        %v2972 = vsel %vm2485, %v2970, %v2948
        %v2973 = vsel %vm2487, %v2971, %v2954
        %v2974 = vsel %vm2487, %v2972, %v2956
        %v2977 = vrot.slane %v2560, 2
        %v2978 = vrot.slane %v2561, 2
        %v2979 = vsel %vm2428, %v2977, %v2978
        %v2982 = vrot.slane %v2633, 4
        %v2983 = vrot.slane %v2634, 4
        %v2984 = vsel %vm2448, %v2982, %v2983
        %v2987 = vrot.slane %v2706, 6
        %v2988 = vrot.slane %v2707, 6
        %v2989 = vsel %vm2467, %v2987, %v2988
        %v2992 = vrot.slane %v2827, 2
        %v2993 = vrot.slane %v2828, 2
        %v2994 = vsel %vm2428, %v2992, %v2993
        %v2997 = vrot.slane %v2900, 4
        %v2998 = vrot.slane %v2901, 4
        %v2999 = vsel %vm2448, %v2997, %v2998
        %v3002 = vrot.slane %v2973, 6
        %v3003 = vrot.slane %v2974, 6
        %v3004 = vsel %vm2467, %v3002, %v3003
        %v3005 = vld [vmem:[%s5] sm:$0xff]
        %v3006 = vld [vmem:[%s5 + $0x8] sm:$0xff]
        %v3007 = vld [vmem:[%s5 + $0x10] sm:$0xff]
        %v3008 = vld [vmem:[%s5 + $0x18] sm:$0xff]
        %v3009 = vld [vmem:[%s5 + $0x20] sm:$0xff]
        %v3010 = vld [vmem:[%s5 + $0x28] sm:$0xff]
        %v3011 = vld [vmem:[%s5 + $0x30] sm:$0xff]
        %v3012 = vld [vmem:[%s5 + $0x38] sm:$0xff]
        %v3013 = vld [vmem:[%s5 + $0x40] sm:$0xff]
        %v3014 = vld [vmem:[%s6] sm:$0x1]
        %v3016 = vlaneseq
        %v3017 = vshrl.u32 %v3016, 7
        %v3018 = vsub.s32 0, %v3017
        %v3019 = vrot.slane %v3014, %v3018
        %vm3021 = vcmask 588800
        %v3023 = vsel %vm3021, %v2488, 0
        %v3025 = vsel %vm3021, %v2979, 0
        %v3027 = vsel %vm3021, %v2984, 0
        %v3029 = vsel %vm3021, %v2989, 0
        %v3032 = vsel %vm3021, %v2755, 0
        %v3034 = vsel %vm3021, %v2994, 0
        %v3036 = vsel %vm3021, %v2999, 0
        %v3038 = vsel %vm3021, %v3004, 0
        %3040 = vmatprep.subr.mxu0 0.0
        %3041 = vmatpush1.msra.mxu0 %v3005
        %3042 = vmatprep.subr.mxu0 0.0
        %3043 = vmatpush1.msra.mxu0 %v3006
        %3044 = vmatprep.subr.mxu0 0.0
        %3045 = vmatpush1.msra.mxu0 %v3007
        %3046 = vmatprep.subr.mxu0 0.0
        %3047 = vmatpush1.msra.mxu0 %v3008
        %3048 = vmatprep.subr.mxu0 0.0
        %3049 = vmatpush1.msra.mxu0 %v3009
        %3050 = vmatprep.subr.mxu0 0.0
        %3051 = vmatpush1.msra.mxu0 %v3010
        %3052 = vmatprep.subr.mxu0 0.0
        %3053 = vmatpush1.msra.mxu0 %v3011
        %3054 = vmatprep.subr.mxu0 0.0
        %3055 = vmatpush1.msra.mxu0 %v3012
        %3056 = vmatprep.subr.mxu0 0.0
        %3057 = vmatpush1.msra.mxu0 %v3013
        %3058 = vmatprep.subr.mxu0 0.0
        %3059 = vmatpush1.msra.mxu0 0.0
        %3060 = vmatprep.subr.mxu0 0.0
        %3061 = vmatpush1.msra.mxu0 0.0
        %3062 = vmatprep.subr.mxu0 0.0
        %3063 = vmatpush1.msra.mxu0 0.0
        %3064 = vmatprep.subr.mxu0 0.0
        %3065 = vmatpush1.msra.mxu0 0.0
        %3066 = vmatprep.subr.mxu0 0.0
        %3067 = vmatpush1.msra.mxu0 0.0
        %3068 = vmatprep.subr.mxu0 0.0
        %3069 = vmatpush1.msra.mxu0 0.0
        %3070 = vmatprep.subr.mxu0 0.0
        %3071 = vmatpush1.msra.mxu0 0.0
        %3072 = vmatprep.subr.mxu0 0.0
        %3073 = vmatpush1.msra.mxu0 0.0
        %3074 = vmatprep.subr.mxu0 0.0
        %3075 = vmatpush1.msra.mxu0 0.0
        %3076 = vmatprep.subr.mxu0 0.0
        %3077 = vmatpush1.msra.mxu0 0.0
        %3078 = vmatprep.subr.mxu0 0.0
        %3079 = vmatpush1.msra.mxu0 0.0
        %3080 = vmatprep.subr.mxu0 0.0
        %3081 = vmatpush1.msra.mxu0 0.0
        %3082 = vmatprep.subr.mxu0 0.0
        %3083 = vmatpush1.msra.mxu0 0.0
        %3084 = vmatprep.subr.mxu0 0.0
        %3085 = vmatpush1.msra.mxu0 0.0
        %3086 = vmatprep.subr.mxu0 0.0
        %3087 = vmatpush1.msra.mxu0 0.0
        %3088 = vmatprep.subr.mxu0 0.0
        %3089 = vmatpush1.msra.mxu0 0.0
        %3090 = vmatprep.subr.mxu0 0.0
        %3091 = vmatpush1.msra.mxu0 0.0
        %3092 = vmatprep.subr.mxu0 0.0
        %3093 = vmatpush1.msra.mxu0 0.0
        %3094 = vmatprep.subr.mxu0 0.0
        %3095 = vmatpush1.msra.mxu0 0.0
        %3096 = vmatprep.subr.mxu0 0.0
        %3097 = vmatpush1.msra.mxu0 0.0
        %3098 = vmatprep.subr.mxu0 0.0
        %3099 = vmatpush1.msra.mxu0 0.0
        %3100 = vmatprep.subr.mxu0 0.0
        %3101 = vmatpush1.msra.mxu0 0.0
        %3102 = vmatprep.subr.mxu0 0.0
        %3103 = vmatpush1.msra.mxu0 0.0
        %3104 = vmatprep.mubr.f32.mxu0 0.0
        %3105 = vmatmul.mubr.f32.gmra.mrb[0].mxu0 %v3023
        %v3106 = vpop.f32.mrb[0].mxu0
        %v3107 = vadd.f32 %v3019, %v3106
        %v3108 = vpop.f32.mrb[0].mxu0
        %3109 = vmatprep.mubr.f32.mxu0 0.0
        %3110 = vmatmul.mubr.f32.gmra.mrb[0].mxu0 %v3025
        %v3111 = vpop.f32.mrb[0].mxu0
        %v3112 = vadd.f32 %v3019, %v3111
        %v3113 = vpop.f32.mrb[0].mxu0
        %3114 = vmatprep.mubr.f32.mxu0 0.0
        %3115 = vmatmul.mubr.f32.gmra.mrb[0].mxu0 %v3027
        %v3116 = vpop.f32.mrb[0].mxu0
        %v3117 = vadd.f32 %v3019, %v3116
        %v3118 = vpop.f32.mrb[0].mxu0
        %3119 = vmatprep.mubr.f32.mxu0 0.0
        %3120 = vmatmul.mubr.f32.gmra.mrb[0].mxu0 %v3029
        %v3121 = vpop.f32.mrb[0].mxu0
        %v3122 = vadd.f32 %v3019, %v3121
        %v3123 = vpop.f32.mrb[0].mxu0
        %3124 = vmatprep.mubr.f32.mxu0 0.0
        %3125 = vmatmul.mubr.f32.gmra.mrb[0].mxu0 %v3032
        %v3126 = vpop.f32.mrb[0].mxu0
        %v3127 = vadd.f32 %v3019, %v3126
        %v3128 = vpop.f32.mrb[0].mxu0
        %3129 = vmatprep.mubr.f32.mxu0 0.0
        %3130 = vmatmul.mubr.f32.gmra.mrb[0].mxu0 %v3034
        %v3131 = vpop.f32.mrb[0].mxu0
        %v3132 = vadd.f32 %v3019, %v3131
        %v3133 = vpop.f32.mrb[0].mxu0
        %3134 = vmatprep.mubr.f32.mxu0 0.0
        %3135 = vmatmul.mubr.f32.gmra.mrb[0].mxu0 %v3036
        %v3136 = vpop.f32.mrb[0].mxu0
        %v3137 = vadd.f32 %v3019, %v3136
        %v3138 = vpop.f32.mrb[0].mxu0
        %3139 = vmatprep.mubr.f32.mxu0 0.0
        %3140 = vmatmul.mubr.f32.gmra.mrb[0].mxu0 %v3038
        %v3141 = vpop.f32.mrb[0].mxu0
        %v3142 = vadd.f32 %v3019, %v3141
        %v3143 = vpop.f32.mrb[0].mxu0
        %3144 = vdwg.mxu0
        %v3145 = vmax.f32 %v3107, 0.0
        %v3146 = vmax.f32 %v3112, 0.0
        %v3147 = vmax.f32 %v3117, 0.0
        %v3148 = vmax.f32 %v3122, 0.0
        %v3149 = vmax.f32 %v3127, 0.0
        %v3150 = vmax.f32 %v3132, 0.0
        %v3151 = vmax.f32 %v3137, 0.0
        %v3152 = vmax.f32 %v3142, 0.0
        %v3161 = vrot.slane %v3145, 1
        %v3162 = vrot.slane %v3146, 1
        %v3163 = vsel %vm2102, %v3161, %v3162
        %v3164 = vrot.slane %v3147, 1
        %v3165 = vsel %vm2102, %v3162, %v3164
        %v3166 = vrot.slane %v3148, 1
        %v3167 = vsel %vm2102, %v3164, %v3166
        %v3168 = vrot.slane %v3149, 1
        %v3169 = vsel %vm2102, %v3166, %v3168
        %v3170 = vrot.slane %v3150, 1
        %v3171 = vsel %vm2102, %v3168, %v3170
        %v3172 = vrot.slane %v3151, 1
        %v3173 = vsel %vm2102, %v3170, %v3172
        %v3174 = vrot.slane %v3152, 1
        %v3175 = vsel %vm2102, %v3172, %v3174
        %v3185 = vsel %vm2102, %v3174, %v3161
        %v3186 = vmax.f32 %v3145, %v3163
        %v3187 = vmax.f32 %v3146, %v3165
        %v3188 = vmax.f32 %v3147, %v3167
        %v3189 = vmax.f32 %v3148, %v3169
        %v3190 = vmax.f32 %v3149, %v3171
        %v3191 = vmax.f32 %v3150, %v3173
        %v3192 = vmax.f32 %v3151, %v3175
        %v3193 = vmax.f32 %v3152, %v3185
        %v3194 = vmax.f32 %v3186, %v3187
        %v3195 = vmax.f32 %v3187, %v3188
        %v3196 = vmax.f32 %v3188, %v3189
        %v3197 = vmax.f32 %v3189, %v3190
        %v3198 = vmax.f32 %v3190, %v3191
        %v3199 = vmax.f32 %v3191, %v3192
        %v3200 = vmax.f32 %v3192, %v3193
        %v3201 = vmax.f32 %v3193, %v3186
        %v3202 = vld [vmem:[%s2] sm:$0xff]
        %v3203 = vld [vmem:[%s2 + $0x8] sm:$0xff]
        %v3205 = vsel %vm2487, %v3202, 0
        %v3208 = vsel %vm2487, %v3203, 0
        %3210 = vmatprep.subr.mxu0 0.0
        %3211 = vmatpush1.msra.mxu0 %v3194
        %3212 = vmatprep.subr.mxu0 0.0
        %3213 = vmatpush1.msra.mxu0 %v3195
        %3214 = vmatprep.subr.mxu0 0.0
        %3215 = vmatpush1.msra.mxu0 %v3196
        %3216 = vmatprep.subr.mxu0 0.0
        %3217 = vmatpush1.msra.mxu0 %v3197
        %3218 = vmatprep.subr.mxu0 0.0
        %3219 = vmatpush1.msra.mxu0 %v3198
        %3220 = vmatprep.subr.mxu0 0.0
        %3221 = vmatpush1.msra.mxu0 %v3199
        %3222 = vmatprep.subr.mxu0 0.0
        %3223 = vmatpush1.msra.mxu0 %v3200
        %3224 = vmatprep.subr.mxu0 0.0
        %3225 = vmatpush1.msra.mxu0 %v3201
        %3226 = vmatprep.subr.mxu0 0.0
        %3227 = vmatpush1.msra.mxu0 0.0
        %3228 = vmatprep.subr.mxu0 0.0
        %3229 = vmatpush1.msra.mxu0 0.0
        %3230 = vmatprep.subr.mxu0 0.0
        %3231 = vmatpush1.msra.mxu0 0.0
        %3232 = vmatprep.subr.mxu0 0.0
        %3233 = vmatpush1.msra.mxu0 0.0
        %3234 = vmatprep.subr.mxu0 0.0
        %3235 = vmatpush1.msra.mxu0 0.0
        %3236 = vmatprep.subr.mxu0 0.0
        %3237 = vmatpush1.msra.mxu0 0.0
        %3238 = vmatprep.subr.mxu0 0.0
        %3239 = vmatpush1.msra.mxu0 0.0
        %3240 = vmatprep.subr.mxu0 0.0
        %3241 = vmatpush1.msra.mxu0 0.0
        %3242 = vmatprep.subr.mxu0 0.0
        %3243 = vmatpush1.msra.mxu0 0.0
        %3244 = vmatprep.subr.mxu0 0.0
        %3245 = vmatpush1.msra.mxu0 0.0
        %3246 = vmatprep.subr.mxu0 0.0
        %3247 = vmatpush1.msra.mxu0 0.0
        %3248 = vmatprep.subr.mxu0 0.0
        %3249 = vmatpush1.msra.mxu0 0.0
        %3250 = vmatprep.subr.mxu0 0.0
        %3251 = vmatpush1.msra.mxu0 0.0
        %3252 = vmatprep.subr.mxu0 0.0
        %3253 = vmatpush1.msra.mxu0 0.0
        %3254 = vmatprep.subr.mxu0 0.0
        %3255 = vmatpush1.msra.mxu0 0.0
        %3256 = vmatprep.subr.mxu0 0.0
        %3257 = vmatpush1.msra.mxu0 0.0
        %3258 = vmatprep.subr.mxu0 0.0
        %3259 = vmatpush1.msra.mxu0 0.0
        %3260 = vmatprep.subr.mxu0 0.0
        %3261 = vmatpush1.msra.mxu0 0.0
        %3262 = vmatprep.subr.mxu0 0.0
        %3263 = vmatpush1.msra.mxu0 0.0
        %3264 = vmatprep.subr.mxu0 0.0
        %3265 = vmatpush1.msra.mxu0 0.0
        %3266 = vmatprep.subr.mxu0 0.0
        %3267 = vmatpush1.msra.mxu0 0.0
        %3268 = vmatprep.subr.mxu0 0.0
        %3269 = vmatpush1.msra.mxu0 0.0
        %3270 = vmatprep.subr.mxu0 0.0
        %3271 = vmatpush1.msra.mxu0 0.0
        %3272 = vmatprep.subr.mxu0 0.0
        %3273 = vmatpush1.msra.mxu0 0.0
        %3274 = vmatprep.mubr.f32.mxu0 0.0
        %3275 = vmatmul.mubr.f32.gmra.mrb[0].mxu0 %v3205
        %v3276 = vpop.f32.mrb[0].mxu0
        %v3277 = vadd.f32 0.0, %v3276
        %v3278 = vpop.f32.mrb[0].mxu0
        %3279 = vmatprep.mubr.f32.mxu0 0.0
        %3280 = vmatmul.mubr.f32.gmra.mrb[0].mxu0 %v3208
        %v3281 = vpop.f32.mrb[0].mxu0
        %v3282 = vadd.f32 0.0, %v3281
        %v3283 = vpop.f32.mrb[0].mxu0
        %3284 = vdwg.mxu0
        %v3286 = vrot.slane %v3277, 1
        %3287 = vrot.lane.b32.xlu0 %v3286, 16
        %v3288 = vpop.permute.xlu0 %3287
        %v3290 = vrot.slane %v3277, 2
        %3291 = vrot.lane.b32.xlu0 %v3290, 32
        %v3292 = vpop.permute.xlu0 %3291
        %v3294 = vrot.slane %v3277, 3
        %3295 = vrot.lane.b32.xlu0 %v3294, 48
        %v3296 = vpop.permute.xlu0 %3295
        %v3298 = vrot.slane %v3277, 4
        %3299 = vrot.lane.b32.xlu0 %v3298, 64
        %v3300 = vpop.permute.xlu0 %3299
        %v3302 = vrot.slane %v3277, 5
        %3303 = vrot.lane.b32.xlu0 %v3302, 80
        %v3304 = vpop.permute.xlu0 %3303
        %v3306 = vrot.slane %v3277, 6
        %3307 = vrot.lane.b32.xlu0 %v3306, 96
        %v3308 = vpop.permute.xlu0 %3307
        %v3310 = vrot.slane %v3277, 7
        %3311 = vrot.lane.b32.xlu0 %v3310, 112
        %v3312 = vpop.permute.xlu0 %3311
        %v3315 = vrot.slane %v3282, 1
        %3316 = vrot.lane.b32.xlu0 %v3315, 16
        %v3317 = vpop.permute.xlu0 %3316
        %v3319 = vrot.slane %v3282, 2
        %3320 = vrot.lane.b32.xlu0 %v3319, 32
        %v3321 = vpop.permute.xlu0 %3320
        %v3323 = vrot.slane %v3282, 3
        %3324 = vrot.lane.b32.xlu0 %v3323, 48
        %v3325 = vpop.permute.xlu0 %3324
        %v3327 = vrot.slane %v3282, 4
        %3328 = vrot.lane.b32.xlu0 %v3327, 64
        %v3329 = vpop.permute.xlu0 %3328
        %v3331 = vrot.slane %v3282, 5
        %3332 = vrot.lane.b32.xlu0 %v3331, 80
        %v3333 = vpop.permute.xlu0 %3332
        %v3335 = vrot.slane %v3282, 6
        %3336 = vrot.lane.b32.xlu0 %v3335, 96
        %v3337 = vpop.permute.xlu0 %3336
        %v3339 = vrot.slane %v3282, 7
        %3340 = vrot.lane.b32.xlu0 %v3339, 112
        %v3341 = vpop.permute.xlu0 %3340
        %v3343 = vsel %vm2476, %v3277, %v3288
        %v3344 = vsel %vm2479, %v3343, %v3292
        %v3345 = vsel %vm2483, %v3344, %v3296
        %v3346 = vsel %vm2487, %v3345, %v3300
        %vm3347 = vcmask 654336
        %v3348 = vsel %vm3347, %v3346, %v3304
        %vm3349 = vcmask 785408
        %v3350 = vsel %vm3349, %v3348, %v3308
        %vm3351 = vcmask 916480
        %v3352 = vsel %vm3351, %v3350, %v3312
        %v3353 = vsel %vm2476, %v3282, %v3317
        %v3354 = vsel %vm2479, %v3353, %v3321
        %v3355 = vsel %vm2483, %v3354, %v3325
        %v3356 = vsel %vm2487, %v3355, %v3329
        %v3357 = vsel %vm3347, %v3356, %v3333
        %v3358 = vsel %vm3349, %v3357, %v3337
        %v3359 = vsel %vm3351, %v3358, %v3341
        %v3360 = vld [vmem:[%s7] sm:$0xff]
        %v3361 = vld [vmem:[%s7 + $0x8] sm:$0xff]
        %v3362 = vld [vmem:[%s7 + $0x10] sm:$0xff]
        %v3363 = vld [vmem:[%s7 + $0x18] sm:$0xff]
        %v3364 = vld [vmem:[%s7 + $0x20] sm:$0xff]
        %v3365 = vld [vmem:[%s7 + $0x28] sm:$0xff]
        %v3366 = vld [vmem:[%s7 + $0x30] sm:$0xff]
        %v3367 = vld [vmem:[%s7 + $0x38] sm:$0xff]
        %v3368 = vld [vmem:[%s7 + $0x40] sm:$0xff]
        %v3369 = vld [vmem:[%s7 + $0x48] sm:$0xff]
        %v3370 = vld [vmem:[%s7 + $0x50] sm:$0xff]
        %v3371 = vld [vmem:[%s7 + $0x58] sm:$0xff]
        %v3372 = vld [vmem:[%s7 + $0x60] sm:$0xff]
        %v3373 = vld [vmem:[%s7 + $0x68] sm:$0xff]
        %v3374 = vld [vmem:[%s7 + $0x70] sm:$0xff]
        %v3375 = vld [vmem:[%s7 + $0x78] sm:$0xff]
        %v3376 = vld [vmem:[%s7 + $0x80] sm:$0xff]
        %v3377 = vld [vmem:[%s7 + $0x88] sm:$0xff]
        %v3378 = vld [vmem:[%s7 + $0x90] sm:$0xff]
        %v3379 = vld [vmem:[%s7 + $0x98] sm:$0xff]
        %v3380 = vld [vmem:[%s7 + $0xa0] sm:$0xff]
        %v3381 = vld [vmem:[%s7 + $0xa8] sm:$0xff]
        %v3382 = vld [vmem:[%s7 + $0xb0] sm:$0xff]
        %v3383 = vld [vmem:[%s7 + $0xb8] sm:$0xff]
        %v3384 = vld [vmem:[%s7 + $0xc0] sm:$0xff]
        %v3385 = vld [vmem:[%s7 + $0xc8] sm:$0xff]
        %v3386 = vld [vmem:[%s7 + $0xd0] sm:$0xff]
        %v3387 = vld [vmem:[%s7 + $0xd8] sm:$0xff]
        %v3388 = vld [vmem:[%s7 + $0xe0] sm:$0xff]
        %v3389 = vld [vmem:[%s7 + $0xe8] sm:$0xff]
        %v3390 = vld [vmem:[%s7 + $0xf0] sm:$0xff]
        %v3391 = vld [vmem:[%s7 + $0xf8] sm:$0xff]
        %v3392 = vld [vmem:[%s8] sm:$0x1]
        %3393 = vmatprep.subr.mxu0 0.0
        %3394 = vmatpush1.msra.mxu0 %v3360
        %3395 = vmatprep.subr.mxu0 0.0
        %3396 = vmatpush1.msra.mxu0 %v3361
        %3397 = vmatprep.subr.mxu0 0.0
        %3398 = vmatpush1.msra.mxu0 %v3362
        %3399 = vmatprep.subr.mxu0 0.0
        %3400 = vmatpush1.msra.mxu0 %v3363
        %3401 = vmatprep.subr.mxu0 0.0
        %3402 = vmatpush1.msra.mxu0 %v3364
        %3403 = vmatprep.subr.mxu0 0.0
        %3404 = vmatpush1.msra.mxu0 %v3365
        %3405 = vmatprep.subr.mxu0 0.0
        %3406 = vmatpush1.msra.mxu0 %v3366
        %3407 = vmatprep.subr.mxu0 0.0
        %3408 = vmatpush1.msra.mxu0 %v3367
        %3409 = vmatprep.subr.mxu0 0.0
        %3410 = vmatpush1.msra.mxu0 %v3368
        %3411 = vmatprep.subr.mxu0 0.0
        %3412 = vmatpush1.msra.mxu0 %v3369
        %3413 = vmatprep.subr.mxu0 0.0
        %3414 = vmatpush1.msra.mxu0 %v3370
        %3415 = vmatprep.subr.mxu0 0.0
        %3416 = vmatpush1.msra.mxu0 %v3371
        %3417 = vmatprep.subr.mxu0 0.0
        %3418 = vmatpush1.msra.mxu0 %v3372
        %3419 = vmatprep.subr.mxu0 0.0
        %3420 = vmatpush1.msra.mxu0 %v3373
        %3421 = vmatprep.subr.mxu0 0.0
        %3422 = vmatpush1.msra.mxu0 %v3374
        %3423 = vmatprep.subr.mxu0 0.0
        %3424 = vmatpush1.msra.mxu0 %v3375
        %3425 = vmatprep.subr.mxu0 0.0
        %3426 = vmatpush1.msra.mxu0 %v3376
        %3427 = vmatprep.subr.mxu0 0.0
        %3428 = vmatpush1.msra.mxu0 %v3377
        %3429 = vmatprep.subr.mxu0 0.0
        %3430 = vmatpush1.msra.mxu0 %v3378
        %3431 = vmatprep.subr.mxu0 0.0
        %3432 = vmatpush1.msra.mxu0 %v3379
        %3433 = vmatprep.subr.mxu0 0.0
        %3434 = vmatpush1.msra.mxu0 %v3380
        %3435 = vmatprep.subr.mxu0 0.0
        %3436 = vmatpush1.msra.mxu0 %v3381
        %3437 = vmatprep.subr.mxu0 0.0
        %3438 = vmatpush1.msra.mxu0 %v3382
        %3439 = vmatprep.subr.mxu0 0.0
        %3440 = vmatpush1.msra.mxu0 %v3383
        %3441 = vmatprep.subr.mxu0 0.0
        %3442 = vmatpush1.msra.mxu0 %v3384
        %3443 = vmatprep.subr.mxu0 0.0
        %3444 = vmatpush1.msra.mxu0 %v3385
        %3445 = vmatprep.subr.mxu0 0.0
        %3446 = vmatpush1.msra.mxu0 %v3386
        %3447 = vmatprep.subr.mxu0 0.0
        %3448 = vmatpush1.msra.mxu0 %v3387
        %3449 = vmatprep.subr.mxu0 0.0
        %3450 = vmatpush1.msra.mxu0 %v3388
        %3451 = vmatprep.subr.mxu0 0.0
        %3452 = vmatpush1.msra.mxu0 %v3389
        %3453 = vmatprep.subr.mxu0 0.0
        %3454 = vmatpush1.msra.mxu0 %v3390
        %3455 = vmatprep.subr.mxu0 0.0
        %3456 = vmatpush1.msra.mxu0 %v3391
        %3457 = vmatprep.mubr.f32.mxu0 %v3359
        %3458 = vmatmul.mubr.f32.gmra.mrb[0].mxu0 %v3352
        %v3459 = vpop.f32.mrb[0].mxu0
        %v3460 = vadd.f32 %v3392, %v3459
        %v3461 = vpop.f32.mrb[0].mxu0
        %3462 = vdwg.mxu0
        %v3463 = vmax.f32 %v3460, 0.0
        %v3464 = vld [vmem:[%s9] sm:$0xff]
        %v3465 = vld [vmem:[%s9 + $0x8] sm:$0xff]
        %v3466 = vld [vmem:[%s9 + $0x10] sm:$0xff]
        %v3467 = vld [vmem:[%s9 + $0x18] sm:$0xff]
        %v3468 = vld [vmem:[%s9 + $0x20] sm:$0xff]
        %v3469 = vld [vmem:[%s9 + $0x28] sm:$0xff]
        %v3470 = vld [vmem:[%s9 + $0x30] sm:$0xff]
        %v3471 = vld [vmem:[%s9 + $0x38] sm:$0xff]
        %v3472 = vld [vmem:[%s10] sm:$0x1]
        %v3474 = vsel %vm2487, %v3463, 0
        %3476 = vmatprep.subr.mxu0 0.0
        %3477 = vmatpush1.msra.mxu0 %v3464
        %3478 = vmatprep.subr.mxu0 0.0
        %3479 = vmatpush1.msra.mxu0 %v3465
        %3480 = vmatprep.subr.mxu0 0.0
        %3481 = vmatpush1.msra.mxu0 %v3466
        %3482 = vmatprep.subr.mxu0 0.0
        %3483 = vmatpush1.msra.mxu0 %v3467
        %3484 = vmatprep.subr.mxu0 0.0
        %3485 = vmatpush1.msra.mxu0 %v3468
        %3486 = vmatprep.subr.mxu0 0.0
        %3487 = vmatpush1.msra.mxu0 %v3469
        %3488 = vmatprep.subr.mxu0 0.0
        %3489 = vmatpush1.msra.mxu0 %v3470
        %3490 = vmatprep.subr.mxu0 0.0
        %3491 = vmatpush1.msra.mxu0 %v3471
        %3492 = vmatprep.subr.mxu0 0.0
        %3493 = vmatpush1.msra.mxu0 0.0
        %3494 = vmatprep.subr.mxu0 0.0
        %3495 = vmatpush1.msra.mxu0 0.0
        %3496 = vmatprep.subr.mxu0 0.0
        %3497 = vmatpush1.msra.mxu0 0.0
        %3498 = vmatprep.subr.mxu0 0.0
        %3499 = vmatpush1.msra.mxu0 0.0
        %3500 = vmatprep.subr.mxu0 0.0
        %3501 = vmatpush1.msra.mxu0 0.0
        %3502 = vmatprep.subr.mxu0 0.0
        %3503 = vmatpush1.msra.mxu0 0.0
        %3504 = vmatprep.subr.mxu0 0.0
        %3505 = vmatpush1.msra.mxu0 0.0
        %3506 = vmatprep.subr.mxu0 0.0
        %3507 = vmatpush1.msra.mxu0 0.0
        %3508 = vmatprep.subr.mxu0 0.0
        %3509 = vmatpush1.msra.mxu0 0.0
        %3510 = vmatprep.subr.mxu0 0.0
        %3511 = vmatpush1.msra.mxu0 0.0
        %3512 = vmatprep.subr.mxu0 0.0
        %3513 = vmatpush1.msra.mxu0 0.0
        %3514 = vmatprep.subr.mxu0 0.0
        %3515 = vmatpush1.msra.mxu0 0.0
        %3516 = vmatprep.subr.mxu0 0.0
        %3517 = vmatpush1.msra.mxu0 0.0
        %3518 = vmatprep.subr.mxu0 0.0
        %3519 = vmatpush1.msra.mxu0 0.0
        %3520 = vmatprep.subr.mxu0 0.0
        %3521 = vmatpush1.msra.mxu0 0.0
        %3522 = vmatprep.subr.mxu0 0.0
        %3523 = vmatpush1.msra.mxu0 0.0
        %3524 = vmatprep.subr.mxu0 0.0
        %3525 = vmatpush1.msra.mxu0 0.0
        %3526 = vmatprep.subr.mxu0 0.0
        %3527 = vmatpush1.msra.mxu0 0.0
        %3528 = vmatprep.subr.mxu0 0.0
        %3529 = vmatpush1.msra.mxu0 0.0
        %3530 = vmatprep.subr.mxu0 0.0
        %3531 = vmatpush1.msra.mxu0 0.0
        %3532 = vmatprep.subr.mxu0 0.0
        %3533 = vmatpush1.msra.mxu0 0.0
        %3534 = vmatprep.subr.mxu0 0.0
        %3535 = vmatpush1.msra.mxu0 0.0
        %3536 = vmatprep.subr.mxu0 0.0
        %3537 = vmatpush1.msra.mxu0 0.0
        %3538 = vmatprep.subr.mxu0 0.0
        %3539 = vmatpush1.msra.mxu0 0.0
        %3540 = vmatprep.mubr.f32.mxu0 0.0
        %3541 = vmatmul.mubr.f32.gmra.mrb[0].mxu0 %v3474
        %v3542 = vpop.f32.mrb[0].mxu0
        %v3543 = vadd.f32 %v3472, %v3542
        %v3544 = vpop.f32.mrb[0].mxu0
        %3545 = vdwg.mxu0
        %v3546 = vmax.f32 %v3543, 0.0
        %v3547 = vld [vmem:[%s11] sm:$0xff]
        %v3548 = vld [vmem:[%s11 + $0x8] sm:$0xff]
        %v3549 = vld [vmem:[%s11 + $0x10] sm:$0xff]
        %v3550 = vld [vmem:[%s11 + $0x18] sm:$0xff]
        %v3551 = vld [vmem:[%s11 + $0x20] sm:$0xff]
        %v3552 = vld [vmem:[%s11 + $0x28] sm:$0xff]
        %v3553 = vld [vmem:[%s11 + $0x30] sm:$0xff]
        %v3554 = vld [vmem:[%s11 + $0x38] sm:$0xff]
        %v3555 = vld [vmem:[%s12] sm:$0x1]
        %v3557 = vsel %vm2487, %v3546, 0
        %3559 = vmatprep.subr.mxu0 0.0
        %3560 = vmatpush1.msra.mxu0 %v3547
        %3561 = vmatprep.subr.mxu0 0.0
        %3562 = vmatpush1.msra.mxu0 %v3548
        %3563 = vmatprep.subr.mxu0 0.0
        %3564 = vmatpush1.msra.mxu0 %v3549
        %3565 = vmatprep.subr.mxu0 0.0
        %3566 = vmatpush1.msra.mxu0 %v3550
        %3567 = vmatprep.subr.mxu0 0.0
        %3568 = vmatpush1.msra.mxu0 %v3551
        %3569 = vmatprep.subr.mxu0 0.0
        %3570 = vmatpush1.msra.mxu0 %v3552
        %3571 = vmatprep.subr.mxu0 0.0
        %3572 = vmatpush1.msra.mxu0 %v3553
        %3573 = vmatprep.subr.mxu0 0.0
        %3574 = vmatpush1.msra.mxu0 %v3554
        %3575 = vmatprep.subr.mxu0 0.0
        %3576 = vmatpush1.msra.mxu0 0.0
        %3577 = vmatprep.subr.mxu0 0.0
        %3578 = vmatpush1.msra.mxu0 0.0
        %3579 = vmatprep.subr.mxu0 0.0
        %3580 = vmatpush1.msra.mxu0 0.0
        %3581 = vmatprep.subr.mxu0 0.0
        %3582 = vmatpush1.msra.mxu0 0.0
        %3583 = vmatprep.subr.mxu0 0.0
        %3584 = vmatpush1.msra.mxu0 0.0
        %3585 = vmatprep.subr.mxu0 0.0
        %3586 = vmatpush1.msra.mxu0 0.0
        %3587 = vmatprep.subr.mxu0 0.0
        %3588 = vmatpush1.msra.mxu0 0.0
        %3589 = vmatprep.subr.mxu0 0.0
        %3590 = vmatpush1.msra.mxu0 0.0
        %3591 = vmatprep.subr.mxu0 0.0
        %3592 = vmatpush1.msra.mxu0 0.0
        %3593 = vmatprep.subr.mxu0 0.0
        %3594 = vmatpush1.msra.mxu0 0.0
        %3595 = vmatprep.subr.mxu0 0.0
        %3596 = vmatpush1.msra.mxu0 0.0
        %3597 = vmatprep.subr.mxu0 0.0
        %3598 = vmatpush1.msra.mxu0 0.0
        %3599 = vmatprep.subr.mxu0 0.0
        %3600 = vmatpush1.msra.mxu0 0.0
        %3601 = vmatprep.subr.mxu0 0.0
        %3602 = vmatpush1.msra.mxu0 0.0
        %3603 = vmatprep.subr.mxu0 0.0
        %3604 = vmatpush1.msra.mxu0 0.0
        %3605 = vmatprep.subr.mxu0 0.0
        %3606 = vmatpush1.msra.mxu0 0.0
        %3607 = vmatprep.subr.mxu0 0.0
        %3608 = vmatpush1.msra.mxu0 0.0
        %3609 = vmatprep.subr.mxu0 0.0
        %3610 = vmatpush1.msra.mxu0 0.0
        %3611 = vmatprep.subr.mxu0 0.0
        %3612 = vmatpush1.msra.mxu0 0.0
        %3613 = vmatprep.subr.mxu0 0.0
        %3614 = vmatpush1.msra.mxu0 0.0
        %3615 = vmatprep.subr.mxu0 0.0
        %3616 = vmatpush1.msra.mxu0 0.0
        %3617 = vmatprep.subr.mxu0 0.0
        %3618 = vmatpush1.msra.mxu0 0.0
        %3619 = vmatprep.subr.mxu0 0.0
        %3620 = vmatpush1.msra.mxu0 0.0
        %3621 = vmatprep.subr.mxu0 0.0
        %3622 = vmatpush1.msra.mxu0 0.0
        %3623 = vmatprep.mubr.f32.mxu0 0.0
        %3624 = vmatmul.mubr.f32.gmra.mrb[0].mxu0 %v3557
        %v3625 = vpop.f32.mrb[0].mxu0
        %v3626 = vadd.f32 %v3555, %v3625
        %v3627 = vpop.f32.mrb[0].mxu0
        %3628 = vdwg.mxu0
        %vm3629 = vcmask 73728
        %3630 = vst.msk [vmem:[%s432] sm:$0x1] %vm3629, %v3626
        %s3631 = sand.u32 %s313, 1
        %s3632 = scalar_lea.sflag [#allocation3], %s3631
        %s3633 = sand.u32 %s313, 1
        %s3634 = scalar_lea.vmem [#allocation2], %s3633
        // Predicated region
        $region73: #{vgg_forward_pallas.1} parent=71 // pred_check
          %p3635 = pneg %p323
        $region74: #{vgg_forward_pallas.1} parent=71 // pred_check_branch
          %3637 = sbr.rel (%p3635) target = $region76
        $region75: #{vgg_forward_pallas.1} parent=71 // pred_region
          %s3639 = ssub.s32 16, 16
          %3640 = vsyncadd %s3632, %s3639
          %s3641 = smul.addr %s27, 16
          %s3642 = scalar_lea.hbm %s13, %s3641
          %s3644 = sshll.u32 %s3634, 4
          %s3645 = int_to_ptr.vmem [resolvable:$true] %s3644
          %3647 = dma.vmem_to_hbm [thread:$0]  %s3645, 16, %s3642, %s3632
        $region76: #{vgg_forward_pallas.1} parent=71 // pred_fallthru
          _
      $region72: #{vgg_forward_pallas.1} parent=5 // pred_fallthru
        _
      %p3648 = scmp.le.s32.totalorder 2, %s22
      // Predicated region
      $region77: #{vgg_forward_pallas.1} parent=5 // pred_check
        %p3649 = pneg %p3648
      $region78: #{vgg_forward_pallas.1} parent=5 // pred_check_branch
        %3651 = sbr.rel (%p3649) target = $region80
      $region79: #{vgg_forward_pallas.1} parent=5 // pred_region
        %s3652 = ssub.s32 %s22, 2
        // Predicated region
        $region81: #{vgg_forward_pallas.1} parent=79 // pred_check
          %p3653 = pneg %p329
        $region82: #{vgg_forward_pallas.1} parent=79 // pred_check_branch
          %3655 = sbr.rel (%p3653) target = $region84
        $region83: #{vgg_forward_pallas.1} parent=79 // pred_region
          %s3656 = sand.u32 %s314, 1
          %s3657 = scalar_lea.sflag [#allocation3], %s3656
          %s3658 = sand.u32 %s314, 1
          %s3659 = scalar_lea.vmem [#allocation2], %s3658
          %3660 = dma.done %s3657, 16
        $region84: #{vgg_forward_pallas.1} parent=79 // pred_fallthru
          _
      $region80: #{vgg_forward_pallas.1} parent=5 // pred_fallthru
        _
    $region6: #{vgg_forward_pallas.1} parent=1 // loop_footer
      %s26 = sadd.s32 1, %s22
    $region7: #{vgg_forward_pallas.1} parent=1 // loop_footer_branch
      %21 = sbr.rel target = $region3
    $region8: #{vgg_forward_pallas.1} parent=1 // loop_exit
      _
    %3661 = vsyncpa [#allocation3], 1
    %s3662 = scalar_lea.sflag [#allocation3], 1
    %3663 = vsyncpa %s3662, 1

</llo_original>
